<compile_context>
chip_gen: v7x
topology: tpu7x:2x2x1
jax: 0.10.0
libtpu: 0.0.40
codegen_flags: <defaults>
</compile_context>

<pallas_src>
import math
import functools

import jax
import jax.numpy as jnp
from jax.experimental import pallas as pl
from jax.experimental.pallas import tpu as pltpu


# ------------------------------- kernel ------------------------------------ #

def _layernorm(x, g, b, eps=1e-5):
    mu = jnp.mean(x, axis=-1, keepdims=True)
    var = jnp.mean(jnp.square(x - mu), axis=-1, keepdims=True)
    return (x - mu) / jnp.sqrt(var + eps) * g + b


def _model_kernel(x_ref, mask_ref, ln_ref, wqkv_ref, w1_ref, w2_ref, wc_ref,
                  bias_ref, out_ref, *, num_heads, num_layers, batch, seq):
    N = batch * seq
    H = num_heads
    L = num_layers
    x = x_ref[...]                          # (N, E)  batch folded into rows
    E = x.shape[-1]
    dh = E // H
    F = w1_ref.shape[-1]
    Vp = wc_ref.shape[-1]
    inv_scale = 1.0 / math.sqrt(E)          # reference divides by sqrt(embedding_size)

    lns = ln_ref[...]                       # (4L+2, E)   all LayerNorm gammas/betas
    biases = bias_ref[...]                  # (3L+1, Wmax) all linear biases (row-packed)

    # ---- hoisted constants: emitted once for the whole trace ----
    # additive causal mask (0 / -1e30), built at full (H,B,Tq,Tk) so no per-layer broadcast
    qi = jax.lax.broadcasted_iota(jnp.int32, (H, batch, seq, seq), 2)
    ki = jax.lax.broadcasted_iota(jnp.int32, (H, batch, seq, seq), 3)
    causal_bias = jnp.where(ki > qi, -1e30, 0.0)
    # pad mask is applied POST-softmax (reference semantics); broadcast hoisted once
    mask_full = jnp.broadcast_to(mask_ref[...][None, :, None, :], (H, batch, seq, seq))

    for l in range(L):                      # static unroll (L = 2)
        g1 = lns[4 * l + 0:4 * l + 1]
        b1 = lns[4 * l + 1:4 * l + 2]
        g2 = lns[4 * l + 2:4 * l + 3]
        b2 = lns[4 * l + 3:4 * l + 4]
        bqkv = biases[l:l + 1, :3 * E]
        bf1 = biases[L + l:L + l + 1, :F]
        bf2 = biases[2 * L + l:2 * L + l + 1, :E]

        # ---- LayerNorm 1 ----
        xn = _layernorm(x, g1, b1)                                           # (N, E)

        # ---- fused QKV: ONE (N,E)x(E,3E) matmul instead of 3*H tiny ones ----
        qkv = jnp.dot(xn, wqkv_ref[l], preferred_element_type=jnp.float32) + bqkv
        q_all = qkv[:, :E].reshape(batch, seq, E)
        k_all = qkv[:, E:2 * E].reshape(batch, seq, E)
        v_all = qkv[:, 2 * E:3 * E].reshape(batch, seq, E)

        # per-head score einsums (3-D, single batch dim), stacked on a leading axis
        scores = []
        for h in range(H):                   # static unroll (H = 4)
            sl = slice(h * dh, (h + 1) * dh)
            scores.append(jnp.einsum('bqd,bkd->bqk', q_all[..., sl], k_all[..., sl],
                                     preferred_element_type=jnp.float32))
        s = jnp.stack(scores, axis=0) * inv_scale + causal_bias              # (H,B,Tq,Tk)

        # softmax over the QUERY axis (reference uses dim = ndim-2), issued once / layer
        m = jnp.max(s, axis=2, keepdims=True)
        e = jnp.exp(s - m)
        attn = e * pl.reciprocal(jnp.sum(e, axis=2, keepdims=True), approx=True)
        attn = attn * mask_full              # post-softmax pad mask (rows may not sum to 1)

        heads = []
        for h in range(H):
            heads.append(jnp.einsum('bqk,bkd->bqd', attn[h],
                                    v_all[..., h * dh:(h + 1) * dh],
                                    preferred_element_type=jnp.float32))     # (B,T,dh)
        concat = jnp.concatenate(heads, axis=-1).reshape(N, E)               # (N, E)

        # ---- LayerNorm 2 + FFN (NO residual, as in the reference Decoder) ----
        xn2 = _layernorm(concat, g2, b2)
        hid = jnp.dot(xn2, w1_ref[l], preferred_element_type=jnp.float32) + bf1
        # exact erf GELU to match torch nn.GELU(); tanh approx would offload to the
        # EUP slot but changes numerics (~1e-3), so it is intentionally not used.
        hid = 0.5 * hid * (1.0 + jax.lax.erf(hid * (1.0 / math.sqrt(2.0))))
        x = jnp.dot(hid, w2_ref[l], preferred_element_type=jnp.float32) + bf2
        # TODO(synk): nn.Dropout has no deterministic Pallas equivalent; identity (eval).

    # ---- final LayerNorm + classifier + softmax over (lane-padded) vocab ----
    gF = lns[4 * L:4 * L + 1]
    bF = lns[4 * L + 1:4 * L + 2]
    bc = biases[3 * L:3 * L + 1, :Vp]
    xn = _layernorm(x, gF, bF)
    logits = jnp.dot(xn, wc_ref[...], preferred_element_type=jnp.float32) + bc
    m = jnp.max(logits, axis=-1, keepdims=True)
    e = jnp.exp(logits - m)                  # padded vocab columns carry -1e30 bias -> exp == 0
    out_ref[...] = e / jnp.sum(e, axis=-1, keepdims=True)   # exact division for output parity


# ------------------------------- wrappers ----------------------------------- #

def fused_forward(x2, mask2, sp, *, num_heads, num_layers, batch, seq):
    Vp = sp['wc'].shape[1]
    kernel = functools.partial(_model_kernel, num_heads=num_heads,
                               num_layers=num_layers, batch=batch, seq=seq)
    args = (x2, mask2, sp['ln_all'], sp['wqkv'], sp['w1'], sp['w2'],
            sp['wc'], sp['bias_all'])
    vmem = lambda: pl.BlockSpec(memory_space=pltpu.MemorySpace.VMEM)
    return pl.pallas_call(
        kernel,
        out_shape=jax.ShapeDtypeStruct((batch * seq, Vp), jnp.float32),
        in_specs=[vmem() for _ in args],
        out_specs=vmem(),
    )(*args)


def prepare_params(params, *, num_heads, lane=128):
    """Pack per-layer weights: fused QKV, one LN slab, one bias slab, padded classifier."""
    E = params['emb'].shape[1]
    decs = params['decoders']
    L = len(decs)
    F = decs[0]['w1'].shape[1]
    V = params['wc'].shape[1]
    Vp = ((V + lane - 1) // lane) * lane

    # LayerNorm slab: rows [4l..4l+3] = (ln1_g, ln1_b, ln2_g, ln2_b); rows [4L,4L+1] = final
    ln_rows = []
    for d in decs:
        ln_rows += [d['ln1_g'], d['ln1_b'], d['ln2_g'], d['ln2_b']]
    ln_rows += [params['ln_g'], params['ln_b']]
    ln_all = jnp.concatenate(ln_rows, axis=0)                       # (4L+2, E)

    # fused QKV weights, columns ordered [Q | K | V]
    wqkv = jnp.stack([jnp.concatenate([d['wq'], d['wk'], d['wv']], axis=1)
                      for d in decs], axis=0)                       # (L, E, 3E)
    w1 = jnp.stack([d['w1'] for d in decs], axis=0)                 # (L, E, F)
    w2 = jnp.stack([d['w2'] for d in decs], axis=0)                 # (L, F, E)

    # lane-padded classifier (padded logit columns get a -1e30 bias)
    wc = jnp.pad(params['wc'], ((0, 0), (0, Vp - V)))
    bc = jnp.concatenate([params['bc'],
                          jnp.full((1, Vp - V), -1e30, jnp.float32)], axis=-1)

    # single bias slab: rows [0..L-1]=bqkv, [L..2L-1]=b1, [2L..3L-1]=b2, [3L]=bc
    Wmax = max(3 * E, F, E, Vp)

    def row(b):
        return jnp.pad(b, ((0, 0), (0, Wmax - b.shape[1])))

    rows = [row(jnp.concatenate([d['bq'], d['bk'], d['bv']], axis=1)) for d in decs]
    rows += [row(d['b1']) for d in decs]
    rows += [row(d['b2']) for d in decs]
    rows += [row(bc)]
    bias_all = jnp.concatenate(rows, axis=0)                        # (3L+1, Wmax)

    return {'ln_all': ln_all, 'wqkv': wqkv, 'w1': w1, 'w2': w2,
            'wc': wc, 'bias_all': bias_all, 'vocab': V}


def pos_embeddings(positions, embed):
    # Matches Model.pos_embeddings (sin on even columns, cos on odd columns).
    inds = jnp.arange(0, embed // 2)
    denom = jnp.power(10000.0, inds * 2 / embed)                  # (E/2,)
    posreps = positions[..., None].astype(jnp.float32) / denom    # (B, T, E/2)
    evens = jnp.sin(posreps)
    odds = jnp.cos(posreps)
    B, T = positions.shape
    embs = jnp.zeros((B, T, embed), jnp.float32)
    embs = embs.at[..., 0::2].set(evens)
    embs = embs.at[..., 1::2].set(odds)
    return embs


def model_forward(params, sp, X_idxs, pos, mask, *, num_heads):
    E = params['emb'].shape[1]
    B, T = X_idxs.shape
    # glue (not the hot path): embedding gather + sinusoidal positional embedding.
    # TODO(synk): the embedding gather stays in XLA; fusing it would need a
    # scalar-prefetch DMA gather which is not worth it at these sizes.
    embs = params['emb'][X_idxs] + pos_embeddings(pos, E)
    out_padded = fused_forward(
        embs.reshape(B * T, E).astype(jnp.float32),
        mask.astype(jnp.float32),
        sp, num_heads=num_heads, num_layers=len(params['decoders']),
        batch=B, seq=T)
    V = sp['vocab']
    return out_padded[:, :V].reshape(B, T, V)


# ------------------------------- params ------------------------------------- #

def init_params(key, *, vocab, embed, hidden_factor, num_decoders):
    F = hidden_factor * embed
    n_keys = 2 + num_decoders * 5
    keys = jax.random.split(key, n_keys)
    ki = iter(keys)

    def dense(k, n_in, n_out, scale=0.02):
        return (scale * jax.random.normal(k, (n_in, n_out), jnp.float32),
                jnp.zeros((1, n_out), jnp.float32))

    params = {
        'emb': 0.02 * jax.random.normal(next(ki), (vocab, embed), jnp.float32),
        'ln_g': jnp.ones((1, embed), jnp.float32),
        'ln_b': jnp.zeros((1, embed), jnp.float32),
        'decoders': [],
    }
    wc, bc = dense(next(ki), embed, vocab)
    params['wc'], params['bc'] = wc, bc

    for _ in range(num_decoders):
        wq, bq = dense(next(ki), embed, embed)
        wk, bk = dense(next(ki), embed, embed)
        wv, bv = dense(next(ki), embed, embed)
        w1, b1 = dense(next(ki), embed, F)
        w2, b2 = dense(next(ki), F, embed)
        params['decoders'].append({
            'ln1_g': jnp.ones((1, embed), jnp.float32),
            'ln1_b': jnp.zeros((1, embed), jnp.float32),
            'wq': wq, 'bq': bq, 'wk': wk, 'bk': bk, 'wv': wv, 'bv': bv,
            'ln2_g': jnp.ones((1, embed), jnp.float32),
            'ln2_b': jnp.zeros((1, embed), jnp.float32),
            'w1': w1, 'b1': b1, 'w2': w2, 'b2': b2,
        })
    return params


# --------------------------------- main -------------------------------------- #

if __name__ == "__main__":
    B, T = 2, 8
    VOCAB, N_DEC, N_HEADS, EMBED, HID_FACTOR = 64, 2, 4, 32, 4
    # lora_rank=None (default) => LoraLayers are identity pass-throughs.

    key = jax.random.PRNGKey(0)
    k_param, k_idx = jax.random.split(key)
    params = init_params(k_param, vocab=VOCAB, embed=EMBED,
                         hidden_factor=HID_FACTOR, num_decoders=N_DEC)
    stacked = prepare_params(params, num_heads=N_HEADS)

    X_idxs = jax.random.randint(k_idx, (B, T), 0, VOCAB, dtype=jnp.int32)
    pos = jnp.tile(jnp.arange(T, dtype=jnp.int32), (B, 1))
    mask = jnp.ones((B, T), jnp.float32).at[1, 6:].set(0.0)   # pad last 2 of batch 1

    out = model_forward(params, stacked, X_idxs, pos, mask, num_heads=N_HEADS)
    out = jax.block_until_ready(out)
    assert out.shape == (B, T, VOCAB)
    assert bool(jnp.all(jnp.isfinite(out)))
    print("KERNEL_OK")
</pallas_src>

<mosaic_0001>
module attributes {stable_mosaic.version = 11 : i64} {
  func.func @_model_kernel(%arg0: memref<16x32xf32, #tpu.memory_space<vmem>>, %arg1: memref<2x8xf32, #tpu.memory_space<vmem>>, %arg2: memref<10x32xf32, #tpu.memory_space<vmem>>, %arg3: memref<2x32x96xf32, #tpu.memory_space<vmem>>, %arg4: memref<2x32x128xf32, #tpu.memory_space<vmem>>, %arg5: memref<2x128x32xf32, #tpu.memory_space<vmem>>, %arg6: memref<32x128xf32, #tpu.memory_space<vmem>>, %arg7: memref<7x128xf32, #tpu.memory_space<vmem>>, %arg8: memref<16x128xf32, #tpu.memory_space<vmem>>) attributes {dimension_semantics = [], scalar_prefetch = 0 : i64, scratch_operands = 0 : i64, tpu.core_type = #tpu.core_type<tc>} {
    %c0 = arith.constant 0 : index
    %c0_0 = arith.constant 0 : index
    %0 = vector.load %arg0[%c0, %c0_0] : memref<16x32xf32, #tpu.memory_space<vmem>>, vector<16x32xf32>
    %c0_1 = arith.constant 0 : index
    %c0_2 = arith.constant 0 : index
    %1 = vector.load %arg2[%c0_1, %c0_2] : memref<10x32xf32, #tpu.memory_space<vmem>>, vector<10x32xf32>
    %c0_3 = arith.constant 0 : index
    %c0_4 = arith.constant 0 : index
    %2 = vector.load %arg7[%c0_3, %c0_4] : memref<7x128xf32, #tpu.memory_space<vmem>>, vector<7x128xf32>
    %3 = tpu.iota {dimensions = array<i32: 2>} : vector<4x2x8x8xi32>
    %4 = tpu.iota {dimensions = array<i32: 3>} : vector<4x2x8x8xi32>
    %5 = arith.cmpi sgt, %4, %3 : vector<4x2x8x8xi32>
    %cst = arith.constant -1.000000e+30 : f32
    %cst_5 = arith.constant 0.000000e+00 : f32
    %6 = vector.broadcast %cst : f32 to vector<4x2x8x8xf32>
    %7 = vector.broadcast %cst_5 : f32 to vector<4x2x8x8xf32>
    %8 = arith.select %5, %6, %7 : vector<4x2x8x8xi1>, vector<4x2x8x8xf32>
    %c0_6 = arith.constant 0 : index
    %c0_7 = arith.constant 0 : index
    %9 = vector.load %arg1[%c0_6, %c0_7] : memref<2x8xf32, #tpu.memory_space<vmem>>, vector<2x8xf32>
    %10 = vector.shape_cast %9 : vector<2x8xf32> to vector<1x2x1x8xf32>
    %11 = vector.shape_cast %10 : vector<1x2x1x8xf32> to vector<1x2x1x8xf32>
    %12 = vector.broadcast %11 : vector<1x2x1x8xf32> to vector<4x2x8x8xf32>
    %13 = vector.extract_strided_slice %1 {offsets = [0, 0], sizes = [1, 32], strides = [1, 1]} : vector<10x32xf32> to vector<1x32xf32>
    %14 = vector.extract_strided_slice %1 {offsets = [1, 0], sizes = [1, 32], strides = [1, 1]} : vector<10x32xf32> to vector<1x32xf32>
    %15 = vector.extract_strided_slice %1 {offsets = [2, 0], sizes = [1, 32], strides = [1, 1]} : vector<10x32xf32> to vector<1x32xf32>
    %16 = vector.extract_strided_slice %1 {offsets = [3, 0], sizes = [1, 32], strides = [1, 1]} : vector<10x32xf32> to vector<1x32xf32>
    %17 = vector.extract_strided_slice %2 {offsets = [0, 0], sizes = [1, 96], strides = [1, 1]} : vector<7x128xf32> to vector<1x96xf32>
    %18 = vector.extract_strided_slice %2 {offsets = [2, 0], sizes = [1, 128], strides = [1, 1]} : vector<7x128xf32> to vector<1x128xf32>
    %19 = vector.extract_strided_slice %2 {offsets = [4, 0], sizes = [1, 32], strides = [1, 1]} : vector<7x128xf32> to vector<1x32xf32>
    %cst_8 = arith.constant dense<0.000000e+00> : vector<16xf32>
    %20 = vector.multi_reduction <add>, %0, %cst_8 [1] : vector<16x32xf32> to vector<16xf32>
    %21 = vector.shape_cast %20 : vector<16xf32> to vector<16x1xf32>
    %cst_9 = arith.constant 3.200000e+01 : f32
    %22 = vector.broadcast %cst_9 : f32 to vector<16x1xf32>
    %23 = arith.divf %21, %22 : vector<16x1xf32>
    %24 = vector.broadcast %23 : vector<16x1xf32> to vector<16x32xf32>
    %25 = arith.subf %0, %24 : vector<16x32xf32>
    %26 = arith.mulf %25, %25 : vector<16x32xf32>
    %cst_10 = arith.constant dense<0.000000e+00> : vector<16xf32>
    %27 = vector.multi_reduction <add>, %26, %cst_10 [1] : vector<16x32xf32> to vector<16xf32>
    %28 = vector.shape_cast %27 : vector<16xf32> to vector<16x1xf32>
    %cst_11 = arith.constant 3.200000e+01 : f32
    %29 = vector.broadcast %cst_11 : f32 to vector<16x1xf32>
    %30 = arith.divf %28, %29 : vector<16x1xf32>
    %31 = vector.broadcast %23 : vector<16x1xf32> to vector<16x32xf32>
    %32 = arith.subf %0, %31 : vector<16x32xf32>
    %cst_12 = arith.constant 9.99999974E-6 : f32
    %33 = vector.broadcast %cst_12 : f32 to vector<16x1xf32>
    %34 = arith.addf %30, %33 : vector<16x1xf32>
    %35 = math.sqrt %34 : vector<16x1xf32>
    %36 = vector.broadcast %35 : vector<16x1xf32> to vector<16x32xf32>
    %37 = arith.divf %32, %36 : vector<16x32xf32>
    %38 = vector.broadcast %13 : vector<1x32xf32> to vector<16x32xf32>
    %39 = arith.mulf %37, %38 : vector<16x32xf32>
    %40 = vector.broadcast %14 : vector<1x32xf32> to vector<16x32xf32>
    %41 = arith.addf %39, %40 : vector<16x32xf32>
    %c0_13 = arith.constant 0 : index
    %c0_14 = arith.constant 0 : index
    %c0_15 = arith.constant 0 : index
    %42 = vector.load %arg3[%c0_13, %c0_14, %c0_15] : memref<2x32x96xf32, #tpu.memory_space<vmem>>, vector<1x32x96xf32>
    %43 = vector.shape_cast %42 : vector<1x32x96xf32> to vector<32x96xf32>
    %cst_16 = arith.constant dense<0.000000e+00> : vector<16x96xf32>
    %44 = tpu.matmul %41, %43, %cst_16 {dimension_numbers = #tpu.dot_dimension_numbers<[1], [0], [0], [1], [0, 0, 1, 1], [], []>} : vector<16x32xf32>, vector<32x96xf32>, vector<16x96xf32> -> vector<16x96xf32>
    %45 = vector.broadcast %17 : vector<1x96xf32> to vector<16x96xf32>
    %46 = arith.addf %44, %45 : vector<16x96xf32>
    %47 = vector.extract_strided_slice %46 {offsets = [0, 0], sizes = [16, 32], strides = [1, 1]} : vector<16x96xf32> to vector<16x32xf32>
    %48 = vector.shape_cast %47 : vector<16x32xf32> to vector<2x8x32xf32>
    %49 = vector.extract_strided_slice %46 {offsets = [0, 32], sizes = [16, 32], strides = [1, 1]} : vector<16x96xf32> to vector<16x32xf32>
    %50 = vector.shape_cast %49 : vector<16x32xf32> to vector<2x8x32xf32>
    %51 = vector.extract_strided_slice %46 {offsets = [0, 64], sizes = [16, 32], strides = [1, 1]} : vector<16x96xf32> to vector<16x32xf32>
    %52 = vector.shape_cast %51 : vector<16x32xf32> to vector<2x8x32xf32>
    %53 = vector.extract_strided_slice %48 {offsets = [0, 0, 0], sizes = [2, 8, 8], strides = [1, 1, 1]} : vector<2x8x32xf32> to vector<2x8x8xf32>
    %54 = vector.extract_strided_slice %50 {offsets = [0, 0, 0], sizes = [2, 8, 8], strides = [1, 1, 1]} : vector<2x8x32xf32> to vector<2x8x8xf32>
    "tpu.trace_start"() <{level = 10 : i32, message = "bqd,bkd->bqk"}> : () -> ()
    %cst_17 = arith.constant dense<0.000000e+00> : vector<2x8x8xf32>
    %55 = tpu.matmul %53, %54, %cst_17 {dimension_numbers = #tpu.dot_dimension_numbers<[2], [2], [1], [1], [0, 0, 0, 1, 1, 1], [0], [0]>} : vector<2x8x8xf32>, vector<2x8x8xf32>, vector<2x8x8xf32> -> vector<2x8x8xf32>
    "tpu.trace_stop"() : () -> ()
    %56 = vector.extract_strided_slice %48 {offsets = [0, 0, 8], sizes = [2, 8, 8], strides = [1, 1, 1]} : vector<2x8x32xf32> to vector<2x8x8xf32>
    %57 = vector.extract_strided_slice %50 {offsets = [0, 0, 8], sizes = [2, 8, 8], strides = [1, 1, 1]} : vector<2x8x32xf32> to vector<2x8x8xf32>
    "tpu.trace_start"() <{level = 10 : i32, message = "bqd,bkd->bqk"}> : () -> ()
    %cst_18 = arith.constant dense<0.000000e+00> : vector<2x8x8xf32>
    %58 = tpu.matmul %56, %57, %cst_18 {dimension_numbers = #tpu.dot_dimension_numbers<[2], [2], [1], [1], [0, 0, 0, 1, 1, 1], [0], [0]>} : vector<2x8x8xf32>, vector<2x8x8xf32>, vector<2x8x8xf32> -> vector<2x8x8xf32>
    "tpu.trace_stop"() : () -> ()
    %59 = vector.extract_strided_slice %48 {offsets = [0, 0, 16], sizes = [2, 8, 8], strides = [1, 1, 1]} : vector<2x8x32xf32> to vector<2x8x8xf32>
    %60 = vector.extract_strided_slice %50 {offsets = [0, 0, 16], sizes = [2, 8, 8], strides = [1, 1, 1]} : vector<2x8x32xf32> to vector<2x8x8xf32>
    "tpu.trace_start"() <{level = 10 : i32, message = "bqd,bkd->bqk"}> : () -> ()
    %cst_19 = arith.constant dense<0.000000e+00> : vector<2x8x8xf32>
    %61 = tpu.matmul %59, %60, %cst_19 {dimension_numbers = #tpu.dot_dimension_numbers<[2], [2], [1], [1], [0, 0, 0, 1, 1, 1], [0], [0]>} : vector<2x8x8xf32>, vector<2x8x8xf32>, vector<2x8x8xf32> -> vector<2x8x8xf32>
    "tpu.trace_stop"() : () -> ()
    %62 = vector.extract_strided_slice %48 {offsets = [0, 0, 24], sizes = [2, 8, 8], strides = [1, 1, 1]} : vector<2x8x32xf32> to vector<2x8x8xf32>
    %63 = vector.extract_strided_slice %50 {offsets = [0, 0, 24], sizes = [2, 8, 8], strides = [1, 1, 1]} : vector<2x8x32xf32> to vector<2x8x8xf32>
    "tpu.trace_start"() <{level = 10 : i32, message = "bqd,bkd->bqk"}> : () -> ()
    %cst_20 = arith.constant dense<0.000000e+00> : vector<2x8x8xf32>
    %64 = tpu.matmul %62, %63, %cst_20 {dimension_numbers = #tpu.dot_dimension_numbers<[2], [2], [1], [1], [0, 0, 0, 1, 1, 1], [0], [0]>} : vector<2x8x8xf32>, vector<2x8x8xf32>, vector<2x8x8xf32> -> vector<2x8x8xf32>
    "tpu.trace_stop"() : () -> ()
    %65 = vector.shape_cast %55 : vector<2x8x8xf32> to vector<1x2x8x8xf32>
    %66 = vector.shape_cast %58 : vector<2x8x8xf32> to vector<1x2x8x8xf32>
    %67 = vector.shape_cast %61 : vector<2x8x8xf32> to vector<1x2x8x8xf32>
    %68 = vector.shape_cast %64 : vector<2x8x8xf32> to vector<1x2x8x8xf32>
    %69 = tpu.concatenate %65, %66, %67, %68 in 0 : vector<1x2x8x8xf32>, vector<1x2x8x8xf32>, vector<1x2x8x8xf32>, vector<1x2x8x8xf32> -> vector<4x2x8x8xf32>
    %cst_21 = arith.constant 0.176776692 : f32
    %70 = vector.broadcast %cst_21 : f32 to vector<4x2x8x8xf32>
    %71 = arith.mulf %69, %70 : vector<4x2x8x8xf32>
    %72 = arith.addf %71, %8 : vector<4x2x8x8xf32>
    %cst_22 = arith.constant dense<0xFF800000> : vector<4x2x8xf32>
    %73 = vector.multi_reduction <maximumf>, %72, %cst_22 [2] : vector<4x2x8x8xf32> to vector<4x2x8xf32>
    %74 = vector.shape_cast %73 : vector<4x2x8xf32> to vector<4x2x1x8xf32>
    %75 = vector.broadcast %74 : vector<4x2x1x8xf32> to vector<4x2x8x8xf32>
    %76 = arith.subf %72, %75 : vector<4x2x8x8xf32>
    %77 = math.exp %76 : vector<4x2x8x8xf32>
    %cst_23 = arith.constant dense<0.000000e+00> : vector<4x2x8xf32>
    %78 = vector.multi_reduction <add>, %77, %cst_23 [2] : vector<4x2x8x8xf32> to vector<4x2x8xf32>
    %79 = vector.shape_cast %78 : vector<4x2x8xf32> to vector<4x2x1x8xf32>
    %80 = tpu.reciprocal %79 {approx = true} : vector<4x2x1x8xf32> -> vector<4x2x1x8xf32>
    %81 = vector.broadcast %80 : vector<4x2x1x8xf32> to vector<4x2x8x8xf32>
    %82 = arith.mulf %77, %81 : vector<4x2x8x8xf32>
    %83 = arith.mulf %82, %12 : vector<4x2x8x8xf32>
    %84 = vector.extract_strided_slice %83 {offsets = [0, 0, 0, 0], sizes = [1, 2, 8, 8], strides = [1, 1, 1, 1]} : vector<4x2x8x8xf32> to vector<1x2x8x8xf32>
    %85 = vector.shape_cast %84 : vector<1x2x8x8xf32> to vector<2x8x8xf32>
    %86 = vector.extract_strided_slice %52 {offsets = [0, 0, 0], sizes = [2, 8, 8], strides = [1, 1, 1]} : vector<2x8x32xf32> to vector<2x8x8xf32>
    "tpu.trace_start"() <{level = 10 : i32, message = "bqk,bkd->bqd"}> : () -> ()
    %cst_24 = arith.constant dense<0.000000e+00> : vector<2x8x8xf32>
    %87 = tpu.matmul %85, %86, %cst_24 {dimension_numbers = #tpu.dot_dimension_numbers<[2], [1], [1], [2], [0, 0, 0, 1, 1, 2], [0], [0]>} : vector<2x8x8xf32>, vector<2x8x8xf32>, vector<2x8x8xf32> -> vector<2x8x8xf32>
    "tpu.trace_stop"() : () -> ()
    %88 = vector.extract_strided_slice %83 {offsets = [1, 0, 0, 0], sizes = [1, 2, 8, 8], strides = [1, 1, 1, 1]} : vector<4x2x8x8xf32> to vector<1x2x8x8xf32>
    %89 = vector.shape_cast %88 : vector<1x2x8x8xf32> to vector<2x8x8xf32>
    %90 = vector.extract_strided_slice %52 {offsets = [0, 0, 8], sizes = [2, 8, 8], strides = [1, 1, 1]} : vector<2x8x32xf32> to vector<2x8x8xf32>
    "tpu.trace_start"() <{level = 10 : i32, message = "bqk,bkd->bqd"}> : () -> ()
    %cst_25 = arith.constant dense<0.000000e+00> : vector<2x8x8xf32>
    %91 = tpu.matmul %89, %90, %cst_25 {dimension_numbers = #tpu.dot_dimension_numbers<[2], [1], [1], [2], [0, 0, 0, 1, 1, 2], [0], [0]>} : vector<2x8x8xf32>, vector<2x8x8xf32>, vector<2x8x8xf32> -> vector<2x8x8xf32>
    "tpu.trace_stop"() : () -> ()
    %92 = vector.extract_strided_slice %83 {offsets = [2, 0, 0, 0], sizes = [1, 2, 8, 8], strides = [1, 1, 1, 1]} : vector<4x2x8x8xf32> to vector<1x2x8x8xf32>
    %93 = vector.shape_cast %92 : vector<1x2x8x8xf32> to vector<2x8x8xf32>
    %94 = vector.extract_strided_slice %52 {offsets = [0, 0, 16], sizes = [2, 8, 8], strides = [1, 1, 1]} : vector<2x8x32xf32> to vector<2x8x8xf32>
    "tpu.trace_start"() <{level = 10 : i32, message = "bqk,bkd->bqd"}> : () -> ()
    %cst_26 = arith.constant dense<0.000000e+00> : vector<2x8x8xf32>
    %95 = tpu.matmul %93, %94, %cst_26 {dimension_numbers = #tpu.dot_dimension_numbers<[2], [1], [1], [2], [0, 0, 0, 1, 1, 2], [0], [0]>} : vector<2x8x8xf32>, vector<2x8x8xf32>, vector<2x8x8xf32> -> vector<2x8x8xf32>
    "tpu.trace_stop"() : () -> ()
    %96 = vector.extract_strided_slice %83 {offsets = [3, 0, 0, 0], sizes = [1, 2, 8, 8], strides = [1, 1, 1, 1]} : vector<4x2x8x8xf32> to vector<1x2x8x8xf32>
    %97 = vector.shape_cast %96 : vector<1x2x8x8xf32> to vector<2x8x8xf32>
    %98 = vector.extract_strided_slice %52 {offsets = [0, 0, 24], sizes = [2, 8, 8], strides = [1, 1, 1]} : vector<2x8x32xf32> to vector<2x8x8xf32>
    "tpu.trace_start"() <{level = 10 : i32, message = "bqk,bkd->bqd"}> : () -> ()
    %cst_27 = arith.constant dense<0.000000e+00> : vector<2x8x8xf32>
    %99 = tpu.matmul %97, %98, %cst_27 {dimension_numbers = #tpu.dot_dimension_numbers<[2], [1], [1], [2], [0, 0, 0, 1, 1, 2], [0], [0]>} : vector<2x8x8xf32>, vector<2x8x8xf32>, vector<2x8x8xf32> -> vector<2x8x8xf32>
    "tpu.trace_stop"() : () -> ()
    %100 = tpu.concatenate %87, %91, %95, %99 in 2 : vector<2x8x8xf32>, vector<2x8x8xf32>, vector<2x8x8xf32>, vector<2x8x8xf32> -> vector<2x8x32xf32>
    %101 = vector.shape_cast %100 : vector<2x8x32xf32> to vector<16x32xf32>
    %cst_28 = arith.constant dense<0.000000e+00> : vector<16xf32>
    %102 = vector.multi_reduction <add>, %101, %cst_28 [1] : vector<16x32xf32> to vector<16xf32>
    %103 = vector.shape_cast %102 : vector<16xf32> to vector<16x1xf32>
    %cst_29 = arith.constant 3.200000e+01 : f32
    %104 = vector.broadcast %cst_29 : f32 to vector<16x1xf32>
    %105 = arith.divf %103, %104 : vector<16x1xf32>
    %106 = vector.broadcast %105 : vector<16x1xf32> to vector<16x32xf32>
    %107 = arith.subf %101, %106 : vector<16x32xf32>
    %108 = arith.mulf %107, %107 : vector<16x32xf32>
    %cst_30 = arith.constant dense<0.000000e+00> : vector<16xf32>
    %109 = vector.multi_reduction <add>, %108, %cst_30 [1] : vector<16x32xf32> to vector<16xf32>
    %110 = vector.shape_cast %109 : vector<16xf32> to vector<16x1xf32>
    %cst_31 = arith.constant 3.200000e+01 : f32
    %111 = vector.broadcast %cst_31 : f32 to vector<16x1xf32>
    %112 = arith.divf %110, %111 : vector<16x1xf32>
    %113 = vector.broadcast %105 : vector<16x1xf32> to vector<16x32xf32>
    %114 = arith.subf %101, %113 : vector<16x32xf32>
    %cst_32 = arith.constant 9.99999974E-6 : f32
    %115 = vector.broadcast %cst_32 : f32 to vector<16x1xf32>
    %116 = arith.addf %112, %115 : vector<16x1xf32>
    %117 = math.sqrt %116 : vector<16x1xf32>
    %118 = vector.broadcast %117 : vector<16x1xf32> to vector<16x32xf32>
    %119 = arith.divf %114, %118 : vector<16x32xf32>
    %120 = vector.broadcast %15 : vector<1x32xf32> to vector<16x32xf32>
    %121 = arith.mulf %119, %120 : vector<16x32xf32>
    %122 = vector.broadcast %16 : vector<1x32xf32> to vector<16x32xf32>
    %123 = arith.addf %121, %122 : vector<16x32xf32>
    %c0_33 = arith.constant 0 : index
    %c0_34 = arith.constant 0 : index
    %c0_35 = arith.constant 0 : index
    %124 = vector.load %arg4[%c0_33, %c0_34, %c0_35] : memref<2x32x128xf32, #tpu.memory_space<vmem>>, vector<1x32x128xf32>
    %125 = vector.shape_cast %124 : vector<1x32x128xf32> to vector<32x128xf32>
    %cst_36 = arith.constant dense<0.000000e+00> : vector<16x128xf32>
    %126 = tpu.matmul %123, %125, %cst_36 {dimension_numbers = #tpu.dot_dimension_numbers<[1], [0], [0], [1], [0, 0, 1, 1], [], []>} : vector<16x32xf32>, vector<32x128xf32>, vector<16x128xf32> -> vector<16x128xf32>
    %127 = vector.broadcast %18 : vector<1x128xf32> to vector<16x128xf32>
    %128 = arith.addf %126, %127 : vector<16x128xf32>
    %cst_37 = arith.constant 5.000000e-01 : f32
    %129 = vector.broadcast %cst_37 : f32 to vector<16x128xf32>
    %130 = arith.mulf %129, %128 : vector<16x128xf32>
    %cst_38 = arith.constant 0.707106769 : f32
    %131 = vector.broadcast %cst_38 : f32 to vector<16x128xf32>
    %132 = arith.mulf %128, %131 : vector<16x128xf32>
    %133 = math.erf %132 : vector<16x128xf32>
    %cst_39 = arith.constant 1.000000e+00 : f32
    %134 = vector.broadcast %cst_39 : f32 to vector<16x128xf32>
    %135 = arith.addf %134, %133 : vector<16x128xf32>
    %136 = arith.mulf %130, %135 : vector<16x128xf32>
    %c0_40 = arith.constant 0 : index
    %c0_41 = arith.constant 0 : index
    %c0_42 = arith.constant 0 : index
    %137 = vector.load %arg5[%c0_40, %c0_41, %c0_42] : memref<2x128x32xf32, #tpu.memory_space<vmem>>, vector<1x128x32xf32>
    %138 = vector.shape_cast %137 : vector<1x128x32xf32> to vector<128x32xf32>
    %cst_43 = arith.constant dense<0.000000e+00> : vector<16x32xf32>
    %139 = tpu.matmul %136, %138, %cst_43 {dimension_numbers = #tpu.dot_dimension_numbers<[1], [0], [0], [1], [0, 0, 1, 1], [], []>} : vector<16x128xf32>, vector<128x32xf32>, vector<16x32xf32> -> vector<16x32xf32>
    %140 = vector.broadcast %19 : vector<1x32xf32> to vector<16x32xf32>
    %141 = arith.addf %139, %140 : vector<16x32xf32>
    %142 = vector.extract_strided_slice %1 {offsets = [4, 0], sizes = [1, 32], strides = [1, 1]} : vector<10x32xf32> to vector<1x32xf32>
    %143 = vector.extract_strided_slice %1 {offsets = [5, 0], sizes = [1, 32], strides = [1, 1]} : vector<10x32xf32> to vector<1x32xf32>
    %144 = vector.extract_strided_slice %1 {offsets = [6, 0], sizes = [1, 32], strides = [1, 1]} : vector<10x32xf32> to vector<1x32xf32>
    %145 = vector.extract_strided_slice %1 {offsets = [7, 0], sizes = [1, 32], strides = [1, 1]} : vector<10x32xf32> to vector<1x32xf32>
    %146 = vector.extract_strided_slice %2 {offsets = [1, 0], sizes = [1, 96], strides = [1, 1]} : vector<7x128xf32> to vector<1x96xf32>
    %147 = vector.extract_strided_slice %2 {offsets = [3, 0], sizes = [1, 128], strides = [1, 1]} : vector<7x128xf32> to vector<1x128xf32>
    %148 = vector.extract_strided_slice %2 {offsets = [5, 0], sizes = [1, 32], strides = [1, 1]} : vector<7x128xf32> to vector<1x32xf32>
    %cst_44 = arith.constant dense<0.000000e+00> : vector<16xf32>
    %149 = vector.multi_reduction <add>, %141, %cst_44 [1] : vector<16x32xf32> to vector<16xf32>
    %150 = vector.shape_cast %149 : vector<16xf32> to vector<16x1xf32>
    %cst_45 = arith.constant 3.200000e+01 : f32
    %151 = vector.broadcast %cst_45 : f32 to vector<16x1xf32>
    %152 = arith.divf %150, %151 : vector<16x1xf32>
    %153 = vector.broadcast %152 : vector<16x1xf32> to vector<16x32xf32>
    %154 = arith.subf %141, %153 : vector<16x32xf32>
    %155 = arith.mulf %154, %154 : vector<16x32xf32>
    %cst_46 = arith.constant dense<0.000000e+00> : vector<16xf32>
    %156 = vector.multi_reduction <add>, %155, %cst_46 [1] : vector<16x32xf32> to vector<16xf32>
    %157 = vector.shape_cast %156 : vector<16xf32> to vector<16x1xf32>
    %cst_47 = arith.constant 3.200000e+01 : f32
    %158 = vector.broadcast %cst_47 : f32 to vector<16x1xf32>
    %159 = arith.divf %157, %158 : vector<16x1xf32>
    %160 = vector.broadcast %152 : vector<16x1xf32> to vector<16x32xf32>
    %161 = arith.subf %141, %160 : vector<16x32xf32>
    %cst_48 = arith.constant 9.99999974E-6 : f32
    %162 = vector.broadcast %cst_48 : f32 to vector<16x1xf32>
    %163 = arith.addf %159, %162 : vector<16x1xf32>
    %164 = math.sqrt %163 : vector<16x1xf32>
    %165 = vector.broadcast %164 : vector<16x1xf32> to vector<16x32xf32>
    %166 = arith.divf %161, %165 : vector<16x32xf32>
    %167 = vector.broadcast %142 : vector<1x32xf32> to vector<16x32xf32>
    %168 = arith.mulf %166, %167 : vector<16x32xf32>
    %169 = vector.broadcast %143 : vector<1x32xf32> to vector<16x32xf32>
    %170 = arith.addf %168, %169 : vector<16x32xf32>
    %c1 = arith.constant 1 : index
    %c0_49 = arith.constant 0 : index
    %c0_50 = arith.constant 0 : index
    %171 = vector.load %arg3[%c1, %c0_49, %c0_50] : memref<2x32x96xf32, #tpu.memory_space<vmem>>, vector<1x32x96xf32>
    %172 = vector.shape_cast %171 : vector<1x32x96xf32> to vector<32x96xf32>
    %cst_51 = arith.constant dense<0.000000e+00> : vector<16x96xf32>
    %173 = tpu.matmul %170, %172, %cst_51 {dimension_numbers = #tpu.dot_dimension_numbers<[1], [0], [0], [1], [0, 0, 1, 1], [], []>} : vector<16x32xf32>, vector<32x96xf32>, vector<16x96xf32> -> vector<16x96xf32>
    %174 = vector.broadcast %146 : vector<1x96xf32> to vector<16x96xf32>
    %175 = arith.addf %173, %174 : vector<16x96xf32>
    %176 = vector.extract_strided_slice %175 {offsets = [0, 0], sizes = [16, 32], strides = [1, 1]} : vector<16x96xf32> to vector<16x32xf32>
    %177 = vector.shape_cast %176 : vector<16x32xf32> to vector<2x8x32xf32>
    %178 = vector.extract_strided_slice %175 {offsets = [0, 32], sizes = [16, 32], strides = [1, 1]} : vector<16x96xf32> to vector<16x32xf32>
    %179 = vector.shape_cast %178 : vector<16x32xf32> to vector<2x8x32xf32>
    %180 = vector.extract_strided_slice %175 {offsets = [0, 64], sizes = [16, 32], strides = [1, 1]} : vector<16x96xf32> to vector<16x32xf32>
    %181 = vector.shape_cast %180 : vector<16x32xf32> to vector<2x8x32xf32>
    %182 = vector.extract_strided_slice %177 {offsets = [0, 0, 0], sizes = [2, 8, 8], strides = [1, 1, 1]} : vector<2x8x32xf32> to vector<2x8x8xf32>
    %183 = vector.extract_strided_slice %179 {offsets = [0, 0, 0], sizes = [2, 8, 8], strides = [1, 1, 1]} : vector<2x8x32xf32> to vector<2x8x8xf32>
    "tpu.trace_start"() <{level = 10 : i32, message = "bqd,bkd->bqk"}> : () -> ()
    %cst_52 = arith.constant dense<0.000000e+00> : vector<2x8x8xf32>
    %184 = tpu.matmul %182, %183, %cst_52 {dimension_numbers = #tpu.dot_dimension_numbers<[2], [2], [1], [1], [0, 0, 0, 1, 1, 1], [0], [0]>} : vector<2x8x8xf32>, vector<2x8x8xf32>, vector<2x8x8xf32> -> vector<2x8x8xf32>
    "tpu.trace_stop"() : () -> ()
    %185 = vector.extract_strided_slice %177 {offsets = [0, 0, 8], sizes = [2, 8, 8], strides = [1, 1, 1]} : vector<2x8x32xf32> to vector<2x8x8xf32>
    %186 = vector.extract_strided_slice %179 {offsets = [0, 0, 8], sizes = [2, 8, 8], strides = [1, 1, 1]} : vector<2x8x32xf32> to vector<2x8x8xf32>
    "tpu.trace_start"() <{level = 10 : i32, message = "bqd,bkd->bqk"}> : () -> ()
    %cst_53 = arith.constant dense<0.000000e+00> : vector<2x8x8xf32>
    %187 = tpu.matmul %185, %186, %cst_53 {dimension_numbers = #tpu.dot_dimension_numbers<[2], [2], [1], [1], [0, 0, 0, 1, 1, 1], [0], [0]>} : vector<2x8x8xf32>, vector<2x8x8xf32>, vector<2x8x8xf32> -> vector<2x8x8xf32>
    "tpu.trace_stop"() : () -> ()
    %188 = vector.extract_strided_slice %177 {offsets = [0, 0, 16], sizes = [2, 8, 8], strides = [1, 1, 1]} : vector<2x8x32xf32> to vector<2x8x8xf32>
    %189 = vector.extract_strided_slice %179 {offsets = [0, 0, 16], sizes = [2, 8, 8], strides = [1, 1, 1]} : vector<2x8x32xf32> to vector<2x8x8xf32>
    "tpu.trace_start"() <{level = 10 : i32, message = "bqd,bkd->bqk"}> : () -> ()
    %cst_54 = arith.constant dense<0.000000e+00> : vector<2x8x8xf32>
    %190 = tpu.matmul %188, %189, %cst_54 {dimension_numbers = #tpu.dot_dimension_numbers<[2], [2], [1], [1], [0, 0, 0, 1, 1, 1], [0], [0]>} : vector<2x8x8xf32>, vector<2x8x8xf32>, vector<2x8x8xf32> -> vector<2x8x8xf32>
    "tpu.trace_stop"() : () -> ()
    %191 = vector.extract_strided_slice %177 {offsets = [0, 0, 24], sizes = [2, 8, 8], strides = [1, 1, 1]} : vector<2x8x32xf32> to vector<2x8x8xf32>
    %192 = vector.extract_strided_slice %179 {offsets = [0, 0, 24], sizes = [2, 8, 8], strides = [1, 1, 1]} : vector<2x8x32xf32> to vector<2x8x8xf32>
    "tpu.trace_start"() <{level = 10 : i32, message = "bqd,bkd->bqk"}> : () -> ()
    %cst_55 = arith.constant dense<0.000000e+00> : vector<2x8x8xf32>
    %193 = tpu.matmul %191, %192, %cst_55 {dimension_numbers = #tpu.dot_dimension_numbers<[2], [2], [1], [1], [0, 0, 0, 1, 1, 1], [0], [0]>} : vector<2x8x8xf32>, vector<2x8x8xf32>, vector<2x8x8xf32> -> vector<2x8x8xf32>
    "tpu.trace_stop"() : () -> ()
    %194 = vector.shape_cast %184 : vector<2x8x8xf32> to vector<1x2x8x8xf32>
    %195 = vector.shape_cast %187 : vector<2x8x8xf32> to vector<1x2x8x8xf32>
    %196 = vector.shape_cast %190 : vector<2x8x8xf32> to vector<1x2x8x8xf32>
    %197 = vector.shape_cast %193 : vector<2x8x8xf32> to vector<1x2x8x8xf32>
    %198 = tpu.concatenate %194, %195, %196, %197 in 0 : vector<1x2x8x8xf32>, vector<1x2x8x8xf32>, vector<1x2x8x8xf32>, vector<1x2x8x8xf32> -> vector<4x2x8x8xf32>
    %cst_56 = arith.constant 0.176776692 : f32
    %199 = vector.broadcast %cst_56 : f32 to vector<4x2x8x8xf32>
    %200 = arith.mulf %198, %199 : vector<4x2x8x8xf32>
    %201 = arith.addf %200, %8 : vector<4x2x8x8xf32>
    %cst_57 = arith.constant dense<0xFF800000> : vector<4x2x8xf32>
    %202 = vector.multi_reduction <maximumf>, %201, %cst_57 [2] : vector<4x2x8x8xf32> to vector<4x2x8xf32>
    %203 = vector.shape_cast %202 : vector<4x2x8xf32> to vector<4x2x1x8xf32>
    %204 = vector.broadcast %203 : vector<4x2x1x8xf32> to vector<4x2x8x8xf32>
    %205 = arith.subf %201, %204 : vector<4x2x8x8xf32>
    %206 = math.exp %205 : vector<4x2x8x8xf32>
    %cst_58 = arith.constant dense<0.000000e+00> : vector<4x2x8xf32>
    %207 = vector.multi_reduction <add>, %206, %cst_58 [2] : vector<4x2x8x8xf32> to vector<4x2x8xf32>
    %208 = vector.shape_cast %207 : vector<4x2x8xf32> to vector<4x2x1x8xf32>
    %209 = tpu.reciprocal %208 {approx = true} : vector<4x2x1x8xf32> -> vector<4x2x1x8xf32>
    %210 = vector.broadcast %209 : vector<4x2x1x8xf32> to vector<4x2x8x8xf32>
    %211 = arith.mulf %206, %210 : vector<4x2x8x8xf32>
    %212 = arith.mulf %211, %12 : vector<4x2x8x8xf32>
    %213 = vector.extract_strided_slice %212 {offsets = [0, 0, 0, 0], sizes = [1, 2, 8, 8], strides = [1, 1, 1, 1]} : vector<4x2x8x8xf32> to vector<1x2x8x8xf32>
    %214 = vector.shape_cast %213 : vector<1x2x8x8xf32> to vector<2x8x8xf32>
    %215 = vector.extract_strided_slice %181 {offsets = [0, 0, 0], sizes = [2, 8, 8], strides = [1, 1, 1]} : vector<2x8x32xf32> to vector<2x8x8xf32>
    "tpu.trace_start"() <{level = 10 : i32, message = "bqk,bkd->bqd"}> : () -> ()
    %cst_59 = arith.constant dense<0.000000e+00> : vector<2x8x8xf32>
    %216 = tpu.matmul %214, %215, %cst_59 {dimension_numbers = #tpu.dot_dimension_numbers<[2], [1], [1], [2], [0, 0, 0, 1, 1, 2], [0], [0]>} : vector<2x8x8xf32>, vector<2x8x8xf32>, vector<2x8x8xf32> -> vector<2x8x8xf32>
    "tpu.trace_stop"() : () -> ()
    %217 = vector.extract_strided_slice %212 {offsets = [1, 0, 0, 0], sizes = [1, 2, 8, 8], strides = [1, 1, 1, 1]} : vector<4x2x8x8xf32> to vector<1x2x8x8xf32>
    %218 = vector.shape_cast %217 : vector<1x2x8x8xf32> to vector<2x8x8xf32>
    %219 = vector.extract_strided_slice %181 {offsets = [0, 0, 8], sizes = [2, 8, 8], strides = [1, 1, 1]} : vector<2x8x32xf32> to vector<2x8x8xf32>
    "tpu.trace_start"() <{level = 10 : i32, message = "bqk,bkd->bqd"}> : () -> ()
    %cst_60 = arith.constant dense<0.000000e+00> : vector<2x8x8xf32>
    %220 = tpu.matmul %218, %219, %cst_60 {dimension_numbers = #tpu.dot_dimension_numbers<[2], [1], [1], [2], [0, 0, 0, 1, 1, 2], [0], [0]>} : vector<2x8x8xf32>, vector<2x8x8xf32>, vector<2x8x8xf32> -> vector<2x8x8xf32>
    "tpu.trace_stop"() : () -> ()
    %221 = vector.extract_strided_slice %212 {offsets = [2, 0, 0, 0], sizes = [1, 2, 8, 8], strides = [1, 1, 1, 1]} : vector<4x2x8x8xf32> to vector<1x2x8x8xf32>
    %222 = vector.shape_cast %221 : vector<1x2x8x8xf32> to vector<2x8x8xf32>
    %223 = vector.extract_strided_slice %181 {offsets = [0, 0, 16], sizes = [2, 8, 8], strides = [1, 1, 1]} : vector<2x8x32xf32> to vector<2x8x8xf32>
    "tpu.trace_start"() <{level = 10 : i32, message = "bqk,bkd->bqd"}> : () -> ()
    %cst_61 = arith.constant dense<0.000000e+00> : vector<2x8x8xf32>
    %224 = tpu.matmul %222, %223, %cst_61 {dimension_numbers = #tpu.dot_dimension_numbers<[2], [1], [1], [2], [0, 0, 0, 1, 1, 2], [0], [0]>} : vector<2x8x8xf32>, vector<2x8x8xf32>, vector<2x8x8xf32> -> vector<2x8x8xf32>
    "tpu.trace_stop"() : () -> ()
    %225 = vector.extract_strided_slice %212 {offsets = [3, 0, 0, 0], sizes = [1, 2, 8, 8], strides = [1, 1, 1, 1]} : vector<4x2x8x8xf32> to vector<1x2x8x8xf32>
    %226 = vector.shape_cast %225 : vector<1x2x8x8xf32> to vector<2x8x8xf32>
    %227 = vector.extract_strided_slice %181 {offsets = [0, 0, 24], sizes = [2, 8, 8], strides = [1, 1, 1]} : vector<2x8x32xf32> to vector<2x8x8xf32>
    "tpu.trace_start"() <{level = 10 : i32, message = "bqk,bkd->bqd"}> : () -> ()
    %cst_62 = arith.constant dense<0.000000e+00> : vector<2x8x8xf32>
    %228 = tpu.matmul %226, %227, %cst_62 {dimension_numbers = #tpu.dot_dimension_numbers<[2], [1], [1], [2], [0, 0, 0, 1, 1, 2], [0], [0]>} : vector<2x8x8xf32>, vector<2x8x8xf32>, vector<2x8x8xf32> -> vector<2x8x8xf32>
    "tpu.trace_stop"() : () -> ()
    %229 = tpu.concatenate %216, %220, %224, %228 in 2 : vector<2x8x8xf32>, vector<2x8x8xf32>, vector<2x8x8xf32>, vector<2x8x8xf32> -> vector<2x8x32xf32>
    %230 = vector.shape_cast %229 : vector<2x8x32xf32> to vector<16x32xf32>
    %cst_63 = arith.constant dense<0.000000e+00> : vector<16xf32>
    %231 = vector.multi_reduction <add>, %230, %cst_63 [1] : vector<16x32xf32> to vector<16xf32>
    %232 = vector.shape_cast %231 : vector<16xf32> to vector<16x1xf32>
    %cst_64 = arith.constant 3.200000e+01 : f32
    %233 = vector.broadcast %cst_64 : f32 to vector<16x1xf32>
    %234 = arith.divf %232, %233 : vector<16x1xf32>
    %235 = vector.broadcast %234 : vector<16x1xf32> to vector<16x32xf32>
    %236 = arith.subf %230, %235 : vector<16x32xf32>
    %237 = arith.mulf %236, %236 : vector<16x32xf32>
    %cst_65 = arith.constant dense<0.000000e+00> : vector<16xf32>
    %238 = vector.multi_reduction <add>, %237, %cst_65 [1] : vector<16x32xf32> to vector<16xf32>
    %239 = vector.shape_cast %238 : vector<16xf32> to vector<16x1xf32>
    %cst_66 = arith.constant 3.200000e+01 : f32
    %240 = vector.broadcast %cst_66 : f32 to vector<16x1xf32>
    %241 = arith.divf %239, %240 : vector<16x1xf32>
    %242 = vector.broadcast %234 : vector<16x1xf32> to vector<16x32xf32>
    %243 = arith.subf %230, %242 : vector<16x32xf32>
    %cst_67 = arith.constant 9.99999974E-6 : f32
    %244 = vector.broadcast %cst_67 : f32 to vector<16x1xf32>
    %245 = arith.addf %241, %244 : vector<16x1xf32>
    %246 = math.sqrt %245 : vector<16x1xf32>
    %247 = vector.broadcast %246 : vector<16x1xf32> to vector<16x32xf32>
    %248 = arith.divf %243, %247 : vector<16x32xf32>
    %249 = vector.broadcast %144 : vector<1x32xf32> to vector<16x32xf32>
    %250 = arith.mulf %248, %249 : vector<16x32xf32>
    %251 = vector.broadcast %145 : vector<1x32xf32> to vector<16x32xf32>
    %252 = arith.addf %250, %251 : vector<16x32xf32>
    %c1_68 = arith.constant 1 : index
    %c0_69 = arith.constant 0 : index
    %c0_70 = arith.constant 0 : index
    %253 = vector.load %arg4[%c1_68, %c0_69, %c0_70] : memref<2x32x128xf32, #tpu.memory_space<vmem>>, vector<1x32x128xf32>
    %254 = vector.shape_cast %253 : vector<1x32x128xf32> to vector<32x128xf32>
    %cst_71 = arith.constant dense<0.000000e+00> : vector<16x128xf32>
    %255 = tpu.matmul %252, %254, %cst_71 {dimension_numbers = #tpu.dot_dimension_numbers<[1], [0], [0], [1], [0, 0, 1, 1], [], []>} : vector<16x32xf32>, vector<32x128xf32>, vector<16x128xf32> -> vector<16x128xf32>
    %256 = vector.broadcast %147 : vector<1x128xf32> to vector<16x128xf32>
    %257 = arith.addf %255, %256 : vector<16x128xf32>
    %cst_72 = arith.constant 5.000000e-01 : f32
    %258 = vector.broadcast %cst_72 : f32 to vector<16x128xf32>
    %259 = arith.mulf %258, %257 : vector<16x128xf32>
    %cst_73 = arith.constant 0.707106769 : f32
    %260 = vector.broadcast %cst_73 : f32 to vector<16x128xf32>
    %261 = arith.mulf %257, %260 : vector<16x128xf32>
    %262 = math.erf %261 : vector<16x128xf32>
    %cst_74 = arith.constant 1.000000e+00 : f32
    %263 = vector.broadcast %cst_74 : f32 to vector<16x128xf32>
    %264 = arith.addf %263, %262 : vector<16x128xf32>
    %265 = arith.mulf %259, %264 : vector<16x128xf32>
    %c1_75 = arith.constant 1 : index
    %c0_76 = arith.constant 0 : index
    %c0_77 = arith.constant 0 : index
    %266 = vector.load %arg5[%c1_75, %c0_76, %c0_77] : memref<2x128x32xf32, #tpu.memory_space<vmem>>, vector<1x128x32xf32>
    %267 = vector.shape_cast %266 : vector<1x128x32xf32> to vector<128x32xf32>
    %cst_78 = arith.constant dense<0.000000e+00> : vector<16x32xf32>
    %268 = tpu.matmul %265, %267, %cst_78 {dimension_numbers = #tpu.dot_dimension_numbers<[1], [0], [0], [1], [0, 0, 1, 1], [], []>} : vector<16x128xf32>, vector<128x32xf32>, vector<16x32xf32> -> vector<16x32xf32>
    %269 = vector.broadcast %148 : vector<1x32xf32> to vector<16x32xf32>
    %270 = arith.addf %268, %269 : vector<16x32xf32>
    %271 = vector.extract_strided_slice %1 {offsets = [8, 0], sizes = [1, 32], strides = [1, 1]} : vector<10x32xf32> to vector<1x32xf32>
    %272 = vector.extract_strided_slice %1 {offsets = [9, 0], sizes = [1, 32], strides = [1, 1]} : vector<10x32xf32> to vector<1x32xf32>
    %273 = vector.extract_strided_slice %2 {offsets = [6, 0], sizes = [1, 128], strides = [1, 1]} : vector<7x128xf32> to vector<1x128xf32>
    %cst_79 = arith.constant dense<0.000000e+00> : vector<16xf32>
    %274 = vector.multi_reduction <add>, %270, %cst_79 [1] : vector<16x32xf32> to vector<16xf32>
    %275 = vector.shape_cast %274 : vector<16xf32> to vector<16x1xf32>
    %cst_80 = arith.constant 3.200000e+01 : f32
    %276 = vector.broadcast %cst_80 : f32 to vector<16x1xf32>
    %277 = arith.divf %275, %276 : vector<16x1xf32>
    %278 = vector.broadcast %277 : vector<16x1xf32> to vector<16x32xf32>
    %279 = arith.subf %270, %278 : vector<16x32xf32>
    %280 = arith.mulf %279, %279 : vector<16x32xf32>
    %cst_81 = arith.constant dense<0.000000e+00> : vector<16xf32>
    %281 = vector.multi_reduction <add>, %280, %cst_81 [1] : vector<16x32xf32> to vector<16xf32>
    %282 = vector.shape_cast %281 : vector<16xf32> to vector<16x1xf32>
    %cst_82 = arith.constant 3.200000e+01 : f32
    %283 = vector.broadcast %cst_82 : f32 to vector<16x1xf32>
    %284 = arith.divf %282, %283 : vector<16x1xf32>
    %285 = vector.broadcast %277 : vector<16x1xf32> to vector<16x32xf32>
    %286 = arith.subf %270, %285 : vector<16x32xf32>
    %cst_83 = arith.constant 9.99999974E-6 : f32
    %287 = vector.broadcast %cst_83 : f32 to vector<16x1xf32>
    %288 = arith.addf %284, %287 : vector<16x1xf32>
    %289 = math.sqrt %288 : vector<16x1xf32>
    %290 = vector.broadcast %289 : vector<16x1xf32> to vector<16x32xf32>
    %291 = arith.divf %286, %290 : vector<16x32xf32>
    %292 = vector.broadcast %271 : vector<1x32xf32> to vector<16x32xf32>
    %293 = arith.mulf %291, %292 : vector<16x32xf32>
    %294 = vector.broadcast %272 : vector<1x32xf32> to vector<16x32xf32>
    %295 = arith.addf %293, %294 : vector<16x32xf32>
    %c0_84 = arith.constant 0 : index
    %c0_85 = arith.constant 0 : index
    %296 = vector.load %arg6[%c0_84, %c0_85] : memref<32x128xf32, #tpu.memory_space<vmem>>, vector<32x128xf32>
    %cst_86 = arith.constant dense<0.000000e+00> : vector<16x128xf32>
    %297 = tpu.matmul %295, %296, %cst_86 {dimension_numbers = #tpu.dot_dimension_numbers<[1], [0], [0], [1], [0, 0, 1, 1], [], []>} : vector<16x32xf32>, vector<32x128xf32>, vector<16x128xf32> -> vector<16x128xf32>
    %298 = vector.broadcast %273 : vector<1x128xf32> to vector<16x128xf32>
    %299 = arith.addf %297, %298 : vector<16x128xf32>
    %cst_87 = arith.constant dense<0xFF800000> : vector<16xf32>
    %300 = vector.multi_reduction <maximumf>, %299, %cst_87 [1] : vector<16x128xf32> to vector<16xf32>
    %301 = vector.shape_cast %300 : vector<16xf32> to vector<16x1xf32>
    %302 = vector.broadcast %301 : vector<16x1xf32> to vector<16x128xf32>
    %303 = arith.subf %299, %302 : vector<16x128xf32>
    %304 = math.exp %303 : vector<16x128xf32>
    %cst_88 = arith.constant dense<0.000000e+00> : vector<16xf32>
    %305 = vector.multi_reduction <add>, %304, %cst_88 [1] : vector<16x128xf32> to vector<16xf32>
    %306 = vector.shape_cast %305 : vector<16xf32> to vector<16x1xf32>
    %307 = vector.broadcast %306 : vector<16x1xf32> to vector<16x128xf32>
    %308 = arith.divf %304, %307 : vector<16x128xf32>
    %c0_89 = arith.constant 0 : index
    %c0_90 = arith.constant 0 : index
    %309 = vector.load %arg8[%c0_89, %c0_90] : memref<16x128xf32, #tpu.memory_space<vmem>>, vector<16x128xf32>
    tpu.vector_store %arg8[%c0_89, %c0_90], %308 {strides = array<i32>} : memref<16x128xf32, #tpu.memory_space<vmem>>, vector<16x128xf32>,
    return
  }
}

</mosaic_0001>

<llo_original>
// kernel: tpu_custom_call.1
$region0: #{tpu_custom_call.1}
  #allocation0 [shape = 'u32[]', space=smem, size = 0x4, offset = 0x4, fixed_abs, tag = 'smem constant byte address 0x4 - core index']
  #allocation1 [shape = 'u32[144,128]{1,0:T(1,128)}', space=vmem, size = 0x12000, scoped, tag = 'internal scratch']
  %s0 = inlined_call_operand.vmem [shape: f32[16,32], index: 0, kind: input, shape index: {}]
  %s1 = inlined_call_operand.vmem [shape: f32[2,8], index: 1, kind: input, shape index: {}]
  %s2 = inlined_call_operand.vmem [shape: f32[10,32], index: 2, kind: input, shape index: {}]
  %s3 = inlined_call_operand.vmem [shape: f32[2,32,96], index: 3, kind: input, shape index: {}]
  %s4 = inlined_call_operand.vmem [shape: f32[2,32,128], index: 4, kind: input, shape index: {}]
  %s5 = inlined_call_operand.vmem [shape: f32[2,128,32], index: 5, kind: input, shape index: {}]
  %s6 = inlined_call_operand.vmem [shape: f32[32,128], index: 6, kind: input, shape index: {}]
  %s7 = inlined_call_operand.vmem [shape: f32[7,128], index: 7, kind: input, shape index: {}]
  %s8 = inlined_call_operand.hbm [shape: f32[16,128], index: 8, kind: output, shape index: {}]
  %s9 = sld [smem:[#allocation0]]
  $region42: #{tpu_custom_call.1} parent=0
    _
  %s11 = ssub.s32 1, %s9
  %s12 = scalar_select 0, %s11, %s9
  $region1: #{tpu_custom_call.1} parent=0
    #allocation2 [shape = 'u8[8192]{0}', space=vmem, size = 0x2000, scoped, tag = 'output window, operand 0, single buffered']
    #allocation3 [shape = 's32[1]{0}', space=sflag, size = 0x4, scoped, tag = 'scoped memory for tpu_custom_call.1']
    %13 = vsyncpa [#allocation3], 0
    // Predicated region
    $region2: #{tpu_custom_call.1} parent=1 // pred_check
      _
    $region3: #{tpu_custom_call.1} parent=1 // pred_check_branch
      %15 = sbr.rel (0) target = $region5
    $region4: #{tpu_custom_call.1} parent=1 // pred_region
      _
    $region5: #{tpu_custom_call.1} parent=1 // pred_fallthru
      _
    // Predicated region
    $region6: #{tpu_custom_call.1} parent=1 // pred_check
      _
    $region7: #{tpu_custom_call.1} parent=1 // pred_check_branch
      %17 = sbr.rel (0) target = $region9
    $region8: #{tpu_custom_call.1} parent=1 // pred_region
      _
    $region9: #{tpu_custom_call.1} parent=1 // pred_fallthru
      _
    // Predicated region
    $region10: #{tpu_custom_call.1} parent=1 // pred_check
      _
    $region11: #{tpu_custom_call.1} parent=1 // pred_check_branch
      %19 = sbr.rel (0) target = $region13
    $region12: #{tpu_custom_call.1} parent=1 // pred_region
      _
    $region13: #{tpu_custom_call.1} parent=1 // pred_fallthru
      _
    // Predicated region
    $region14: #{tpu_custom_call.1} parent=1 // pred_check
      _
    $region15: #{tpu_custom_call.1} parent=1 // pred_check_branch
      %21 = sbr.rel (0) target = $region17
    $region16: #{tpu_custom_call.1} parent=1 // pred_region
      _
    $region17: #{tpu_custom_call.1} parent=1 // pred_fallthru
      _
    // Predicated region
    $region18: #{tpu_custom_call.1} parent=1 // pred_check
      _
    $region19: #{tpu_custom_call.1} parent=1 // pred_check_branch
      %23 = sbr.rel (0) target = $region21
    $region20: #{tpu_custom_call.1} parent=1 // pred_region
      _
    $region21: #{tpu_custom_call.1} parent=1 // pred_fallthru
      _
    // Predicated region
    $region22: #{tpu_custom_call.1} parent=1 // pred_check
      _
    $region23: #{tpu_custom_call.1} parent=1 // pred_check_branch
      %25 = sbr.rel (0) target = $region25
    $region24: #{tpu_custom_call.1} parent=1 // pred_region
      _
    $region25: #{tpu_custom_call.1} parent=1 // pred_fallthru
      _
    // Predicated region
    $region26: #{tpu_custom_call.1} parent=1 // pred_check
      _
    $region27: #{tpu_custom_call.1} parent=1 // pred_check_branch
      %27 = sbr.rel (0) target = $region29
    $region28: #{tpu_custom_call.1} parent=1 // pred_region
      _
    $region29: #{tpu_custom_call.1} parent=1 // pred_fallthru
      _
    // Predicated region
    $region30: #{tpu_custom_call.1} parent=1 // pred_check
      _
    $region31: #{tpu_custom_call.1} parent=1 // pred_check_branch
      %29 = sbr.rel (0) target = $region33
    $region32: #{tpu_custom_call.1} parent=1 // pred_region
      _
    $region33: #{tpu_custom_call.1} parent=1 // pred_fallthru
      _
    %v30 = vld [vmem:[%s0] sm:$0xff]
    %v31 = vld [vmem:[%s0 + $0x8] sm:$0xff]
    %v32 = vld [vmem:[%s2] sm:$0xff]
    %v33 = vld [vmem:[%s2 + $0x8] sm:$0x3]
    %v34 = vld [vmem:[%s7] sm:$0x7f]
    %v35 = vlaneseq
    %v36 = vshrl.u32 %v35, 7
    %v37 = vlaneseq
    %v38 = vand.u32 %v37, 127
    %vm39 = vcmp.gt.s32.totalorder %v38, %v36
    %v40 = vsel %vm39, -1e+30, 0.0
    %v41 = vld [vmem:[%s1] sm:$0x3]
    %v44 = vunpack.c.l.s4 1966171168
    %v45 = vunpack.c.0.s8 %v44
    %v46 = vlaneseq
    %v47 = vshrl.u32 %v46, 7
    %v48 = vsub.s32 %v45, %v47
    %v49 = vrot.slane %v41, %v48
    %v50 = vcombine.high %v49, %v49
    %v52 = vunpack.c.l.s4 1966171168
    %v53 = vunpack.c.0.s8 %v52
    %v54 = vlaneseq
    %v55 = vshrl.u32 %v54, 7
    %v56 = vsub.s32 %v53, %v55
    %v57 = vrot.slane %v49, %v56
    %v59 = vunpack.c.l.s4 1966171168
    %v60 = vunpack.c.0.s8 %v59
    %v61 = vlaneseq
    %v62 = vshrl.u32 %v61, 7
    %v63 = vsub.s32 %v60, %v62
    %v64 = vrot.slane %v50, %v63
    %v65 = vlaneseq
    %v66 = vshrl.u32 %v65, 7
    %v67 = vsub.s32 0, %v66
    %v68 = vrot.slane %v57, %v67
    %v69 = vlaneseq
    %v70 = vshrl.u32 %v69, 7
    %v71 = vsub.s32 0, %v70
    %v72 = vrot.slane %v64, %v71
    %vm75 = vcmask 261120
    %v76 = vsel %vm75, %v30, 0.0
    %77 = vadd.xlane.f32.xlu0 %v76
    %v78 = vpop.xlane.xlu0 %77
    %v79 = vsel %vm75, %v31, 0.0
    %80 = vadd.xlane.f32.xlu0 %v79
    %v81 = vpop.xlane.xlu0 %80
    %v82 = vrcp.pop 32.0
    %v83 = vmul.f32 %v78, %v82
    %v84 = vmul.f32 %v81, %v82
    %v85 = vsub.f32 %v30, %v83
    %v86 = vsub.f32 %v31, %v84
    %v87 = vmul.f32 %v85, %v85
    %v88 = vmul.f32 %v86, %v86
    %v89 = vsel %vm75, %v87, 0.0
    %90 = vadd.xlane.f32.xlu0 %v89
    %v91 = vpop.xlane.xlu0 %90
    %v92 = vsel %vm75, %v88, 0.0
    %93 = vadd.xlane.f32.xlu0 %v92
    %v94 = vpop.xlane.xlu0 %93
    %v95 = vmul.f32 %v91, %v82
    %v96 = vmul.f32 %v94, %v82
    %v97 = vadd.f32 %v95, 1e-05
    %v98 = vadd.f32 %v96, 1e-05
    %v99 = vrsqrt.pop %v97
    %v100 = vmul.f32 %v97, %v99
    %vm101 = vcmp.eq.f32.partialorder %v97, inf
    %v102 = vsel %vm101, %v97, %v100
    %vm103 = vcmp.eq.f32.partialorder %v97, 0.0
    %v104 = vand.u32 %v97, 2147483648
    %v105 = vsel %vm103, %v104, %v102
    %v106 = vrsqrt.pop %v98
    %v107 = vmul.f32 %v98, %v106
    %vm108 = vcmp.eq.f32.partialorder %v98, inf
    %v109 = vsel %vm108, %v98, %v107
    %vm110 = vcmp.eq.f32.partialorder %v98, 0.0
    %v111 = vand.u32 %v98, 2147483648
    %v112 = vsel %vm110, %v111, %v109
    %v113 = vrcp.pop %v105
    %v114 = vmul.f32 %v85, %v113
    %v115 = vrcp.pop %v112
    %v116 = vmul.f32 %v86, %v115
    %v117 = vlaneseq
    %v118 = vshrl.u32 %v117, 7
    %v119 = vsub.s32 0, %v118
    %v120 = vrot.slane %v32, %v119
    %v121 = vmul.f32 %v114, %v120
    %v122 = vmul.f32 %v116, %v120
    %v123 = vlaneseq
    %v124 = vshrl.u32 %v123, 7
    %v125 = vsub.s32 1, %v124
    %v126 = vrot.slane %v32, %v125
    %v127 = vadd.f32 %v121, %v126
    %v128 = vadd.f32 %v122, %v126
    %v129 = vld [vmem:[%s3] sm:$0xff]
    %v130 = vld [vmem:[%s3 + $0x8] sm:$0xff]
    %v131 = vld [vmem:[%s3 + $0x10] sm:$0xff]
    %v132 = vld [vmem:[%s3 + $0x18] sm:$0xff]
    %v133 = vlaneseq
    %v134 = vshrl.u32 %v133, 7
    %v135 = vsub.s32 0, %v134
    %v136 = vrot.slane %v34, %v135
    %v138 = vsel %vm75, %v127, 0
    %v141 = vsel %vm75, %v128, 0
    %143 = vmatprep.subr.mxu0 0.0
    %144 = vmatpush1.msra.mxu0 %v129
    %145 = vmatprep.subr.mxu0 0.0
    %146 = vmatpush1.msra.mxu0 %v130
    %147 = vmatprep.subr.mxu0 0.0
    %148 = vmatpush1.msra.mxu0 %v131
    %149 = vmatprep.subr.mxu0 0.0
    %150 = vmatpush1.msra.mxu0 %v132
    %151 = vmatprep.subr.mxu0 0.0
    %152 = vmatpush1.msra.mxu0 0.0
    %153 = vmatprep.subr.mxu0 0.0
    %154 = vmatpush1.msra.mxu0 0.0
    %155 = vmatprep.subr.mxu0 0.0
    %156 = vmatpush1.msra.mxu0 0.0
    %157 = vmatprep.subr.mxu0 0.0
    %158 = vmatpush1.msra.mxu0 0.0
    %159 = vmatprep.subr.mxu0 0.0
    %160 = vmatpush1.msra.mxu0 0.0
    %161 = vmatprep.subr.mxu0 0.0
    %162 = vmatpush1.msra.mxu0 0.0
    %163 = vmatprep.subr.mxu0 0.0
    %164 = vmatpush1.msra.mxu0 0.0
    %165 = vmatprep.subr.mxu0 0.0
    %166 = vmatpush1.msra.mxu0 0.0
    %167 = vmatprep.subr.mxu0 0.0
    %168 = vmatpush1.msra.mxu0 0.0
    %169 = vmatprep.subr.mxu0 0.0
    %170 = vmatpush1.msra.mxu0 0.0
    %171 = vmatprep.subr.mxu0 0.0
    %172 = vmatpush1.msra.mxu0 0.0
    %173 = vmatprep.subr.mxu0 0.0
    %174 = vmatpush1.msra.mxu0 0.0
    %175 = vmatprep.subr.mxu0 0.0
    %176 = vmatpush1.msra.mxu0 0.0
    %177 = vmatprep.subr.mxu0 0.0
    %178 = vmatpush1.msra.mxu0 0.0
    %179 = vmatprep.subr.mxu0 0.0
    %180 = vmatpush1.msra.mxu0 0.0
    %181 = vmatprep.subr.mxu0 0.0
    %182 = vmatpush1.msra.mxu0 0.0
    %183 = vmatprep.subr.mxu0 0.0
    %184 = vmatpush1.msra.mxu0 0.0
    %185 = vmatprep.subr.mxu0 0.0
    %186 = vmatpush1.msra.mxu0 0.0
    %187 = vmatprep.subr.mxu0 0.0
    %188 = vmatpush1.msra.mxu0 0.0
    %189 = vmatprep.subr.mxu0 0.0
    %190 = vmatpush1.msra.mxu0 0.0
    %191 = vmatprep.subr.mxu0 0.0
    %192 = vmatpush1.msra.mxu0 0.0
    %193 = vmatprep.subr.mxu0 0.0
    %194 = vmatpush1.msra.mxu0 0.0
    %195 = vmatprep.subr.mxu0 0.0
    %196 = vmatpush1.msra.mxu0 0.0
    %197 = vmatprep.subr.mxu0 0.0
    %198 = vmatpush1.msra.mxu0 0.0
    %199 = vmatprep.subr.mxu0 0.0
    %200 = vmatpush1.msra.mxu0 0.0
    %201 = vmatprep.subr.mxu0 0.0
    %202 = vmatpush1.msra.mxu0 0.0
    %203 = vmatprep.subr.mxu0 0.0
    %204 = vmatpush1.msra.mxu0 0.0
    %205 = vmatprep.subr.mxu0 0.0
    %206 = vmatpush1.msra.mxu0 0.0
    %207 = vmatprep.mubr.f32.mxu0 0.0
    %208 = vmatmul.mubr.f32.gmra.mrb[0].mxu0 %v138
    %v209 = vpop.f32.mrb[0].mxu0
    %v210 = vadd.f32 %v136, %v209
    %v211 = vpop.f32.mrb[0].mxu0
    %212 = vmatprep.mubr.f32.mxu0 0.0
    %213 = vmatmul.mubr.f32.gmra.mrb[0].mxu0 %v141
    %v214 = vpop.f32.mrb[0].mxu0
    %v215 = vadd.f32 %v136, %v214
    %v216 = vpop.f32.mrb[0].mxu0
    %217 = vdwg.mxu0
    %219 = vrot.lane.b32.xlu0 %v210, 96
    %v220 = vpop.permute.xlu0 %219
    %vm221 = vcmask 64512
    %v222 = vsel %vm221, %v210, 0
    %v224 = vsel %vm221, %v220, 0
    %226 = vmatprep.subr.mxu0 0.0
    %227 = vmatpush1.xpose.msra.mxu0 %v224
    %228 = vmatprep.subr.mxu0 0.0
    %229 = vmatpush1.xpose.msra.mxu0 0.0
    %230 = vmatprep.subr.mxu0 0.0
    %231 = vmatpush1.xpose.msra.mxu0 0.0
    %232 = vmatprep.subr.mxu0 0.0
    %233 = vmatpush1.xpose.msra.mxu0 0.0
    %234 = vmatprep.subr.mxu0 0.0
    %235 = vmatpush1.xpose.msra.mxu0 0.0
    %236 = vmatprep.subr.mxu0 0.0
    %237 = vmatpush1.xpose.msra.mxu0 0.0
    %238 = vmatprep.subr.mxu0 0.0
    %239 = vmatpush1.xpose.msra.mxu0 0.0
    %240 = vmatprep.subr.mxu0 0.0
    %241 = vmatpush1.xpose.msra.mxu0 0.0
    %242 = vmatprep.subr.mxu0 0.0
    %243 = vmatpush1.xpose.msra.mxu0 0.0
    %244 = vmatprep.subr.mxu0 0.0
    %245 = vmatpush1.xpose.msra.mxu0 0.0
    %246 = vmatprep.subr.mxu0 0.0
    %247 = vmatpush1.xpose.msra.mxu0 0.0
    %248 = vmatprep.subr.mxu0 0.0
    %249 = vmatpush1.xpose.msra.mxu0 0.0
    %250 = vmatprep.subr.mxu0 0.0
    %251 = vmatpush1.xpose.msra.mxu0 0.0
    %252 = vmatprep.subr.mxu0 0.0
    %253 = vmatpush1.xpose.msra.mxu0 0.0
    %254 = vmatprep.subr.mxu0 0.0
    %255 = vmatpush1.xpose.msra.mxu0 0.0
    %256 = vmatprep.subr.mxu0 0.0
    %257 = vmatpush1.xpose.msra.mxu0 0.0
    %258 = vmatprep.subr.mxu0 0.0
    %259 = vmatpush1.xpose.msra.mxu0 0.0
    %260 = vmatprep.subr.mxu0 0.0
    %261 = vmatpush1.xpose.msra.mxu0 0.0
    %262 = vmatprep.subr.mxu0 0.0
    %263 = vmatpush1.xpose.msra.mxu0 0.0
    %264 = vmatprep.subr.mxu0 0.0
    %265 = vmatpush1.xpose.msra.mxu0 0.0
    %266 = vmatprep.subr.mxu0 0.0
    %267 = vmatpush1.xpose.msra.mxu0 0.0
    %268 = vmatprep.subr.mxu0 0.0
    %269 = vmatpush1.xpose.msra.mxu0 0.0
    %270 = vmatprep.subr.mxu0 0.0
    %271 = vmatpush1.xpose.msra.mxu0 0.0
    %272 = vmatprep.subr.mxu0 0.0
    %273 = vmatpush1.xpose.msra.mxu0 0.0
    %274 = vmatprep.subr.mxu0 0.0
    %275 = vmatpush1.xpose.msra.mxu0 0.0
    %276 = vmatprep.subr.mxu0 0.0
    %277 = vmatpush1.xpose.msra.mxu0 0.0
    %278 = vmatprep.subr.mxu0 0.0
    %279 = vmatpush1.xpose.msra.mxu0 0.0
    %280 = vmatprep.subr.mxu0 0.0
    %281 = vmatpush1.xpose.msra.mxu0 0.0
    %282 = vmatprep.subr.mxu0 0.0
    %283 = vmatpush1.xpose.msra.mxu0 0.0
    %284 = vmatprep.subr.mxu0 0.0
    %285 = vmatpush1.xpose.msra.mxu0 0.0
    %286 = vmatprep.subr.mxu0 0.0
    %287 = vmatpush1.xpose.msra.mxu0 0.0
    %288 = vmatprep.subr.mxu0 0.0
    %289 = vmatpush1.xpose.msra.mxu0 0.0
    %290 = vmatprep.mubr.f32.mxu0 0.0
    %291 = vmatmul.mubr.f32.gmra.mrb[0].mxu0 %v222
    %v292 = vpop.f32.mrb[0].mxu0
    %v293 = vadd.f32 0.0, %v292
    %v294 = vpop.f32.mrb[0].mxu0
    %295 = vdwg.mxu0
    %297 = vrot.lane.b32.xlu0 %v215, 96
    %v298 = vpop.permute.xlu0 %297
    %v299 = vsel %vm221, %v215, 0
    %v301 = vsel %vm221, %v298, 0
    %303 = vmatprep.subr.mxu0 0.0
    %304 = vmatpush1.xpose.msra.mxu0 %v301
    %305 = vmatprep.subr.mxu0 0.0
    %306 = vmatpush1.xpose.msra.mxu0 0.0
    %307 = vmatprep.subr.mxu0 0.0
    %308 = vmatpush1.xpose.msra.mxu0 0.0
    %309 = vmatprep.subr.mxu0 0.0
    %310 = vmatpush1.xpose.msra.mxu0 0.0
    %311 = vmatprep.subr.mxu0 0.0
    %312 = vmatpush1.xpose.msra.mxu0 0.0
    %313 = vmatprep.subr.mxu0 0.0
    %314 = vmatpush1.xpose.msra.mxu0 0.0
    %315 = vmatprep.subr.mxu0 0.0
    %316 = vmatpush1.xpose.msra.mxu0 0.0
    %317 = vmatprep.subr.mxu0 0.0
    %318 = vmatpush1.xpose.msra.mxu0 0.0
    %319 = vmatprep.subr.mxu0 0.0
    %320 = vmatpush1.xpose.msra.mxu0 0.0
    %321 = vmatprep.subr.mxu0 0.0
    %322 = vmatpush1.xpose.msra.mxu0 0.0
    %323 = vmatprep.subr.mxu0 0.0
    %324 = vmatpush1.xpose.msra.mxu0 0.0
    %325 = vmatprep.subr.mxu0 0.0
    %326 = vmatpush1.xpose.msra.mxu0 0.0
    %327 = vmatprep.subr.mxu0 0.0
    %328 = vmatpush1.xpose.msra.mxu0 0.0
    %329 = vmatprep.subr.mxu0 0.0
    %330 = vmatpush1.xpose.msra.mxu0 0.0
    %331 = vmatprep.subr.mxu0 0.0
    %332 = vmatpush1.xpose.msra.mxu0 0.0
    %333 = vmatprep.subr.mxu0 0.0
    %334 = vmatpush1.xpose.msra.mxu0 0.0
    %335 = vmatprep.subr.mxu0 0.0
    %336 = vmatpush1.xpose.msra.mxu0 0.0
    %337 = vmatprep.subr.mxu0 0.0
    %338 = vmatpush1.xpose.msra.mxu0 0.0
    %339 = vmatprep.subr.mxu0 0.0
    %340 = vmatpush1.xpose.msra.mxu0 0.0
    %341 = vmatprep.subr.mxu0 0.0
    %342 = vmatpush1.xpose.msra.mxu0 0.0
    %343 = vmatprep.subr.mxu0 0.0
    %344 = vmatpush1.xpose.msra.mxu0 0.0
    %345 = vmatprep.subr.mxu0 0.0
    %346 = vmatpush1.xpose.msra.mxu0 0.0
    %347 = vmatprep.subr.mxu0 0.0
    %348 = vmatpush1.xpose.msra.mxu0 0.0
    %349 = vmatprep.subr.mxu0 0.0
    %350 = vmatpush1.xpose.msra.mxu0 0.0
    %351 = vmatprep.subr.mxu0 0.0
    %352 = vmatpush1.xpose.msra.mxu0 0.0
    %353 = vmatprep.subr.mxu0 0.0
    %354 = vmatpush1.xpose.msra.mxu0 0.0
    %355 = vmatprep.subr.mxu0 0.0
    %356 = vmatpush1.xpose.msra.mxu0 0.0
    %357 = vmatprep.subr.mxu0 0.0
    %358 = vmatpush1.xpose.msra.mxu0 0.0
    %359 = vmatprep.subr.mxu0 0.0
    %360 = vmatpush1.xpose.msra.mxu0 0.0
    %361 = vmatprep.subr.mxu0 0.0
    %362 = vmatpush1.xpose.msra.mxu0 0.0
    %363 = vmatprep.subr.mxu0 0.0
    %364 = vmatpush1.xpose.msra.mxu0 0.0
    %365 = vmatprep.subr.mxu0 0.0
    %366 = vmatpush1.xpose.msra.mxu0 0.0
    %367 = vmatprep.mubr.f32.mxu0 0.0
    %368 = vmatmul.mubr.f32.gmra.mrb[0].mxu0 %v299
    %v369 = vpop.f32.mrb[0].mxu0
    %v370 = vadd.f32 0.0, %v369
    %v371 = vpop.f32.mrb[0].mxu0
    %372 = vdwg.mxu0
    %373 = vrot.lane.b32.xlu0 %v210, 120
    %v374 = vpop.permute.xlu0 %373
    %375 = vrot.lane.b32.xlu0 %v210, 88
    %v376 = vpop.permute.xlu0 %375
    %v377 = vsel %vm221, %v374, 0
    %v379 = vsel %vm221, %v376, 0
    %381 = vmatprep.subr.mxu0 0.0
    %382 = vmatpush1.xpose.msra.mxu0 %v379
    %383 = vmatprep.subr.mxu0 0.0
    %384 = vmatpush1.xpose.msra.mxu0 0.0
    %385 = vmatprep.subr.mxu0 0.0
    %386 = vmatpush1.xpose.msra.mxu0 0.0
    %387 = vmatprep.subr.mxu0 0.0
    %388 = vmatpush1.xpose.msra.mxu0 0.0
    %389 = vmatprep.subr.mxu0 0.0
    %390 = vmatpush1.xpose.msra.mxu0 0.0
    %391 = vmatprep.subr.mxu0 0.0
    %392 = vmatpush1.xpose.msra.mxu0 0.0
    %393 = vmatprep.subr.mxu0 0.0
    %394 = vmatpush1.xpose.msra.mxu0 0.0
    %395 = vmatprep.subr.mxu0 0.0
    %396 = vmatpush1.xpose.msra.mxu0 0.0
    %397 = vmatprep.subr.mxu0 0.0
    %398 = vmatpush1.xpose.msra.mxu0 0.0
    %399 = vmatprep.subr.mxu0 0.0
    %400 = vmatpush1.xpose.msra.mxu0 0.0
    %401 = vmatprep.subr.mxu0 0.0
    %402 = vmatpush1.xpose.msra.mxu0 0.0
    %403 = vmatprep.subr.mxu0 0.0
    %404 = vmatpush1.xpose.msra.mxu0 0.0
    %405 = vmatprep.subr.mxu0 0.0
    %406 = vmatpush1.xpose.msra.mxu0 0.0
    %407 = vmatprep.subr.mxu0 0.0
    %408 = vmatpush1.xpose.msra.mxu0 0.0
    %409 = vmatprep.subr.mxu0 0.0
    %410 = vmatpush1.xpose.msra.mxu0 0.0
    %411 = vmatprep.subr.mxu0 0.0
    %412 = vmatpush1.xpose.msra.mxu0 0.0
    %413 = vmatprep.subr.mxu0 0.0
    %414 = vmatpush1.xpose.msra.mxu0 0.0
    %415 = vmatprep.subr.mxu0 0.0
    %416 = vmatpush1.xpose.msra.mxu0 0.0
    %417 = vmatprep.subr.mxu0 0.0
    %418 = vmatpush1.xpose.msra.mxu0 0.0
    %419 = vmatprep.subr.mxu0 0.0
    %420 = vmatpush1.xpose.msra.mxu0 0.0
    %421 = vmatprep.subr.mxu0 0.0
    %422 = vmatpush1.xpose.msra.mxu0 0.0
    %423 = vmatprep.subr.mxu0 0.0
    %424 = vmatpush1.xpose.msra.mxu0 0.0
    %425 = vmatprep.subr.mxu0 0.0
    %426 = vmatpush1.xpose.msra.mxu0 0.0
    %427 = vmatprep.subr.mxu0 0.0
    %428 = vmatpush1.xpose.msra.mxu0 0.0
    %429 = vmatprep.subr.mxu0 0.0
    %430 = vmatpush1.xpose.msra.mxu0 0.0
    %431 = vmatprep.subr.mxu0 0.0
    %432 = vmatpush1.xpose.msra.mxu0 0.0
    %433 = vmatprep.subr.mxu0 0.0
    %434 = vmatpush1.xpose.msra.mxu0 0.0
    %435 = vmatprep.subr.mxu0 0.0
    %436 = vmatpush1.xpose.msra.mxu0 0.0
    %437 = vmatprep.subr.mxu0 0.0
    %438 = vmatpush1.xpose.msra.mxu0 0.0
    %439 = vmatprep.subr.mxu0 0.0
    %440 = vmatpush1.xpose.msra.mxu0 0.0
    %441 = vmatprep.subr.mxu0 0.0
    %442 = vmatpush1.xpose.msra.mxu0 0.0
    %443 = vmatprep.subr.mxu0 0.0
    %444 = vmatpush1.xpose.msra.mxu0 0.0
    %445 = vmatprep.mubr.f32.mxu0 0.0
    %446 = vmatmul.mubr.f32.gmra.mrb[0].mxu0 %v377
    %v447 = vpop.f32.mrb[0].mxu0
    %v448 = vadd.f32 0.0, %v447
    %v449 = vpop.f32.mrb[0].mxu0
    %450 = vdwg.mxu0
    %451 = vrot.lane.b32.xlu0 %v215, 120
    %v452 = vpop.permute.xlu0 %451
    %453 = vrot.lane.b32.xlu0 %v215, 88
    %v454 = vpop.permute.xlu0 %453
    %v455 = vsel %vm221, %v452, 0
    %v457 = vsel %vm221, %v454, 0
    %459 = vmatprep.subr.mxu0 0.0
    %460 = vmatpush1.xpose.msra.mxu0 %v457
    %461 = vmatprep.subr.mxu0 0.0
    %462 = vmatpush1.xpose.msra.mxu0 0.0
    %463 = vmatprep.subr.mxu0 0.0
    %464 = vmatpush1.xpose.msra.mxu0 0.0
    %465 = vmatprep.subr.mxu0 0.0
    %466 = vmatpush1.xpose.msra.mxu0 0.0
    %467 = vmatprep.subr.mxu0 0.0
    %468 = vmatpush1.xpose.msra.mxu0 0.0
    %469 = vmatprep.subr.mxu0 0.0
    %470 = vmatpush1.xpose.msra.mxu0 0.0
    %471 = vmatprep.subr.mxu0 0.0
    %472 = vmatpush1.xpose.msra.mxu0 0.0
    %473 = vmatprep.subr.mxu0 0.0
    %474 = vmatpush1.xpose.msra.mxu0 0.0
    %475 = vmatprep.subr.mxu0 0.0
    %476 = vmatpush1.xpose.msra.mxu0 0.0
    %477 = vmatprep.subr.mxu0 0.0
    %478 = vmatpush1.xpose.msra.mxu0 0.0
    %479 = vmatprep.subr.mxu0 0.0
    %480 = vmatpush1.xpose.msra.mxu0 0.0
    %481 = vmatprep.subr.mxu0 0.0
    %482 = vmatpush1.xpose.msra.mxu0 0.0
    %483 = vmatprep.subr.mxu0 0.0
    %484 = vmatpush1.xpose.msra.mxu0 0.0
    %485 = vmatprep.subr.mxu0 0.0
    %486 = vmatpush1.xpose.msra.mxu0 0.0
    %487 = vmatprep.subr.mxu0 0.0
    %488 = vmatpush1.xpose.msra.mxu0 0.0
    %489 = vmatprep.subr.mxu0 0.0
    %490 = vmatpush1.xpose.msra.mxu0 0.0
    %491 = vmatprep.subr.mxu0 0.0
    %492 = vmatpush1.xpose.msra.mxu0 0.0
    %493 = vmatprep.subr.mxu0 0.0
    %494 = vmatpush1.xpose.msra.mxu0 0.0
    %495 = vmatprep.subr.mxu0 0.0
    %496 = vmatpush1.xpose.msra.mxu0 0.0
    %497 = vmatprep.subr.mxu0 0.0
    %498 = vmatpush1.xpose.msra.mxu0 0.0
    %499 = vmatprep.subr.mxu0 0.0
    %500 = vmatpush1.xpose.msra.mxu0 0.0
    %501 = vmatprep.subr.mxu0 0.0
    %502 = vmatpush1.xpose.msra.mxu0 0.0
    %503 = vmatprep.subr.mxu0 0.0
    %504 = vmatpush1.xpose.msra.mxu0 0.0
    %505 = vmatprep.subr.mxu0 0.0
    %506 = vmatpush1.xpose.msra.mxu0 0.0
    %507 = vmatprep.subr.mxu0 0.0
    %508 = vmatpush1.xpose.msra.mxu0 0.0
    %509 = vmatprep.subr.mxu0 0.0
    %510 = vmatpush1.xpose.msra.mxu0 0.0
    %511 = vmatprep.subr.mxu0 0.0
    %512 = vmatpush1.xpose.msra.mxu0 0.0
    %513 = vmatprep.subr.mxu0 0.0
    %514 = vmatpush1.xpose.msra.mxu0 0.0
    %515 = vmatprep.subr.mxu0 0.0
    %516 = vmatpush1.xpose.msra.mxu0 0.0
    %517 = vmatprep.subr.mxu0 0.0
    %518 = vmatpush1.xpose.msra.mxu0 0.0
    %519 = vmatprep.subr.mxu0 0.0
    %520 = vmatpush1.xpose.msra.mxu0 0.0
    %521 = vmatprep.subr.mxu0 0.0
    %522 = vmatpush1.xpose.msra.mxu0 0.0
    %523 = vmatprep.mubr.f32.mxu0 0.0
    %524 = vmatmul.mubr.f32.gmra.mrb[0].mxu0 %v455
    %v525 = vpop.f32.mrb[0].mxu0
    %v526 = vadd.f32 0.0, %v525
    %v527 = vpop.f32.mrb[0].mxu0
    %528 = vdwg.mxu0
    %529 = vrot.lane.b32.xlu0 %v210, 112
    %v530 = vpop.permute.xlu0 %529
    %531 = vrot.lane.b32.xlu0 %v210, 80
    %v532 = vpop.permute.xlu0 %531
    %v533 = vsel %vm221, %v530, 0
    %v535 = vsel %vm221, %v532, 0
    %537 = vmatprep.subr.mxu0 0.0
    %538 = vmatpush1.xpose.msra.mxu0 %v535
    %539 = vmatprep.subr.mxu0 0.0
    %540 = vmatpush1.xpose.msra.mxu0 0.0
    %541 = vmatprep.subr.mxu0 0.0
    %542 = vmatpush1.xpose.msra.mxu0 0.0
    %543 = vmatprep.subr.mxu0 0.0
    %544 = vmatpush1.xpose.msra.mxu0 0.0
    %545 = vmatprep.subr.mxu0 0.0
    %546 = vmatpush1.xpose.msra.mxu0 0.0
    %547 = vmatprep.subr.mxu0 0.0
    %548 = vmatpush1.xpose.msra.mxu0 0.0
    %549 = vmatprep.subr.mxu0 0.0
    %550 = vmatpush1.xpose.msra.mxu0 0.0
    %551 = vmatprep.subr.mxu0 0.0
    %552 = vmatpush1.xpose.msra.mxu0 0.0
    %553 = vmatprep.subr.mxu0 0.0
    %554 = vmatpush1.xpose.msra.mxu0 0.0
    %555 = vmatprep.subr.mxu0 0.0
    %556 = vmatpush1.xpose.msra.mxu0 0.0
    %557 = vmatprep.subr.mxu0 0.0
    %558 = vmatpush1.xpose.msra.mxu0 0.0
    %559 = vmatprep.subr.mxu0 0.0
    %560 = vmatpush1.xpose.msra.mxu0 0.0
    %561 = vmatprep.subr.mxu0 0.0
    %562 = vmatpush1.xpose.msra.mxu0 0.0
    %563 = vmatprep.subr.mxu0 0.0
    %564 = vmatpush1.xpose.msra.mxu0 0.0
    %565 = vmatprep.subr.mxu0 0.0
    %566 = vmatpush1.xpose.msra.mxu0 0.0
    %567 = vmatprep.subr.mxu0 0.0
    %568 = vmatpush1.xpose.msra.mxu0 0.0
    %569 = vmatprep.subr.mxu0 0.0
    %570 = vmatpush1.xpose.msra.mxu0 0.0
    %571 = vmatprep.subr.mxu0 0.0
    %572 = vmatpush1.xpose.msra.mxu0 0.0
    %573 = vmatprep.subr.mxu0 0.0
    %574 = vmatpush1.xpose.msra.mxu0 0.0
    %575 = vmatprep.subr.mxu0 0.0
    %576 = vmatpush1.xpose.msra.mxu0 0.0
    %577 = vmatprep.subr.mxu0 0.0
    %578 = vmatpush1.xpose.msra.mxu0 0.0
    %579 = vmatprep.subr.mxu0 0.0
    %580 = vmatpush1.xpose.msra.mxu0 0.0
    %581 = vmatprep.subr.mxu0 0.0
    %582 = vmatpush1.xpose.msra.mxu0 0.0
    %583 = vmatprep.subr.mxu0 0.0
    %584 = vmatpush1.xpose.msra.mxu0 0.0
    %585 = vmatprep.subr.mxu0 0.0
    %586 = vmatpush1.xpose.msra.mxu0 0.0
    %587 = vmatprep.subr.mxu0 0.0
    %588 = vmatpush1.xpose.msra.mxu0 0.0
    %589 = vmatprep.subr.mxu0 0.0
    %590 = vmatpush1.xpose.msra.mxu0 0.0
    %591 = vmatprep.subr.mxu0 0.0
    %592 = vmatpush1.xpose.msra.mxu0 0.0
    %593 = vmatprep.subr.mxu0 0.0
    %594 = vmatpush1.xpose.msra.mxu0 0.0
    %595 = vmatprep.subr.mxu0 0.0
    %596 = vmatpush1.xpose.msra.mxu0 0.0
    %597 = vmatprep.subr.mxu0 0.0
    %598 = vmatpush1.xpose.msra.mxu0 0.0
    %599 = vmatprep.subr.mxu0 0.0
    %600 = vmatpush1.xpose.msra.mxu0 0.0
    %601 = vmatprep.mubr.f32.mxu0 0.0
    %602 = vmatmul.mubr.f32.gmra.mrb[0].mxu0 %v533
    %v603 = vpop.f32.mrb[0].mxu0
    %v604 = vadd.f32 0.0, %v603
    %v605 = vpop.f32.mrb[0].mxu0
    %606 = vdwg.mxu0
    %607 = vrot.lane.b32.xlu0 %v215, 112
    %v608 = vpop.permute.xlu0 %607
    %609 = vrot.lane.b32.xlu0 %v215, 80
    %v610 = vpop.permute.xlu0 %609
    %v611 = vsel %vm221, %v608, 0
    %v613 = vsel %vm221, %v610, 0
    %615 = vmatprep.subr.mxu0 0.0
    %616 = vmatpush1.xpose.msra.mxu0 %v613
    %617 = vmatprep.subr.mxu0 0.0
    %618 = vmatpush1.xpose.msra.mxu0 0.0
    %619 = vmatprep.subr.mxu0 0.0
    %620 = vmatpush1.xpose.msra.mxu0 0.0
    %621 = vmatprep.subr.mxu0 0.0
    %622 = vmatpush1.xpose.msra.mxu0 0.0
    %623 = vmatprep.subr.mxu0 0.0
    %624 = vmatpush1.xpose.msra.mxu0 0.0
    %625 = vmatprep.subr.mxu0 0.0
    %626 = vmatpush1.xpose.msra.mxu0 0.0
    %627 = vmatprep.subr.mxu0 0.0
    %628 = vmatpush1.xpose.msra.mxu0 0.0
    %629 = vmatprep.subr.mxu0 0.0
    %630 = vmatpush1.xpose.msra.mxu0 0.0
    %631 = vmatprep.subr.mxu0 0.0
    %632 = vmatpush1.xpose.msra.mxu0 0.0
    %633 = vmatprep.subr.mxu0 0.0
    %634 = vmatpush1.xpose.msra.mxu0 0.0
    %635 = vmatprep.subr.mxu0 0.0
    %636 = vmatpush1.xpose.msra.mxu0 0.0
    %637 = vmatprep.subr.mxu0 0.0
    %638 = vmatpush1.xpose.msra.mxu0 0.0
    %639 = vmatprep.subr.mxu0 0.0
    %640 = vmatpush1.xpose.msra.mxu0 0.0
    %641 = vmatprep.subr.mxu0 0.0
    %642 = vmatpush1.xpose.msra.mxu0 0.0
    %643 = vmatprep.subr.mxu0 0.0
    %644 = vmatpush1.xpose.msra.mxu0 0.0
    %645 = vmatprep.subr.mxu0 0.0
    %646 = vmatpush1.xpose.msra.mxu0 0.0
    %647 = vmatprep.subr.mxu0 0.0
    %648 = vmatpush1.xpose.msra.mxu0 0.0
    %649 = vmatprep.subr.mxu0 0.0
    %650 = vmatpush1.xpose.msra.mxu0 0.0
    %651 = vmatprep.subr.mxu0 0.0
    %652 = vmatpush1.xpose.msra.mxu0 0.0
    %653 = vmatprep.subr.mxu0 0.0
    %654 = vmatpush1.xpose.msra.mxu0 0.0
    %655 = vmatprep.subr.mxu0 0.0
    %656 = vmatpush1.xpose.msra.mxu0 0.0
    %657 = vmatprep.subr.mxu0 0.0
    %658 = vmatpush1.xpose.msra.mxu0 0.0
    %659 = vmatprep.subr.mxu0 0.0
    %660 = vmatpush1.xpose.msra.mxu0 0.0
    %661 = vmatprep.subr.mxu0 0.0
    %662 = vmatpush1.xpose.msra.mxu0 0.0
    %663 = vmatprep.subr.mxu0 0.0
    %664 = vmatpush1.xpose.msra.mxu0 0.0
    %665 = vmatprep.subr.mxu0 0.0
    %666 = vmatpush1.xpose.msra.mxu0 0.0
    %667 = vmatprep.subr.mxu0 0.0
    %668 = vmatpush1.xpose.msra.mxu0 0.0
    %669 = vmatprep.subr.mxu0 0.0
    %670 = vmatpush1.xpose.msra.mxu0 0.0
    %671 = vmatprep.subr.mxu0 0.0
    %672 = vmatpush1.xpose.msra.mxu0 0.0
    %673 = vmatprep.subr.mxu0 0.0
    %674 = vmatpush1.xpose.msra.mxu0 0.0
    %675 = vmatprep.subr.mxu0 0.0
    %676 = vmatpush1.xpose.msra.mxu0 0.0
    %677 = vmatprep.subr.mxu0 0.0
    %678 = vmatpush1.xpose.msra.mxu0 0.0
    %679 = vmatprep.mubr.f32.mxu0 0.0
    %680 = vmatmul.mubr.f32.gmra.mrb[0].mxu0 %v611
    %v681 = vpop.f32.mrb[0].mxu0
    %v682 = vadd.f32 0.0, %v681
    %v683 = vpop.f32.mrb[0].mxu0
    %684 = vdwg.mxu0
    %685 = vrot.lane.b32.xlu0 %v210, 104
    %v686 = vpop.permute.xlu0 %685
    %687 = vrot.lane.b32.xlu0 %v210, 72
    %v688 = vpop.permute.xlu0 %687
    %v689 = vsel %vm221, %v686, 0
    %v691 = vsel %vm221, %v688, 0
    %693 = vmatprep.subr.mxu0 0.0
    %694 = vmatpush1.xpose.msra.mxu0 %v691
    %695 = vmatprep.subr.mxu0 0.0
    %696 = vmatpush1.xpose.msra.mxu0 0.0
    %697 = vmatprep.subr.mxu0 0.0
    %698 = vmatpush1.xpose.msra.mxu0 0.0
    %699 = vmatprep.subr.mxu0 0.0
    %700 = vmatpush1.xpose.msra.mxu0 0.0
    %701 = vmatprep.subr.mxu0 0.0
    %702 = vmatpush1.xpose.msra.mxu0 0.0
    %703 = vmatprep.subr.mxu0 0.0
    %704 = vmatpush1.xpose.msra.mxu0 0.0
    %705 = vmatprep.subr.mxu0 0.0
    %706 = vmatpush1.xpose.msra.mxu0 0.0
    %707 = vmatprep.subr.mxu0 0.0
    %708 = vmatpush1.xpose.msra.mxu0 0.0
    %709 = vmatprep.subr.mxu0 0.0
    %710 = vmatpush1.xpose.msra.mxu0 0.0
    %711 = vmatprep.subr.mxu0 0.0
    %712 = vmatpush1.xpose.msra.mxu0 0.0
    %713 = vmatprep.subr.mxu0 0.0
    %714 = vmatpush1.xpose.msra.mxu0 0.0
    %715 = vmatprep.subr.mxu0 0.0
    %716 = vmatpush1.xpose.msra.mxu0 0.0
    %717 = vmatprep.subr.mxu0 0.0
    %718 = vmatpush1.xpose.msra.mxu0 0.0
    %719 = vmatprep.subr.mxu0 0.0
    %720 = vmatpush1.xpose.msra.mxu0 0.0
    %721 = vmatprep.subr.mxu0 0.0
    %722 = vmatpush1.xpose.msra.mxu0 0.0
    %723 = vmatprep.subr.mxu0 0.0
    %724 = vmatpush1.xpose.msra.mxu0 0.0
    %725 = vmatprep.subr.mxu0 0.0
    %726 = vmatpush1.xpose.msra.mxu0 0.0
    %727 = vmatprep.subr.mxu0 0.0
    %728 = vmatpush1.xpose.msra.mxu0 0.0
    %729 = vmatprep.subr.mxu0 0.0
    %730 = vmatpush1.xpose.msra.mxu0 0.0
    %731 = vmatprep.subr.mxu0 0.0
    %732 = vmatpush1.xpose.msra.mxu0 0.0
    %733 = vmatprep.subr.mxu0 0.0
    %734 = vmatpush1.xpose.msra.mxu0 0.0
    %735 = vmatprep.subr.mxu0 0.0
    %736 = vmatpush1.xpose.msra.mxu0 0.0
    %737 = vmatprep.subr.mxu0 0.0
    %738 = vmatpush1.xpose.msra.mxu0 0.0
    %739 = vmatprep.subr.mxu0 0.0
    %740 = vmatpush1.xpose.msra.mxu0 0.0
    %741 = vmatprep.subr.mxu0 0.0
    %742 = vmatpush1.xpose.msra.mxu0 0.0
    %743 = vmatprep.subr.mxu0 0.0
    %744 = vmatpush1.xpose.msra.mxu0 0.0
    %745 = vmatprep.subr.mxu0 0.0
    %746 = vmatpush1.xpose.msra.mxu0 0.0
    %747 = vmatprep.subr.mxu0 0.0
    %748 = vmatpush1.xpose.msra.mxu0 0.0
    %749 = vmatprep.subr.mxu0 0.0
    %750 = vmatpush1.xpose.msra.mxu0 0.0
    %751 = vmatprep.subr.mxu0 0.0
    %752 = vmatpush1.xpose.msra.mxu0 0.0
    %753 = vmatprep.subr.mxu0 0.0
    %754 = vmatpush1.xpose.msra.mxu0 0.0
    %755 = vmatprep.subr.mxu0 0.0
    %756 = vmatpush1.xpose.msra.mxu0 0.0
    %757 = vmatprep.mubr.f32.mxu0 0.0
    %758 = vmatmul.mubr.f32.gmra.mrb[0].mxu0 %v689
    %v759 = vpop.f32.mrb[0].mxu0
    %v760 = vadd.f32 0.0, %v759
    %v761 = vpop.f32.mrb[0].mxu0
    %762 = vdwg.mxu0
    %763 = vrot.lane.b32.xlu0 %v215, 104
    %v764 = vpop.permute.xlu0 %763
    %765 = vrot.lane.b32.xlu0 %v215, 72
    %v766 = vpop.permute.xlu0 %765
    %v767 = vsel %vm221, %v764, 0
    %v769 = vsel %vm221, %v766, 0
    %771 = vmatprep.subr.mxu0 0.0
    %772 = vmatpush1.xpose.msra.mxu0 %v769
    %773 = vmatprep.subr.mxu0 0.0
    %774 = vmatpush1.xpose.msra.mxu0 0.0
    %775 = vmatprep.subr.mxu0 0.0
    %776 = vmatpush1.xpose.msra.mxu0 0.0
    %777 = vmatprep.subr.mxu0 0.0
    %778 = vmatpush1.xpose.msra.mxu0 0.0
    %779 = vmatprep.subr.mxu0 0.0
    %780 = vmatpush1.xpose.msra.mxu0 0.0
    %781 = vmatprep.subr.mxu0 0.0
    %782 = vmatpush1.xpose.msra.mxu0 0.0
    %783 = vmatprep.subr.mxu0 0.0
    %784 = vmatpush1.xpose.msra.mxu0 0.0
    %785 = vmatprep.subr.mxu0 0.0
    %786 = vmatpush1.xpose.msra.mxu0 0.0
    %787 = vmatprep.subr.mxu0 0.0
    %788 = vmatpush1.xpose.msra.mxu0 0.0
    %789 = vmatprep.subr.mxu0 0.0
    %790 = vmatpush1.xpose.msra.mxu0 0.0
    %791 = vmatprep.subr.mxu0 0.0
    %792 = vmatpush1.xpose.msra.mxu0 0.0
    %793 = vmatprep.subr.mxu0 0.0
    %794 = vmatpush1.xpose.msra.mxu0 0.0
    %795 = vmatprep.subr.mxu0 0.0
    %796 = vmatpush1.xpose.msra.mxu0 0.0
    %797 = vmatprep.subr.mxu0 0.0
    %798 = vmatpush1.xpose.msra.mxu0 0.0
    %799 = vmatprep.subr.mxu0 0.0
    %800 = vmatpush1.xpose.msra.mxu0 0.0
    %801 = vmatprep.subr.mxu0 0.0
    %802 = vmatpush1.xpose.msra.mxu0 0.0
    %803 = vmatprep.subr.mxu0 0.0
    %804 = vmatpush1.xpose.msra.mxu0 0.0
    %805 = vmatprep.subr.mxu0 0.0
    %806 = vmatpush1.xpose.msra.mxu0 0.0
    %807 = vmatprep.subr.mxu0 0.0
    %808 = vmatpush1.xpose.msra.mxu0 0.0
    %809 = vmatprep.subr.mxu0 0.0
    %810 = vmatpush1.xpose.msra.mxu0 0.0
    %811 = vmatprep.subr.mxu0 0.0
    %812 = vmatpush1.xpose.msra.mxu0 0.0
    %813 = vmatprep.subr.mxu0 0.0
    %814 = vmatpush1.xpose.msra.mxu0 0.0
    %815 = vmatprep.subr.mxu0 0.0
    %816 = vmatpush1.xpose.msra.mxu0 0.0
    %817 = vmatprep.subr.mxu0 0.0
    %818 = vmatpush1.xpose.msra.mxu0 0.0
    %819 = vmatprep.subr.mxu0 0.0
    %820 = vmatpush1.xpose.msra.mxu0 0.0
    %821 = vmatprep.subr.mxu0 0.0
    %822 = vmatpush1.xpose.msra.mxu0 0.0
    %823 = vmatprep.subr.mxu0 0.0
    %824 = vmatpush1.xpose.msra.mxu0 0.0
    %825 = vmatprep.subr.mxu0 0.0
    %826 = vmatpush1.xpose.msra.mxu0 0.0
    %827 = vmatprep.subr.mxu0 0.0
    %828 = vmatpush1.xpose.msra.mxu0 0.0
    %829 = vmatprep.subr.mxu0 0.0
    %830 = vmatpush1.xpose.msra.mxu0 0.0
    %831 = vmatprep.subr.mxu0 0.0
    %832 = vmatpush1.xpose.msra.mxu0 0.0
    %833 = vmatprep.subr.mxu0 0.0
    %834 = vmatpush1.xpose.msra.mxu0 0.0
    %835 = vmatprep.mubr.f32.mxu0 0.0
    %836 = vmatmul.mubr.f32.gmra.mrb[0].mxu0 %v767
    %v837 = vpop.f32.mrb[0].mxu0
    %v838 = vadd.f32 0.0, %v837
    %v839 = vpop.f32.mrb[0].mxu0
    %840 = vdwg.mxu0
    %v841 = vmul.f32 %v293, 0.17677669
    %v842 = vmul.f32 %v370, 0.17677669
    %v843 = vmul.f32 %v448, 0.17677669
    %v844 = vmul.f32 %v526, 0.17677669
    %v845 = vmul.f32 %v604, 0.17677669
    %v846 = vmul.f32 %v682, 0.17677669
    %v847 = vmul.f32 %v760, 0.17677669
    %v848 = vmul.f32 %v838, 0.17677669
    %v849 = vadd.f32 %v841, %v40
    %v850 = vadd.f32 %v842, %v40
    %v851 = vadd.f32 %v843, %v40
    %v852 = vadd.f32 %v844, %v40
    %v853 = vadd.f32 %v845, %v40
    %v854 = vadd.f32 %v846, %v40
    %v855 = vadd.f32 %v847, %v40
    %v856 = vadd.f32 %v848, %v40
    %v857 = vsel %vm221, %v849, -inf
    %v858 = vrot.slane %v857, 4
    %v859 = vmax.f32 %v857, %v858
    %v860 = vrot.slane %v859, 2
    %v861 = vmax.f32 %v859, %v860
    %v862 = vrot.slane %v861, 1
    %v863 = vmax.f32 %v861, %v862
    %v864 = vsel %vm221, %v850, -inf
    %v865 = vrot.slane %v864, 4
    %v866 = vmax.f32 %v864, %v865
    %v867 = vrot.slane %v866, 2
    %v868 = vmax.f32 %v866, %v867
    %v869 = vrot.slane %v868, 1
    %v870 = vmax.f32 %v868, %v869
    %v871 = vsel %vm221, %v851, -inf
    %v872 = vrot.slane %v871, 4
    %v873 = vmax.f32 %v871, %v872
    %v874 = vrot.slane %v873, 2
    %v875 = vmax.f32 %v873, %v874
    %v876 = vrot.slane %v875, 1
    %v877 = vmax.f32 %v875, %v876
    %v878 = vsel %vm221, %v852, -inf
    %v879 = vrot.slane %v878, 4
    %v880 = vmax.f32 %v878, %v879
    %v881 = vrot.slane %v880, 2
    %v882 = vmax.f32 %v880, %v881
    %v883 = vrot.slane %v882, 1
    %v884 = vmax.f32 %v882, %v883
    %v885 = vsel %vm221, %v853, -inf
    %v886 = vrot.slane %v885, 4
    %v887 = vmax.f32 %v885, %v886
    %v888 = vrot.slane %v887, 2
    %v889 = vmax.f32 %v887, %v888
    %v890 = vrot.slane %v889, 1
    %v891 = vmax.f32 %v889, %v890
    %v892 = vsel %vm221, %v854, -inf
    %v893 = vrot.slane %v892, 4
    %v894 = vmax.f32 %v892, %v893
    %v895 = vrot.slane %v894, 2
    %v896 = vmax.f32 %v894, %v895
    %v897 = vrot.slane %v896, 1
    %v898 = vmax.f32 %v896, %v897
    %v899 = vsel %vm221, %v855, -inf
    %v900 = vrot.slane %v899, 4
    %v901 = vmax.f32 %v899, %v900
    %v902 = vrot.slane %v901, 2
    %v903 = vmax.f32 %v901, %v902
    %v904 = vrot.slane %v903, 1
    %v905 = vmax.f32 %v903, %v904
    %v906 = vsel %vm221, %v856, -inf
    %v907 = vrot.slane %v906, 4
    %v908 = vmax.f32 %v906, %v907
    %v909 = vrot.slane %v908, 2
    %v910 = vmax.f32 %v908, %v909
    %v911 = vrot.slane %v910, 1
    %v912 = vmax.f32 %v910, %v911
    %v913 = vsub.f32 %v849, %v863
    %v914 = vsub.f32 %v850, %v870
    %v915 = vsub.f32 %v851, %v877
    %v916 = vsub.f32 %v852, %v884
    %v917 = vsub.f32 %v853, %v891
    %v918 = vsub.f32 %v854, %v898
    %v919 = vsub.f32 %v855, %v905
    %v920 = vsub.f32 %v856, %v912
    %v921 = vmul.f32 %v913, 1.442695
    %v922 = vpow.pop %v921
    %v923 = vmul.f32 %v914, 1.442695
    %v924 = vpow.pop %v923
    %v925 = vmul.f32 %v915, 1.442695
    %v926 = vpow.pop %v925
    %v927 = vmul.f32 %v916, 1.442695
    %v928 = vpow.pop %v927
    %v929 = vmul.f32 %v917, 1.442695
    %v930 = vpow.pop %v929
    %v931 = vmul.f32 %v918, 1.442695
    %v932 = vpow.pop %v931
    %v933 = vmul.f32 %v919, 1.442695
    %v934 = vpow.pop %v933
    %v935 = vmul.f32 %v920, 1.442695
    %v936 = vpow.pop %v935
    %v937 = vsel %vm221, %v922, 0.0
    %v938 = vrot.slane %v937, 4
    %v939 = vadd.f32 %v937, %v938
    %v940 = vrot.slane %v939, 2
    %v941 = vadd.f32 %v939, %v940
    %v942 = vrot.slane %v941, 1
    %v943 = vadd.f32 %v941, %v942
    %v944 = vsel %vm221, %v924, 0.0
    %v945 = vrot.slane %v944, 4
    %v946 = vadd.f32 %v944, %v945
    %v947 = vrot.slane %v946, 2
    %v948 = vadd.f32 %v946, %v947
    %v949 = vrot.slane %v948, 1
    %v950 = vadd.f32 %v948, %v949
    %v951 = vsel %vm221, %v926, 0.0
    %v952 = vrot.slane %v951, 4
    %v953 = vadd.f32 %v951, %v952
    %v954 = vrot.slane %v953, 2
    %v955 = vadd.f32 %v953, %v954
    %v956 = vrot.slane %v955, 1
    %v957 = vadd.f32 %v955, %v956
    %v958 = vsel %vm221, %v928, 0.0
    %v959 = vrot.slane %v958, 4
    %v960 = vadd.f32 %v958, %v959
    %v961 = vrot.slane %v960, 2
    %v962 = vadd.f32 %v960, %v961
    %v963 = vrot.slane %v962, 1
    %v964 = vadd.f32 %v962, %v963
    %v965 = vsel %vm221, %v930, 0.0
    %v966 = vrot.slane %v965, 4
    %v967 = vadd.f32 %v965, %v966
    %v968 = vrot.slane %v967, 2
    %v969 = vadd.f32 %v967, %v968
    %v970 = vrot.slane %v969, 1
    %v971 = vadd.f32 %v969, %v970
    %v972 = vsel %vm221, %v932, 0.0
    %v973 = vrot.slane %v972, 4
    %v974 = vadd.f32 %v972, %v973
    %v975 = vrot.slane %v974, 2
    %v976 = vadd.f32 %v974, %v975
    %v977 = vrot.slane %v976, 1
    %v978 = vadd.f32 %v976, %v977
    %v979 = vsel %vm221, %v934, 0.0
    %v980 = vrot.slane %v979, 4
    %v981 = vadd.f32 %v979, %v980
    %v982 = vrot.slane %v981, 2
    %v983 = vadd.f32 %v981, %v982
    %v984 = vrot.slane %v983, 1
    %v985 = vadd.f32 %v983, %v984
    %v986 = vsel %vm221, %v936, 0.0
    %v987 = vrot.slane %v986, 4
    %v988 = vadd.f32 %v986, %v987
    %v989 = vrot.slane %v988, 2
    %v990 = vadd.f32 %v988, %v989
    %v991 = vrot.slane %v990, 1
    %v992 = vadd.f32 %v990, %v991
    %v993 = vrcp.pop %v943
    %v994 = vrcp.pop %v950
    %v995 = vrcp.pop %v957
    %v996 = vrcp.pop %v964
    %v997 = vrcp.pop %v971
    %v998 = vrcp.pop %v978
    %v999 = vrcp.pop %v985
    %v1000 = vrcp.pop %v992
    %v1001 = vmul.f32 %v922, %v993
    %v1002 = vmul.f32 %v924, %v994
    %v1003 = vmul.f32 %v926, %v995
    %v1004 = vmul.f32 %v928, %v996
    %v1005 = vmul.f32 %v930, %v997
    %v1006 = vmul.f32 %v932, %v998
    %v1007 = vmul.f32 %v934, %v999
    %v1008 = vmul.f32 %v936, %v1000
    %v1009 = vmul.f32 %v1001, %v68
    %v1010 = vmul.f32 %v1002, %v72
    %v1011 = vmul.f32 %v1003, %v68
    %v1012 = vmul.f32 %v1004, %v72
    %v1013 = vmul.f32 %v1005, %v68
    %v1014 = vmul.f32 %v1006, %v72
    %v1015 = vmul.f32 %v1007, %v68
    %v1016 = vmul.f32 %v1008, %v72
    %1017 = vrot.lane.b32.xlu0 %v210, 64
    %v1018 = vpop.permute.xlu0 %1017
    %v1021 = vsel %vm221, %v1009, 0
    %1023 = vmatprep.subr.mxu0 0.0
    %1024 = vmatpush1.msra.mxu0 %v1018
    %1025 = vmatprep.subr.mxu0 0.0
    %1026 = vmatpush1.msra.mxu0 0.0
    %1027 = vmatprep.subr.mxu0 0.0
    %1028 = vmatpush1.msra.mxu0 0.0
    %1029 = vmatprep.subr.mxu0 0.0
    %1030 = vmatpush1.msra.mxu0 0.0
    %1031 = vmatprep.subr.mxu0 0.0
    %1032 = vmatpush1.msra.mxu0 0.0
    %1033 = vmatprep.subr.mxu0 0.0
    %1034 = vmatpush1.msra.mxu0 0.0
    %1035 = vmatprep.subr.mxu0 0.0
    %1036 = vmatpush1.msra.mxu0 0.0
    %1037 = vmatprep.subr.mxu0 0.0
    %1038 = vmatpush1.msra.mxu0 0.0
    %1039 = vmatprep.subr.mxu0 0.0
    %1040 = vmatpush1.msra.mxu0 0.0
    %1041 = vmatprep.subr.mxu0 0.0
    %1042 = vmatpush1.msra.mxu0 0.0
    %1043 = vmatprep.subr.mxu0 0.0
    %1044 = vmatpush1.msra.mxu0 0.0
    %1045 = vmatprep.subr.mxu0 0.0
    %1046 = vmatpush1.msra.mxu0 0.0
    %1047 = vmatprep.subr.mxu0 0.0
    %1048 = vmatpush1.msra.mxu0 0.0
    %1049 = vmatprep.subr.mxu0 0.0
    %1050 = vmatpush1.msra.mxu0 0.0
    %1051 = vmatprep.subr.mxu0 0.0
    %1052 = vmatpush1.msra.mxu0 0.0
    %1053 = vmatprep.subr.mxu0 0.0
    %1054 = vmatpush1.msra.mxu0 0.0
    %1055 = vmatprep.subr.mxu0 0.0
    %1056 = vmatpush1.msra.mxu0 0.0
    %1057 = vmatprep.subr.mxu0 0.0
    %1058 = vmatpush1.msra.mxu0 0.0
    %1059 = vmatprep.subr.mxu0 0.0
    %1060 = vmatpush1.msra.mxu0 0.0
    %1061 = vmatprep.subr.mxu0 0.0
    %1062 = vmatpush1.msra.mxu0 0.0
    %1063 = vmatprep.subr.mxu0 0.0
    %1064 = vmatpush1.msra.mxu0 0.0
    %1065 = vmatprep.subr.mxu0 0.0
    %1066 = vmatpush1.msra.mxu0 0.0
    %1067 = vmatprep.subr.mxu0 0.0
    %1068 = vmatpush1.msra.mxu0 0.0
    %1069 = vmatprep.subr.mxu0 0.0
    %1070 = vmatpush1.msra.mxu0 0.0
    %1071 = vmatprep.subr.mxu0 0.0
    %1072 = vmatpush1.msra.mxu0 0.0
    %1073 = vmatprep.subr.mxu0 0.0
    %1074 = vmatpush1.msra.mxu0 0.0
    %1075 = vmatprep.subr.mxu0 0.0
    %1076 = vmatpush1.msra.mxu0 0.0
    %1077 = vmatprep.subr.mxu0 0.0
    %1078 = vmatpush1.msra.mxu0 0.0
    %1079 = vmatprep.subr.mxu0 0.0
    %1080 = vmatpush1.msra.mxu0 0.0
    %1081 = vmatprep.subr.mxu0 0.0
    %1082 = vmatpush1.msra.mxu0 0.0
    %1083 = vmatprep.subr.mxu0 0.0
    %1084 = vmatpush1.msra.mxu0 0.0
    %1085 = vmatprep.subr.mxu0 0.0
    %1086 = vmatpush1.msra.mxu0 0.0
    %1087 = vmatprep.mubr.f32.mxu0 0.0
    %1088 = vmatmul.mubr.f32.gmra.mrb[0].mxu0 %v1021
    %v1089 = vpop.f32.mrb[0].mxu0
    %v1090 = vadd.f32 0.0, %v1089
    %v1091 = vpop.f32.mrb[0].mxu0
    %1092 = vdwg.mxu0
    %1093 = vrot.lane.b32.xlu0 %v215, 64
    %v1094 = vpop.permute.xlu0 %1093
    %v1097 = vsel %vm221, %v1010, 0
    %1099 = vmatprep.subr.mxu0 0.0
    %1100 = vmatpush1.msra.mxu0 %v1094
    %1101 = vmatprep.subr.mxu0 0.0
    %1102 = vmatpush1.msra.mxu0 0.0
    %1103 = vmatprep.subr.mxu0 0.0
    %1104 = vmatpush1.msra.mxu0 0.0
    %1105 = vmatprep.subr.mxu0 0.0
    %1106 = vmatpush1.msra.mxu0 0.0
    %1107 = vmatprep.subr.mxu0 0.0
    %1108 = vmatpush1.msra.mxu0 0.0
    %1109 = vmatprep.subr.mxu0 0.0
    %1110 = vmatpush1.msra.mxu0 0.0
    %1111 = vmatprep.subr.mxu0 0.0
    %1112 = vmatpush1.msra.mxu0 0.0
    %1113 = vmatprep.subr.mxu0 0.0
    %1114 = vmatpush1.msra.mxu0 0.0
    %1115 = vmatprep.subr.mxu0 0.0
    %1116 = vmatpush1.msra.mxu0 0.0
    %1117 = vmatprep.subr.mxu0 0.0
    %1118 = vmatpush1.msra.mxu0 0.0
    %1119 = vmatprep.subr.mxu0 0.0
    %1120 = vmatpush1.msra.mxu0 0.0
    %1121 = vmatprep.subr.mxu0 0.0
    %1122 = vmatpush1.msra.mxu0 0.0
    %1123 = vmatprep.subr.mxu0 0.0
    %1124 = vmatpush1.msra.mxu0 0.0
    %1125 = vmatprep.subr.mxu0 0.0
    %1126 = vmatpush1.msra.mxu0 0.0
    %1127 = vmatprep.subr.mxu0 0.0
    %1128 = vmatpush1.msra.mxu0 0.0
    %1129 = vmatprep.subr.mxu0 0.0
    %1130 = vmatpush1.msra.mxu0 0.0
    %1131 = vmatprep.subr.mxu0 0.0
    %1132 = vmatpush1.msra.mxu0 0.0
    %1133 = vmatprep.subr.mxu0 0.0
    %1134 = vmatpush1.msra.mxu0 0.0
    %1135 = vmatprep.subr.mxu0 0.0
    %1136 = vmatpush1.msra.mxu0 0.0
    %1137 = vmatprep.subr.mxu0 0.0
    %1138 = vmatpush1.msra.mxu0 0.0
    %1139 = vmatprep.subr.mxu0 0.0
    %1140 = vmatpush1.msra.mxu0 0.0
    %1141 = vmatprep.subr.mxu0 0.0
    %1142 = vmatpush1.msra.mxu0 0.0
    %1143 = vmatprep.subr.mxu0 0.0
    %1144 = vmatpush1.msra.mxu0 0.0
    %1145 = vmatprep.subr.mxu0 0.0
    %1146 = vmatpush1.msra.mxu0 0.0
    %1147 = vmatprep.subr.mxu0 0.0
    %1148 = vmatpush1.msra.mxu0 0.0
    %1149 = vmatprep.subr.mxu0 0.0
    %1150 = vmatpush1.msra.mxu0 0.0
    %1151 = vmatprep.subr.mxu0 0.0
    %1152 = vmatpush1.msra.mxu0 0.0
    %1153 = vmatprep.subr.mxu0 0.0
    %1154 = vmatpush1.msra.mxu0 0.0
    %1155 = vmatprep.subr.mxu0 0.0
    %1156 = vmatpush1.msra.mxu0 0.0
    %1157 = vmatprep.subr.mxu0 0.0
    %1158 = vmatpush1.msra.mxu0 0.0
    %1159 = vmatprep.subr.mxu0 0.0
    %1160 = vmatpush1.msra.mxu0 0.0
    %1161 = vmatprep.subr.mxu0 0.0
    %1162 = vmatpush1.msra.mxu0 0.0
    %1163 = vmatprep.mubr.f32.mxu0 0.0
    %1164 = vmatmul.mubr.f32.gmra.mrb[0].mxu0 %v1097
    %v1165 = vpop.f32.mrb[0].mxu0
    %v1166 = vadd.f32 0.0, %v1165
    %v1167 = vpop.f32.mrb[0].mxu0
    %1168 = vdwg.mxu0
    %1169 = vrot.lane.b32.xlu0 %v210, 56
    %v1170 = vpop.permute.xlu0 %1169
    %v1173 = vsel %vm221, %v1011, 0
    %1175 = vmatprep.subr.mxu0 0.0
    %1176 = vmatpush1.msra.mxu0 %v1170
    %1177 = vmatprep.subr.mxu0 0.0
    %1178 = vmatpush1.msra.mxu0 0.0
    %1179 = vmatprep.subr.mxu0 0.0
    %1180 = vmatpush1.msra.mxu0 0.0
    %1181 = vmatprep.subr.mxu0 0.0
    %1182 = vmatpush1.msra.mxu0 0.0
    %1183 = vmatprep.subr.mxu0 0.0
    %1184 = vmatpush1.msra.mxu0 0.0
    %1185 = vmatprep.subr.mxu0 0.0
    %1186 = vmatpush1.msra.mxu0 0.0
    %1187 = vmatprep.subr.mxu0 0.0
    %1188 = vmatpush1.msra.mxu0 0.0
    %1189 = vmatprep.subr.mxu0 0.0
    %1190 = vmatpush1.msra.mxu0 0.0
    %1191 = vmatprep.subr.mxu0 0.0
    %1192 = vmatpush1.msra.mxu0 0.0
    %1193 = vmatprep.subr.mxu0 0.0
    %1194 = vmatpush1.msra.mxu0 0.0
    %1195 = vmatprep.subr.mxu0 0.0
    %1196 = vmatpush1.msra.mxu0 0.0
    %1197 = vmatprep.subr.mxu0 0.0
    %1198 = vmatpush1.msra.mxu0 0.0
    %1199 = vmatprep.subr.mxu0 0.0
    %1200 = vmatpush1.msra.mxu0 0.0
    %1201 = vmatprep.subr.mxu0 0.0
    %1202 = vmatpush1.msra.mxu0 0.0
    %1203 = vmatprep.subr.mxu0 0.0
    %1204 = vmatpush1.msra.mxu0 0.0
    %1205 = vmatprep.subr.mxu0 0.0
    %1206 = vmatpush1.msra.mxu0 0.0
    %1207 = vmatprep.subr.mxu0 0.0
    %1208 = vmatpush1.msra.mxu0 0.0
    %1209 = vmatprep.subr.mxu0 0.0
    %1210 = vmatpush1.msra.mxu0 0.0
    %1211 = vmatprep.subr.mxu0 0.0
    %1212 = vmatpush1.msra.mxu0 0.0
    %1213 = vmatprep.subr.mxu0 0.0
    %1214 = vmatpush1.msra.mxu0 0.0
    %1215 = vmatprep.subr.mxu0 0.0
    %1216 = vmatpush1.msra.mxu0 0.0
    %1217 = vmatprep.subr.mxu0 0.0
    %1218 = vmatpush1.msra.mxu0 0.0
    %1219 = vmatprep.subr.mxu0 0.0
    %1220 = vmatpush1.msra.mxu0 0.0
    %1221 = vmatprep.subr.mxu0 0.0
    %1222 = vmatpush1.msra.mxu0 0.0
    %1223 = vmatprep.subr.mxu0 0.0
    %1224 = vmatpush1.msra.mxu0 0.0
    %1225 = vmatprep.subr.mxu0 0.0
    %1226 = vmatpush1.msra.mxu0 0.0
    %1227 = vmatprep.subr.mxu0 0.0
    %1228 = vmatpush1.msra.mxu0 0.0
    %1229 = vmatprep.subr.mxu0 0.0
    %1230 = vmatpush1.msra.mxu0 0.0
    %1231 = vmatprep.subr.mxu0 0.0
    %1232 = vmatpush1.msra.mxu0 0.0
    %1233 = vmatprep.subr.mxu0 0.0
    %1234 = vmatpush1.msra.mxu0 0.0
    %1235 = vmatprep.subr.mxu0 0.0
    %1236 = vmatpush1.msra.mxu0 0.0
    %1237 = vmatprep.subr.mxu0 0.0
    %1238 = vmatpush1.msra.mxu0 0.0
    %1239 = vmatprep.mubr.f32.mxu0 0.0
    %1240 = vmatmul.mubr.f32.gmra.mrb[0].mxu0 %v1173
    %v1241 = vpop.f32.mrb[0].mxu0
    %v1242 = vadd.f32 0.0, %v1241
    %v1243 = vpop.f32.mrb[0].mxu0
    %1244 = vdwg.mxu0
    %1245 = vrot.lane.b32.xlu0 %v215, 56
    %v1246 = vpop.permute.xlu0 %1245
    %v1249 = vsel %vm221, %v1012, 0
    %1251 = vmatprep.subr.mxu0 0.0
    %1252 = vmatpush1.msra.mxu0 %v1246
    %1253 = vmatprep.subr.mxu0 0.0
    %1254 = vmatpush1.msra.mxu0 0.0
    %1255 = vmatprep.subr.mxu0 0.0
    %1256 = vmatpush1.msra.mxu0 0.0
    %1257 = vmatprep.subr.mxu0 0.0
    %1258 = vmatpush1.msra.mxu0 0.0
    %1259 = vmatprep.subr.mxu0 0.0
    %1260 = vmatpush1.msra.mxu0 0.0
    %1261 = vmatprep.subr.mxu0 0.0
    %1262 = vmatpush1.msra.mxu0 0.0
    %1263 = vmatprep.subr.mxu0 0.0
    %1264 = vmatpush1.msra.mxu0 0.0
    %1265 = vmatprep.subr.mxu0 0.0
    %1266 = vmatpush1.msra.mxu0 0.0
    %1267 = vmatprep.subr.mxu0 0.0
    %1268 = vmatpush1.msra.mxu0 0.0
    %1269 = vmatprep.subr.mxu0 0.0
    %1270 = vmatpush1.msra.mxu0 0.0
    %1271 = vmatprep.subr.mxu0 0.0
    %1272 = vmatpush1.msra.mxu0 0.0
    %1273 = vmatprep.subr.mxu0 0.0
    %1274 = vmatpush1.msra.mxu0 0.0
    %1275 = vmatprep.subr.mxu0 0.0
    %1276 = vmatpush1.msra.mxu0 0.0
    %1277 = vmatprep.subr.mxu0 0.0
    %1278 = vmatpush1.msra.mxu0 0.0
    %1279 = vmatprep.subr.mxu0 0.0
    %1280 = vmatpush1.msra.mxu0 0.0
    %1281 = vmatprep.subr.mxu0 0.0
    %1282 = vmatpush1.msra.mxu0 0.0
    %1283 = vmatprep.subr.mxu0 0.0
    %1284 = vmatpush1.msra.mxu0 0.0
    %1285 = vmatprep.subr.mxu0 0.0
    %1286 = vmatpush1.msra.mxu0 0.0
    %1287 = vmatprep.subr.mxu0 0.0
    %1288 = vmatpush1.msra.mxu0 0.0
    %1289 = vmatprep.subr.mxu0 0.0
    %1290 = vmatpush1.msra.mxu0 0.0
    %1291 = vmatprep.subr.mxu0 0.0
    %1292 = vmatpush1.msra.mxu0 0.0
    %1293 = vmatprep.subr.mxu0 0.0
    %1294 = vmatpush1.msra.mxu0 0.0
    %1295 = vmatprep.subr.mxu0 0.0
    %1296 = vmatpush1.msra.mxu0 0.0
    %1297 = vmatprep.subr.mxu0 0.0
    %1298 = vmatpush1.msra.mxu0 0.0
    %1299 = vmatprep.subr.mxu0 0.0
    %1300 = vmatpush1.msra.mxu0 0.0
    %1301 = vmatprep.subr.mxu0 0.0
    %1302 = vmatpush1.msra.mxu0 0.0
    %1303 = vmatprep.subr.mxu0 0.0
    %1304 = vmatpush1.msra.mxu0 0.0
    %1305 = vmatprep.subr.mxu0 0.0
    %1306 = vmatpush1.msra.mxu0 0.0
    %1307 = vmatprep.subr.mxu0 0.0
    %1308 = vmatpush1.msra.mxu0 0.0
    %1309 = vmatprep.subr.mxu0 0.0
    %1310 = vmatpush1.msra.mxu0 0.0
    %1311 = vmatprep.subr.mxu0 0.0
    %1312 = vmatpush1.msra.mxu0 0.0
    %1313 = vmatprep.subr.mxu0 0.0
    %1314 = vmatpush1.msra.mxu0 0.0
    %1315 = vmatprep.mubr.f32.mxu0 0.0
    %1316 = vmatmul.mubr.f32.gmra.mrb[0].mxu0 %v1249
    %v1317 = vpop.f32.mrb[0].mxu0
    %v1318 = vadd.f32 0.0, %v1317
    %v1319 = vpop.f32.mrb[0].mxu0
    %1320 = vdwg.mxu0
    %1321 = vrot.lane.b32.xlu0 %v210, 48
    %v1322 = vpop.permute.xlu0 %1321
    %v1325 = vsel %vm221, %v1013, 0
    %1327 = vmatprep.subr.mxu0 0.0
    %1328 = vmatpush1.msra.mxu0 %v1322
    %1329 = vmatprep.subr.mxu0 0.0
    %1330 = vmatpush1.msra.mxu0 0.0
    %1331 = vmatprep.subr.mxu0 0.0
    %1332 = vmatpush1.msra.mxu0 0.0
    %1333 = vmatprep.subr.mxu0 0.0
    %1334 = vmatpush1.msra.mxu0 0.0
    %1335 = vmatprep.subr.mxu0 0.0
    %1336 = vmatpush1.msra.mxu0 0.0
    %1337 = vmatprep.subr.mxu0 0.0
    %1338 = vmatpush1.msra.mxu0 0.0
    %1339 = vmatprep.subr.mxu0 0.0
    %1340 = vmatpush1.msra.mxu0 0.0
    %1341 = vmatprep.subr.mxu0 0.0
    %1342 = vmatpush1.msra.mxu0 0.0
    %1343 = vmatprep.subr.mxu0 0.0
    %1344 = vmatpush1.msra.mxu0 0.0
    %1345 = vmatprep.subr.mxu0 0.0
    %1346 = vmatpush1.msra.mxu0 0.0
    %1347 = vmatprep.subr.mxu0 0.0
    %1348 = vmatpush1.msra.mxu0 0.0
    %1349 = vmatprep.subr.mxu0 0.0
    %1350 = vmatpush1.msra.mxu0 0.0
    %1351 = vmatprep.subr.mxu0 0.0
    %1352 = vmatpush1.msra.mxu0 0.0
    %1353 = vmatprep.subr.mxu0 0.0
    %1354 = vmatpush1.msra.mxu0 0.0
    %1355 = vmatprep.subr.mxu0 0.0
    %1356 = vmatpush1.msra.mxu0 0.0
    %1357 = vmatprep.subr.mxu0 0.0
    %1358 = vmatpush1.msra.mxu0 0.0
    %1359 = vmatprep.subr.mxu0 0.0
    %1360 = vmatpush1.msra.mxu0 0.0
    %1361 = vmatprep.subr.mxu0 0.0
    %1362 = vmatpush1.msra.mxu0 0.0
    %1363 = vmatprep.subr.mxu0 0.0
    %1364 = vmatpush1.msra.mxu0 0.0
    %1365 = vmatprep.subr.mxu0 0.0
    %1366 = vmatpush1.msra.mxu0 0.0
    %1367 = vmatprep.subr.mxu0 0.0
    %1368 = vmatpush1.msra.mxu0 0.0
    %1369 = vmatprep.subr.mxu0 0.0
    %1370 = vmatpush1.msra.mxu0 0.0
    %1371 = vmatprep.subr.mxu0 0.0
    %1372 = vmatpush1.msra.mxu0 0.0
    %1373 = vmatprep.subr.mxu0 0.0
    %1374 = vmatpush1.msra.mxu0 0.0
    %1375 = vmatprep.subr.mxu0 0.0
    %1376 = vmatpush1.msra.mxu0 0.0
    %1377 = vmatprep.subr.mxu0 0.0
    %1378 = vmatpush1.msra.mxu0 0.0
    %1379 = vmatprep.subr.mxu0 0.0
    %1380 = vmatpush1.msra.mxu0 0.0
    %1381 = vmatprep.subr.mxu0 0.0
    %1382 = vmatpush1.msra.mxu0 0.0
    %1383 = vmatprep.subr.mxu0 0.0
    %1384 = vmatpush1.msra.mxu0 0.0
    %1385 = vmatprep.subr.mxu0 0.0
    %1386 = vmatpush1.msra.mxu0 0.0
    %1387 = vmatprep.subr.mxu0 0.0
    %1388 = vmatpush1.msra.mxu0 0.0
    %1389 = vmatprep.subr.mxu0 0.0
    %1390 = vmatpush1.msra.mxu0 0.0
    %1391 = vmatprep.mubr.f32.mxu0 0.0
    %1392 = vmatmul.mubr.f32.gmra.mrb[0].mxu0 %v1325
    %v1393 = vpop.f32.mrb[0].mxu0
    %v1394 = vadd.f32 0.0, %v1393
    %v1395 = vpop.f32.mrb[0].mxu0
    %1396 = vdwg.mxu0
    %1397 = vrot.lane.b32.xlu0 %v215, 48
    %v1398 = vpop.permute.xlu0 %1397
    %v1401 = vsel %vm221, %v1014, 0
    %1403 = vmatprep.subr.mxu0 0.0
    %1404 = vmatpush1.msra.mxu0 %v1398
    %1405 = vmatprep.subr.mxu0 0.0
    %1406 = vmatpush1.msra.mxu0 0.0
    %1407 = vmatprep.subr.mxu0 0.0
    %1408 = vmatpush1.msra.mxu0 0.0
    %1409 = vmatprep.subr.mxu0 0.0
    %1410 = vmatpush1.msra.mxu0 0.0
    %1411 = vmatprep.subr.mxu0 0.0
    %1412 = vmatpush1.msra.mxu0 0.0
    %1413 = vmatprep.subr.mxu0 0.0
    %1414 = vmatpush1.msra.mxu0 0.0
    %1415 = vmatprep.subr.mxu0 0.0
    %1416 = vmatpush1.msra.mxu0 0.0
    %1417 = vmatprep.subr.mxu0 0.0
    %1418 = vmatpush1.msra.mxu0 0.0
    %1419 = vmatprep.subr.mxu0 0.0
    %1420 = vmatpush1.msra.mxu0 0.0
    %1421 = vmatprep.subr.mxu0 0.0
    %1422 = vmatpush1.msra.mxu0 0.0
    %1423 = vmatprep.subr.mxu0 0.0
    %1424 = vmatpush1.msra.mxu0 0.0
    %1425 = vmatprep.subr.mxu0 0.0
    %1426 = vmatpush1.msra.mxu0 0.0
    %1427 = vmatprep.subr.mxu0 0.0
    %1428 = vmatpush1.msra.mxu0 0.0
    %1429 = vmatprep.subr.mxu0 0.0
    %1430 = vmatpush1.msra.mxu0 0.0
    %1431 = vmatprep.subr.mxu0 0.0
    %1432 = vmatpush1.msra.mxu0 0.0
    %1433 = vmatprep.subr.mxu0 0.0
    %1434 = vmatpush1.msra.mxu0 0.0
    %1435 = vmatprep.subr.mxu0 0.0
    %1436 = vmatpush1.msra.mxu0 0.0
    %1437 = vmatprep.subr.mxu0 0.0
    %1438 = vmatpush1.msra.mxu0 0.0
    %1439 = vmatprep.subr.mxu0 0.0
    %1440 = vmatpush1.msra.mxu0 0.0
    %1441 = vmatprep.subr.mxu0 0.0
    %1442 = vmatpush1.msra.mxu0 0.0
    %1443 = vmatprep.subr.mxu0 0.0
    %1444 = vmatpush1.msra.mxu0 0.0
    %1445 = vmatprep.subr.mxu0 0.0
    %1446 = vmatpush1.msra.mxu0 0.0
    %1447 = vmatprep.subr.mxu0 0.0
    %1448 = vmatpush1.msra.mxu0 0.0
    %1449 = vmatprep.subr.mxu0 0.0
    %1450 = vmatpush1.msra.mxu0 0.0
    %1451 = vmatprep.subr.mxu0 0.0
    %1452 = vmatpush1.msra.mxu0 0.0
    %1453 = vmatprep.subr.mxu0 0.0
    %1454 = vmatpush1.msra.mxu0 0.0
    %1455 = vmatprep.subr.mxu0 0.0
    %1456 = vmatpush1.msra.mxu0 0.0
    %1457 = vmatprep.subr.mxu0 0.0
    %1458 = vmatpush1.msra.mxu0 0.0
    %1459 = vmatprep.subr.mxu0 0.0
    %1460 = vmatpush1.msra.mxu0 0.0
    %1461 = vmatprep.subr.mxu0 0.0
    %1462 = vmatpush1.msra.mxu0 0.0
    %1463 = vmatprep.subr.mxu0 0.0
    %1464 = vmatpush1.msra.mxu0 0.0
    %1465 = vmatprep.subr.mxu0 0.0
    %1466 = vmatpush1.msra.mxu0 0.0
    %1467 = vmatprep.mubr.f32.mxu0 0.0
    %1468 = vmatmul.mubr.f32.gmra.mrb[0].mxu0 %v1401
    %v1469 = vpop.f32.mrb[0].mxu0
    %v1470 = vadd.f32 0.0, %v1469
    %v1471 = vpop.f32.mrb[0].mxu0
    %1472 = vdwg.mxu0
    %1473 = vrot.lane.b32.xlu0 %v210, 40
    %v1474 = vpop.permute.xlu0 %1473
    %v1477 = vsel %vm221, %v1015, 0
    %1479 = vmatprep.subr.mxu0 0.0
    %1480 = vmatpush1.msra.mxu0 %v1474
    %1481 = vmatprep.subr.mxu0 0.0
    %1482 = vmatpush1.msra.mxu0 0.0
    %1483 = vmatprep.subr.mxu0 0.0
    %1484 = vmatpush1.msra.mxu0 0.0
    %1485 = vmatprep.subr.mxu0 0.0
    %1486 = vmatpush1.msra.mxu0 0.0
    %1487 = vmatprep.subr.mxu0 0.0
    %1488 = vmatpush1.msra.mxu0 0.0
    %1489 = vmatprep.subr.mxu0 0.0
    %1490 = vmatpush1.msra.mxu0 0.0
    %1491 = vmatprep.subr.mxu0 0.0
    %1492 = vmatpush1.msra.mxu0 0.0
    %1493 = vmatprep.subr.mxu0 0.0
    %1494 = vmatpush1.msra.mxu0 0.0
    %1495 = vmatprep.subr.mxu0 0.0
    %1496 = vmatpush1.msra.mxu0 0.0
    %1497 = vmatprep.subr.mxu0 0.0
    %1498 = vmatpush1.msra.mxu0 0.0
    %1499 = vmatprep.subr.mxu0 0.0
    %1500 = vmatpush1.msra.mxu0 0.0
    %1501 = vmatprep.subr.mxu0 0.0
    %1502 = vmatpush1.msra.mxu0 0.0
    %1503 = vmatprep.subr.mxu0 0.0
    %1504 = vmatpush1.msra.mxu0 0.0
    %1505 = vmatprep.subr.mxu0 0.0
    %1506 = vmatpush1.msra.mxu0 0.0
    %1507 = vmatprep.subr.mxu0 0.0
    %1508 = vmatpush1.msra.mxu0 0.0
    %1509 = vmatprep.subr.mxu0 0.0
    %1510 = vmatpush1.msra.mxu0 0.0
    %1511 = vmatprep.subr.mxu0 0.0
    %1512 = vmatpush1.msra.mxu0 0.0
    %1513 = vmatprep.subr.mxu0 0.0
    %1514 = vmatpush1.msra.mxu0 0.0
    %1515 = vmatprep.subr.mxu0 0.0
    %1516 = vmatpush1.msra.mxu0 0.0
    %1517 = vmatprep.subr.mxu0 0.0
    %1518 = vmatpush1.msra.mxu0 0.0
    %1519 = vmatprep.subr.mxu0 0.0
    %1520 = vmatpush1.msra.mxu0 0.0
    %1521 = vmatprep.subr.mxu0 0.0
    %1522 = vmatpush1.msra.mxu0 0.0
    %1523 = vmatprep.subr.mxu0 0.0
    %1524 = vmatpush1.msra.mxu0 0.0
    %1525 = vmatprep.subr.mxu0 0.0
    %1526 = vmatpush1.msra.mxu0 0.0
    %1527 = vmatprep.subr.mxu0 0.0
    %1528 = vmatpush1.msra.mxu0 0.0
    %1529 = vmatprep.subr.mxu0 0.0
    %1530 = vmatpush1.msra.mxu0 0.0
    %1531 = vmatprep.subr.mxu0 0.0
    %1532 = vmatpush1.msra.mxu0 0.0
    %1533 = vmatprep.subr.mxu0 0.0
    %1534 = vmatpush1.msra.mxu0 0.0
    %1535 = vmatprep.subr.mxu0 0.0
    %1536 = vmatpush1.msra.mxu0 0.0
    %1537 = vmatprep.subr.mxu0 0.0
    %1538 = vmatpush1.msra.mxu0 0.0
    %1539 = vmatprep.subr.mxu0 0.0
    %1540 = vmatpush1.msra.mxu0 0.0
    %1541 = vmatprep.subr.mxu0 0.0
    %1542 = vmatpush1.msra.mxu0 0.0
    %1543 = vmatprep.mubr.f32.mxu0 0.0
    %1544 = vmatmul.mubr.f32.gmra.mrb[0].mxu0 %v1477
    %v1545 = vpop.f32.mrb[0].mxu0
    %v1546 = vadd.f32 0.0, %v1545
    %v1547 = vpop.f32.mrb[0].mxu0
    %1548 = vdwg.mxu0
    %1549 = vrot.lane.b32.xlu0 %v215, 40
    %v1550 = vpop.permute.xlu0 %1549
    %v1553 = vsel %vm221, %v1016, 0
    %1555 = vmatprep.subr.mxu0 0.0
    %1556 = vmatpush1.msra.mxu0 %v1550
    %1557 = vmatprep.subr.mxu0 0.0
    %1558 = vmatpush1.msra.mxu0 0.0
    %1559 = vmatprep.subr.mxu0 0.0
    %1560 = vmatpush1.msra.mxu0 0.0
    %1561 = vmatprep.subr.mxu0 0.0
    %1562 = vmatpush1.msra.mxu0 0.0
    %1563 = vmatprep.subr.mxu0 0.0
    %1564 = vmatpush1.msra.mxu0 0.0
    %1565 = vmatprep.subr.mxu0 0.0
    %1566 = vmatpush1.msra.mxu0 0.0
    %1567 = vmatprep.subr.mxu0 0.0
    %1568 = vmatpush1.msra.mxu0 0.0
    %1569 = vmatprep.subr.mxu0 0.0
    %1570 = vmatpush1.msra.mxu0 0.0
    %1571 = vmatprep.subr.mxu0 0.0
    %1572 = vmatpush1.msra.mxu0 0.0
    %1573 = vmatprep.subr.mxu0 0.0
    %1574 = vmatpush1.msra.mxu0 0.0
    %1575 = vmatprep.subr.mxu0 0.0
    %1576 = vmatpush1.msra.mxu0 0.0
    %1577 = vmatprep.subr.mxu0 0.0
    %1578 = vmatpush1.msra.mxu0 0.0
    %1579 = vmatprep.subr.mxu0 0.0
    %1580 = vmatpush1.msra.mxu0 0.0
    %1581 = vmatprep.subr.mxu0 0.0
    %1582 = vmatpush1.msra.mxu0 0.0
    %1583 = vmatprep.subr.mxu0 0.0
    %1584 = vmatpush1.msra.mxu0 0.0
    %1585 = vmatprep.subr.mxu0 0.0
    %1586 = vmatpush1.msra.mxu0 0.0
    %1587 = vmatprep.subr.mxu0 0.0
    %1588 = vmatpush1.msra.mxu0 0.0
    %1589 = vmatprep.subr.mxu0 0.0
    %1590 = vmatpush1.msra.mxu0 0.0
    %1591 = vmatprep.subr.mxu0 0.0
    %1592 = vmatpush1.msra.mxu0 0.0
    %1593 = vmatprep.subr.mxu0 0.0
    %1594 = vmatpush1.msra.mxu0 0.0
    %1595 = vmatprep.subr.mxu0 0.0
    %1596 = vmatpush1.msra.mxu0 0.0
    %1597 = vmatprep.subr.mxu0 0.0
    %1598 = vmatpush1.msra.mxu0 0.0
    %1599 = vmatprep.subr.mxu0 0.0
    %1600 = vmatpush1.msra.mxu0 0.0
    %1601 = vmatprep.subr.mxu0 0.0
    %1602 = vmatpush1.msra.mxu0 0.0
    %1603 = vmatprep.subr.mxu0 0.0
    %1604 = vmatpush1.msra.mxu0 0.0
    %1605 = vmatprep.subr.mxu0 0.0
    %1606 = vmatpush1.msra.mxu0 0.0
    %1607 = vmatprep.subr.mxu0 0.0
    %1608 = vmatpush1.msra.mxu0 0.0
    %1609 = vmatprep.subr.mxu0 0.0
    %1610 = vmatpush1.msra.mxu0 0.0
    %1611 = vmatprep.subr.mxu0 0.0
    %1612 = vmatpush1.msra.mxu0 0.0
    %1613 = vmatprep.subr.mxu0 0.0
    %1614 = vmatpush1.msra.mxu0 0.0
    %1615 = vmatprep.subr.mxu0 0.0
    %1616 = vmatpush1.msra.mxu0 0.0
    %1617 = vmatprep.subr.mxu0 0.0
    %1618 = vmatpush1.msra.mxu0 0.0
    %1619 = vmatprep.mubr.f32.mxu0 0.0
    %1620 = vmatmul.mubr.f32.gmra.mrb[0].mxu0 %v1553
    %v1621 = vpop.f32.mrb[0].mxu0
    %v1622 = vadd.f32 0.0, %v1621
    %v1623 = vpop.f32.mrb[0].mxu0
    %1624 = vdwg.mxu0
    %1627 = vrot.lane.b32.xlu0 %v1242, 8
    %v1628 = vpop.permute.xlu0 %1627
    %1629 = vrot.lane.b32.xlu0 %v1318, 8
    %v1630 = vpop.permute.xlu0 %1629
    %1635 = vrot.lane.b32.xlu0 %v1394, 16
    %v1636 = vpop.permute.xlu0 %1635
    %1637 = vrot.lane.b32.xlu0 %v1470, 16
    %v1638 = vpop.permute.xlu0 %1637
    %1643 = vrot.lane.b32.xlu0 %v1546, 24
    %v1644 = vpop.permute.xlu0 %1643
    %1645 = vrot.lane.b32.xlu0 %v1622, 24
    %v1646 = vpop.permute.xlu0 %1645
    %v1649 = vsel %vm221, %v1090, %v1628
    %v1650 = vsel %vm221, %v1166, %v1630
    %vm1651 = vcmask 130048
    %v1652 = vsel %vm1651, %v1649, %v1636
    %v1653 = vsel %vm1651, %v1650, %v1638
    %vm1654 = vcmask 195584
    %v1655 = vsel %vm1654, %v1652, %v1644
    %v1656 = vsel %vm1654, %v1653, %v1646
    %v1657 = vsel %vm75, %v1655, 0.0
    %1658 = vadd.xlane.f32.xlu0 %v1657
    %v1659 = vpop.xlane.xlu0 %1658
    %v1660 = vsel %vm75, %v1656, 0.0
    %1661 = vadd.xlane.f32.xlu0 %v1660
    %v1662 = vpop.xlane.xlu0 %1661
    %v1663 = vmul.f32 %v1659, %v82
    %v1664 = vmul.f32 %v1662, %v82
    %v1665 = vsub.f32 %v1655, %v1663
    %v1666 = vsub.f32 %v1656, %v1664
    %v1667 = vmul.f32 %v1665, %v1665
    %v1668 = vmul.f32 %v1666, %v1666
    %v1669 = vsel %vm75, %v1667, 0.0
    %1670 = vadd.xlane.f32.xlu0 %v1669
    %v1671 = vpop.xlane.xlu0 %1670
    %v1672 = vsel %vm75, %v1668, 0.0
    %1673 = vadd.xlane.f32.xlu0 %v1672
    %v1674 = vpop.xlane.xlu0 %1673
    %v1675 = vmul.f32 %v1671, %v82
    %v1676 = vmul.f32 %v1674, %v82
    %v1677 = vadd.f32 %v1675, 1e-05
    %v1678 = vadd.f32 %v1676, 1e-05
    %v1679 = vrsqrt.pop %v1677
    %v1680 = vmul.f32 %v1677, %v1679
    %vm1681 = vcmp.eq.f32.partialorder %v1677, inf
    %v1682 = vsel %vm1681, %v1677, %v1680
    %vm1683 = vcmp.eq.f32.partialorder %v1677, 0.0
    %v1684 = vand.u32 %v1677, 2147483648
    %v1685 = vsel %vm1683, %v1684, %v1682
    %v1686 = vrsqrt.pop %v1678
    %v1687 = vmul.f32 %v1678, %v1686
    %vm1688 = vcmp.eq.f32.partialorder %v1678, inf
    %v1689 = vsel %vm1688, %v1678, %v1687
    %vm1690 = vcmp.eq.f32.partialorder %v1678, 0.0
    %v1691 = vand.u32 %v1678, 2147483648
    %v1692 = vsel %vm1690, %v1691, %v1689
    %v1693 = vrcp.pop %v1685
    %v1694 = vmul.f32 %v1665, %v1693
    %v1695 = vrcp.pop %v1692
    %v1696 = vmul.f32 %v1666, %v1695
    %v1697 = vlaneseq
    %v1698 = vshrl.u32 %v1697, 7
    %v1699 = vsub.s32 2, %v1698
    %v1700 = vrot.slane %v32, %v1699
    %v1701 = vmul.f32 %v1694, %v1700
    %v1702 = vmul.f32 %v1696, %v1700
    %v1703 = vlaneseq
    %v1704 = vshrl.u32 %v1703, 7
    %v1705 = vsub.s32 3, %v1704
    %v1706 = vrot.slane %v32, %v1705
    %v1707 = vadd.f32 %v1701, %v1706
    %v1708 = vadd.f32 %v1702, %v1706
    %v1709 = vld [vmem:[%s4] sm:$0xff]
    %v1710 = vld [vmem:[%s4 + $0x8] sm:$0xff]
    %v1711 = vld [vmem:[%s4 + $0x10] sm:$0xff]
    %v1712 = vld [vmem:[%s4 + $0x18] sm:$0xff]
    %v1713 = vlaneseq
    %v1714 = vshrl.u32 %v1713, 7
    %v1715 = vsub.s32 2, %v1714
    %v1716 = vrot.slane %v34, %v1715
    %v1718 = vsel %vm75, %v1707, 0
    %v1721 = vsel %vm75, %v1708, 0
    %1723 = vmatprep.subr.mxu0 0.0
    %1724 = vmatpush1.msra.mxu0 %v1709
    %1725 = vmatprep.subr.mxu0 0.0
    %1726 = vmatpush1.msra.mxu0 %v1710
    %1727 = vmatprep.subr.mxu0 0.0
    %1728 = vmatpush1.msra.mxu0 %v1711
    %1729 = vmatprep.subr.mxu0 0.0
    %1730 = vmatpush1.msra.mxu0 %v1712
    %1731 = vmatprep.subr.mxu0 0.0
    %1732 = vmatpush1.msra.mxu0 0.0
    %1733 = vmatprep.subr.mxu0 0.0
    %1734 = vmatpush1.msra.mxu0 0.0
    %1735 = vmatprep.subr.mxu0 0.0
    %1736 = vmatpush1.msra.mxu0 0.0
    %1737 = vmatprep.subr.mxu0 0.0
    %1738 = vmatpush1.msra.mxu0 0.0
    %1739 = vmatprep.subr.mxu0 0.0
    %1740 = vmatpush1.msra.mxu0 0.0
    %1741 = vmatprep.subr.mxu0 0.0
    %1742 = vmatpush1.msra.mxu0 0.0
    %1743 = vmatprep.subr.mxu0 0.0
    %1744 = vmatpush1.msra.mxu0 0.0
    %1745 = vmatprep.subr.mxu0 0.0
    %1746 = vmatpush1.msra.mxu0 0.0
    %1747 = vmatprep.subr.mxu0 0.0
    %1748 = vmatpush1.msra.mxu0 0.0
    %1749 = vmatprep.subr.mxu0 0.0
    %1750 = vmatpush1.msra.mxu0 0.0
    %1751 = vmatprep.subr.mxu0 0.0
    %1752 = vmatpush1.msra.mxu0 0.0
    %1753 = vmatprep.subr.mxu0 0.0
    %1754 = vmatpush1.msra.mxu0 0.0
    %1755 = vmatprep.subr.mxu0 0.0
    %1756 = vmatpush1.msra.mxu0 0.0
    %1757 = vmatprep.subr.mxu0 0.0
    %1758 = vmatpush1.msra.mxu0 0.0
    %1759 = vmatprep.subr.mxu0 0.0
    %1760 = vmatpush1.msra.mxu0 0.0
    %1761 = vmatprep.subr.mxu0 0.0
    %1762 = vmatpush1.msra.mxu0 0.0
    %1763 = vmatprep.subr.mxu0 0.0
    %1764 = vmatpush1.msra.mxu0 0.0
    %1765 = vmatprep.subr.mxu0 0.0
    %1766 = vmatpush1.msra.mxu0 0.0
    %1767 = vmatprep.subr.mxu0 0.0
    %1768 = vmatpush1.msra.mxu0 0.0
    %1769 = vmatprep.subr.mxu0 0.0
    %1770 = vmatpush1.msra.mxu0 0.0
    %1771 = vmatprep.subr.mxu0 0.0
    %1772 = vmatpush1.msra.mxu0 0.0
    %1773 = vmatprep.subr.mxu0 0.0
    %1774 = vmatpush1.msra.mxu0 0.0
    %1775 = vmatprep.subr.mxu0 0.0
    %1776 = vmatpush1.msra.mxu0 0.0
    %1777 = vmatprep.subr.mxu0 0.0
    %1778 = vmatpush1.msra.mxu0 0.0
    %1779 = vmatprep.subr.mxu0 0.0
    %1780 = vmatpush1.msra.mxu0 0.0
    %1781 = vmatprep.subr.mxu0 0.0
    %1782 = vmatpush1.msra.mxu0 0.0
    %1783 = vmatprep.subr.mxu0 0.0
    %1784 = vmatpush1.msra.mxu0 0.0
    %1785 = vmatprep.subr.mxu0 0.0
    %1786 = vmatpush1.msra.mxu0 0.0
    %1787 = vmatprep.mubr.f32.mxu0 0.0
    %1788 = vmatmul.mubr.f32.gmra.mrb[0].mxu0 %v1718
    %v1789 = vpop.f32.mrb[0].mxu0
    %v1790 = vadd.f32 %v1716, %v1789
    %v1791 = vpop.f32.mrb[0].mxu0
    %1792 = vmatprep.mubr.f32.mxu0 0.0
    %1793 = vmatmul.mubr.f32.gmra.mrb[0].mxu0 %v1721
    %v1794 = vpop.f32.mrb[0].mxu0
    %v1795 = vadd.f32 %v1716, %v1794
    %v1796 = vpop.f32.mrb[0].mxu0
    %1797 = vdwg.mxu0
    %v1798 = vmul.f32 %v1790, 0.5
    %v1799 = vmul.f32 %v1795, 0.5
    %v1800 = vmul.f32 %v1790, 0.70710677
    %v1801 = vmul.f32 %v1795, 0.70710677
    %v1802 = verf.f32.pop %v1800
    %v1803 = verf.f32.pop %v1801
    %v1804 = vadd.f32 %v1802, 1.0
    %v1805 = vadd.f32 %v1803, 1.0
    %v1806 = vmul.f32 %v1798, %v1804
    %v1807 = vmul.f32 %v1799, %v1805
    %v1808 = vld [vmem:[%s5] sm:$0xff]
    %v1809 = vld [vmem:[%s5 + $0x8] sm:$0xff]
    %v1810 = vld [vmem:[%s5 + $0x10] sm:$0xff]
    %v1811 = vld [vmem:[%s5 + $0x18] sm:$0xff]
    %v1812 = vld [vmem:[%s5 + $0x20] sm:$0xff]
    %v1813 = vld [vmem:[%s5 + $0x28] sm:$0xff]
    %v1814 = vld [vmem:[%s5 + $0x30] sm:$0xff]
    %v1815 = vld [vmem:[%s5 + $0x38] sm:$0xff]
    %v1816 = vld [vmem:[%s5 + $0x40] sm:$0xff]
    %v1817 = vld [vmem:[%s5 + $0x48] sm:$0xff]
    %v1818 = vld [vmem:[%s5 + $0x50] sm:$0xff]
    %v1819 = vld [vmem:[%s5 + $0x58] sm:$0xff]
    %v1820 = vld [vmem:[%s5 + $0x60] sm:$0xff]
    %v1821 = vld [vmem:[%s5 + $0x68] sm:$0xff]
    %v1822 = vld [vmem:[%s5 + $0x70] sm:$0xff]
    %v1823 = vld [vmem:[%s5 + $0x78] sm:$0xff]
    %v1824 = vlaneseq
    %v1825 = vshrl.u32 %v1824, 7
    %v1826 = vsub.s32 4, %v1825
    %v1827 = vrot.slane %v34, %v1826
    %1828 = vmatprep.subr.mxu0 0.0
    %1829 = vmatpush1.msra.mxu0 %v1808
    %1830 = vmatprep.subr.mxu0 0.0
    %1831 = vmatpush1.msra.mxu0 %v1809
    %1832 = vmatprep.subr.mxu0 0.0
    %1833 = vmatpush1.msra.mxu0 %v1810
    %1834 = vmatprep.subr.mxu0 0.0
    %1835 = vmatpush1.msra.mxu0 %v1811
    %1836 = vmatprep.subr.mxu0 0.0
    %1837 = vmatpush1.msra.mxu0 %v1812
    %1838 = vmatprep.subr.mxu0 0.0
    %1839 = vmatpush1.msra.mxu0 %v1813
    %1840 = vmatprep.subr.mxu0 0.0
    %1841 = vmatpush1.msra.mxu0 %v1814
    %1842 = vmatprep.subr.mxu0 0.0
    %1843 = vmatpush1.msra.mxu0 %v1815
    %1844 = vmatprep.subr.mxu0 0.0
    %1845 = vmatpush1.msra.mxu0 %v1816
    %1846 = vmatprep.subr.mxu0 0.0
    %1847 = vmatpush1.msra.mxu0 %v1817
    %1848 = vmatprep.subr.mxu0 0.0
    %1849 = vmatpush1.msra.mxu0 %v1818
    %1850 = vmatprep.subr.mxu0 0.0
    %1851 = vmatpush1.msra.mxu0 %v1819
    %1852 = vmatprep.subr.mxu0 0.0
    %1853 = vmatpush1.msra.mxu0 %v1820
    %1854 = vmatprep.subr.mxu0 0.0
    %1855 = vmatpush1.msra.mxu0 %v1821
    %1856 = vmatprep.subr.mxu0 0.0
    %1857 = vmatpush1.msra.mxu0 %v1822
    %1858 = vmatprep.subr.mxu0 0.0
    %1859 = vmatpush1.msra.mxu0 %v1823
    %1860 = vmatprep.subr.mxu0 0.0
    %1861 = vmatpush1.msra.mxu0 0.0
    %1862 = vmatprep.subr.mxu0 0.0
    %1863 = vmatpush1.msra.mxu0 0.0
    %1864 = vmatprep.subr.mxu0 0.0
    %1865 = vmatpush1.msra.mxu0 0.0
    %1866 = vmatprep.subr.mxu0 0.0
    %1867 = vmatpush1.msra.mxu0 0.0
    %1868 = vmatprep.subr.mxu0 0.0
    %1869 = vmatpush1.msra.mxu0 0.0
    %1870 = vmatprep.subr.mxu0 0.0
    %1871 = vmatpush1.msra.mxu0 0.0
    %1872 = vmatprep.subr.mxu0 0.0
    %1873 = vmatpush1.msra.mxu0 0.0
    %1874 = vmatprep.subr.mxu0 0.0
    %1875 = vmatpush1.msra.mxu0 0.0
    %1876 = vmatprep.subr.mxu0 0.0
    %1877 = vmatpush1.msra.mxu0 0.0
    %1878 = vmatprep.subr.mxu0 0.0
    %1879 = vmatpush1.msra.mxu0 0.0
    %1880 = vmatprep.subr.mxu0 0.0
    %1881 = vmatpush1.msra.mxu0 0.0
    %1882 = vmatprep.subr.mxu0 0.0
    %1883 = vmatpush1.msra.mxu0 0.0
    %1884 = vmatprep.subr.mxu0 0.0
    %1885 = vmatpush1.msra.mxu0 0.0
    %1886 = vmatprep.subr.mxu0 0.0
    %1887 = vmatpush1.msra.mxu0 0.0
    %1888 = vmatprep.subr.mxu0 0.0
    %1889 = vmatpush1.msra.mxu0 0.0
    %1890 = vmatprep.subr.mxu0 0.0
    %1891 = vmatpush1.msra.mxu0 0.0
    %1892 = vmatprep.mubr.f32.mxu0 0.0
    %1893 = vmatmul.mubr.f32.gmra.mrb[0].mxu0 %v1806
    %v1894 = vpop.f32.mrb[0].mxu0
    %v1895 = vadd.f32 %v1827, %v1894
    %v1896 = vpop.f32.mrb[0].mxu0
    %1897 = vmatprep.mubr.f32.mxu0 0.0
    %1898 = vmatmul.mubr.f32.gmra.mrb[0].mxu0 %v1807
    %v1899 = vpop.f32.mrb[0].mxu0
    %v1900 = vadd.f32 %v1827, %v1899
    %v1901 = vpop.f32.mrb[0].mxu0
    %1902 = vdwg.mxu0
    %v1903 = vsel %vm75, %v1895, 0.0
    %1904 = vadd.xlane.f32.xlu0 %v1903
    %v1905 = vpop.xlane.xlu0 %1904
    %v1906 = vsel %vm75, %v1900, 0.0
    %1907 = vadd.xlane.f32.xlu0 %v1906
    %v1908 = vpop.xlane.xlu0 %1907
    %v1909 = vmul.f32 %v1905, %v82
    %v1910 = vmul.f32 %v1908, %v82
    %v1911 = vsub.f32 %v1895, %v1909
    %v1912 = vsub.f32 %v1900, %v1910
    %v1913 = vmul.f32 %v1911, %v1911
    %v1914 = vmul.f32 %v1912, %v1912
    %v1915 = vsel %vm75, %v1913, 0.0
    %1916 = vadd.xlane.f32.xlu0 %v1915
    %v1917 = vpop.xlane.xlu0 %1916
    %v1918 = vsel %vm75, %v1914, 0.0
    %1919 = vadd.xlane.f32.xlu0 %v1918
    %v1920 = vpop.xlane.xlu0 %1919
    %v1921 = vmul.f32 %v1917, %v82
    %v1922 = vmul.f32 %v1920, %v82
    %v1923 = vadd.f32 %v1921, 1e-05
    %v1924 = vadd.f32 %v1922, 1e-05
    %v1925 = vrsqrt.pop %v1923
    %v1926 = vmul.f32 %v1923, %v1925
    %vm1927 = vcmp.eq.f32.partialorder %v1923, inf
    %v1928 = vsel %vm1927, %v1923, %v1926
    %vm1929 = vcmp.eq.f32.partialorder %v1923, 0.0
    %v1930 = vand.u32 %v1923, 2147483648
    %v1931 = vsel %vm1929, %v1930, %v1928
    %v1932 = vrsqrt.pop %v1924
    %v1933 = vmul.f32 %v1924, %v1932
    %vm1934 = vcmp.eq.f32.partialorder %v1924, inf
    %v1935 = vsel %vm1934, %v1924, %v1933
    %vm1936 = vcmp.eq.f32.partialorder %v1924, 0.0
    %v1937 = vand.u32 %v1924, 2147483648
    %v1938 = vsel %vm1936, %v1937, %v1935
    %v1939 = vrcp.pop %v1931
    %v1940 = vmul.f32 %v1911, %v1939
    %v1941 = vrcp.pop %v1938
    %v1942 = vmul.f32 %v1912, %v1941
    %v1943 = vlaneseq
    %v1944 = vshrl.u32 %v1943, 7
    %v1945 = vsub.s32 4, %v1944
    %v1946 = vrot.slane %v32, %v1945
    %v1947 = vmul.f32 %v1940, %v1946
    %v1948 = vmul.f32 %v1942, %v1946
    %v1949 = vlaneseq
    %v1950 = vshrl.u32 %v1949, 7
    %v1951 = vsub.s32 5, %v1950
    %v1952 = vrot.slane %v32, %v1951
    %v1953 = vadd.f32 %v1947, %v1952
    %v1954 = vadd.f32 %v1948, %v1952
    %s1955 = scalar_lea.vmem %s3, 32
    %v1956 = vld [vmem:[%s1955] sm:$0xff]
    %v1957 = vld [vmem:[%s1955 + $0x8] sm:$0xff]
    %v1958 = vld [vmem:[%s1955 + $0x10] sm:$0xff]
    %v1959 = vld [vmem:[%s1955 + $0x18] sm:$0xff]
    %v1960 = vlaneseq
    %v1961 = vshrl.u32 %v1960, 7
    %v1962 = vsub.s32 1, %v1961
    %v1963 = vrot.slane %v34, %v1962
    %v1965 = vsel %vm75, %v1953, 0
    %v1968 = vsel %vm75, %v1954, 0
    %1970 = vmatprep.subr.mxu0 0.0
    %1971 = vmatpush1.msra.mxu0 %v1956
    %1972 = vmatprep.subr.mxu0 0.0
    %1973 = vmatpush1.msra.mxu0 %v1957
    %1974 = vmatprep.subr.mxu0 0.0
    %1975 = vmatpush1.msra.mxu0 %v1958
    %1976 = vmatprep.subr.mxu0 0.0
    %1977 = vmatpush1.msra.mxu0 %v1959
    %1978 = vmatprep.subr.mxu0 0.0
    %1979 = vmatpush1.msra.mxu0 0.0
    %1980 = vmatprep.subr.mxu0 0.0
    %1981 = vmatpush1.msra.mxu0 0.0
    %1982 = vmatprep.subr.mxu0 0.0
    %1983 = vmatpush1.msra.mxu0 0.0
    %1984 = vmatprep.subr.mxu0 0.0
    %1985 = vmatpush1.msra.mxu0 0.0
    %1986 = vmatprep.subr.mxu0 0.0
    %1987 = vmatpush1.msra.mxu0 0.0
    %1988 = vmatprep.subr.mxu0 0.0
    %1989 = vmatpush1.msra.mxu0 0.0
    %1990 = vmatprep.subr.mxu0 0.0
    %1991 = vmatpush1.msra.mxu0 0.0
    %1992 = vmatprep.subr.mxu0 0.0
    %1993 = vmatpush1.msra.mxu0 0.0
    %1994 = vmatprep.subr.mxu0 0.0
    %1995 = vmatpush1.msra.mxu0 0.0
    %1996 = vmatprep.subr.mxu0 0.0
    %1997 = vmatpush1.msra.mxu0 0.0
    %1998 = vmatprep.subr.mxu0 0.0
    %1999 = vmatpush1.msra.mxu0 0.0
    %2000 = vmatprep.subr.mxu0 0.0
    %2001 = vmatpush1.msra.mxu0 0.0
    %2002 = vmatprep.subr.mxu0 0.0
    %2003 = vmatpush1.msra.mxu0 0.0
    %2004 = vmatprep.subr.mxu0 0.0
    %2005 = vmatpush1.msra.mxu0 0.0
    %2006 = vmatprep.subr.mxu0 0.0
    %2007 = vmatpush1.msra.mxu0 0.0
    %2008 = vmatprep.subr.mxu0 0.0
    %2009 = vmatpush1.msra.mxu0 0.0
    %2010 = vmatprep.subr.mxu0 0.0
    %2011 = vmatpush1.msra.mxu0 0.0
    %2012 = vmatprep.subr.mxu0 0.0
    %2013 = vmatpush1.msra.mxu0 0.0
    %2014 = vmatprep.subr.mxu0 0.0
    %2015 = vmatpush1.msra.mxu0 0.0
    %2016 = vmatprep.subr.mxu0 0.0
    %2017 = vmatpush1.msra.mxu0 0.0
    %2018 = vmatprep.subr.mxu0 0.0
    %2019 = vmatpush1.msra.mxu0 0.0
    %2020 = vmatprep.subr.mxu0 0.0
    %2021 = vmatpush1.msra.mxu0 0.0
    %2022 = vmatprep.subr.mxu0 0.0
    %2023 = vmatpush1.msra.mxu0 0.0
    %2024 = vmatprep.subr.mxu0 0.0
    %2025 = vmatpush1.msra.mxu0 0.0
    %2026 = vmatprep.subr.mxu0 0.0
    %2027 = vmatpush1.msra.mxu0 0.0
    %2028 = vmatprep.subr.mxu0 0.0
    %2029 = vmatpush1.msra.mxu0 0.0
    %2030 = vmatprep.subr.mxu0 0.0
    %2031 = vmatpush1.msra.mxu0 0.0
    %2032 = vmatprep.subr.mxu0 0.0
    %2033 = vmatpush1.msra.mxu0 0.0
    %2034 = vmatprep.mubr.f32.mxu0 0.0
    %2035 = vmatmul.mubr.f32.gmra.mrb[0].mxu0 %v1965
    %v2036 = vpop.f32.mrb[0].mxu0
    %v2037 = vadd.f32 %v1963, %v2036
    %v2038 = vpop.f32.mrb[0].mxu0
    %2039 = vmatprep.mubr.f32.mxu0 0.0
    %2040 = vmatmul.mubr.f32.gmra.mrb[0].mxu0 %v1968
    %v2041 = vpop.f32.mrb[0].mxu0
    %v2042 = vadd.f32 %v1963, %v2041
    %v2043 = vpop.f32.mrb[0].mxu0
    %2044 = vdwg.mxu0
    %2046 = vrot.lane.b32.xlu0 %v2037, 96
    %v2047 = vpop.permute.xlu0 %2046
    %v2048 = vsel %vm221, %v2037, 0
    %v2050 = vsel %vm221, %v2047, 0
    %2052 = vmatprep.subr.mxu0 0.0
    %2053 = vmatpush1.xpose.msra.mxu0 %v2050
    %2054 = vmatprep.subr.mxu0 0.0
    %2055 = vmatpush1.xpose.msra.mxu0 0.0
    %2056 = vmatprep.subr.mxu0 0.0
    %2057 = vmatpush1.xpose.msra.mxu0 0.0
    %2058 = vmatprep.subr.mxu0 0.0
    %2059 = vmatpush1.xpose.msra.mxu0 0.0
    %2060 = vmatprep.subr.mxu0 0.0
    %2061 = vmatpush1.xpose.msra.mxu0 0.0
    %2062 = vmatprep.subr.mxu0 0.0
    %2063 = vmatpush1.xpose.msra.mxu0 0.0
    %2064 = vmatprep.subr.mxu0 0.0
    %2065 = vmatpush1.xpose.msra.mxu0 0.0
    %2066 = vmatprep.subr.mxu0 0.0
    %2067 = vmatpush1.xpose.msra.mxu0 0.0
    %2068 = vmatprep.subr.mxu0 0.0
    %2069 = vmatpush1.xpose.msra.mxu0 0.0
    %2070 = vmatprep.subr.mxu0 0.0
    %2071 = vmatpush1.xpose.msra.mxu0 0.0
    %2072 = vmatprep.subr.mxu0 0.0
    %2073 = vmatpush1.xpose.msra.mxu0 0.0
    %2074 = vmatprep.subr.mxu0 0.0
    %2075 = vmatpush1.xpose.msra.mxu0 0.0
    %2076 = vmatprep.subr.mxu0 0.0
    %2077 = vmatpush1.xpose.msra.mxu0 0.0
    %2078 = vmatprep.subr.mxu0 0.0
    %2079 = vmatpush1.xpose.msra.mxu0 0.0
    %2080 = vmatprep.subr.mxu0 0.0
    %2081 = vmatpush1.xpose.msra.mxu0 0.0
    %2082 = vmatprep.subr.mxu0 0.0
    %2083 = vmatpush1.xpose.msra.mxu0 0.0
    %2084 = vmatprep.subr.mxu0 0.0
    %2085 = vmatpush1.xpose.msra.mxu0 0.0
    %2086 = vmatprep.subr.mxu0 0.0
    %2087 = vmatpush1.xpose.msra.mxu0 0.0
    %2088 = vmatprep.subr.mxu0 0.0
    %2089 = vmatpush1.xpose.msra.mxu0 0.0
    %2090 = vmatprep.subr.mxu0 0.0
    %2091 = vmatpush1.xpose.msra.mxu0 0.0
    %2092 = vmatprep.subr.mxu0 0.0
    %2093 = vmatpush1.xpose.msra.mxu0 0.0
    %2094 = vmatprep.subr.mxu0 0.0
    %2095 = vmatpush1.xpose.msra.mxu0 0.0
    %2096 = vmatprep.subr.mxu0 0.0
    %2097 = vmatpush1.xpose.msra.mxu0 0.0
    %2098 = vmatprep.subr.mxu0 0.0
    %2099 = vmatpush1.xpose.msra.mxu0 0.0
    %2100 = vmatprep.subr.mxu0 0.0
    %2101 = vmatpush1.xpose.msra.mxu0 0.0
    %2102 = vmatprep.subr.mxu0 0.0
    %2103 = vmatpush1.xpose.msra.mxu0 0.0
    %2104 = vmatprep.subr.mxu0 0.0
    %2105 = vmatpush1.xpose.msra.mxu0 0.0
    %2106 = vmatprep.subr.mxu0 0.0
    %2107 = vmatpush1.xpose.msra.mxu0 0.0
    %2108 = vmatprep.subr.mxu0 0.0
    %2109 = vmatpush1.xpose.msra.mxu0 0.0
    %2110 = vmatprep.subr.mxu0 0.0
    %2111 = vmatpush1.xpose.msra.mxu0 0.0
    %2112 = vmatprep.subr.mxu0 0.0
    %2113 = vmatpush1.xpose.msra.mxu0 0.0
    %2114 = vmatprep.subr.mxu0 0.0
    %2115 = vmatpush1.xpose.msra.mxu0 0.0
    %2116 = vmatprep.mubr.f32.mxu0 0.0
    %2117 = vmatmul.mubr.f32.gmra.mrb[0].mxu0 %v2048
    %v2118 = vpop.f32.mrb[0].mxu0
    %v2119 = vadd.f32 0.0, %v2118
    %v2120 = vpop.f32.mrb[0].mxu0
    %2121 = vdwg.mxu0
    %2123 = vrot.lane.b32.xlu0 %v2042, 96
    %v2124 = vpop.permute.xlu0 %2123
    %v2125 = vsel %vm221, %v2042, 0
    %v2127 = vsel %vm221, %v2124, 0
    %2129 = vmatprep.subr.mxu0 0.0
    %2130 = vmatpush1.xpose.msra.mxu0 %v2127
    %2131 = vmatprep.subr.mxu0 0.0
    %2132 = vmatpush1.xpose.msra.mxu0 0.0
    %2133 = vmatprep.subr.mxu0 0.0
    %2134 = vmatpush1.xpose.msra.mxu0 0.0
    %2135 = vmatprep.subr.mxu0 0.0
    %2136 = vmatpush1.xpose.msra.mxu0 0.0
    %2137 = vmatprep.subr.mxu0 0.0
    %2138 = vmatpush1.xpose.msra.mxu0 0.0
    %2139 = vmatprep.subr.mxu0 0.0
    %2140 = vmatpush1.xpose.msra.mxu0 0.0
    %2141 = vmatprep.subr.mxu0 0.0
    %2142 = vmatpush1.xpose.msra.mxu0 0.0
    %2143 = vmatprep.subr.mxu0 0.0
    %2144 = vmatpush1.xpose.msra.mxu0 0.0
    %2145 = vmatprep.subr.mxu0 0.0
    %2146 = vmatpush1.xpose.msra.mxu0 0.0
    %2147 = vmatprep.subr.mxu0 0.0
    %2148 = vmatpush1.xpose.msra.mxu0 0.0
    %2149 = vmatprep.subr.mxu0 0.0
    %2150 = vmatpush1.xpose.msra.mxu0 0.0
    %2151 = vmatprep.subr.mxu0 0.0
    %2152 = vmatpush1.xpose.msra.mxu0 0.0
    %2153 = vmatprep.subr.mxu0 0.0
    %2154 = vmatpush1.xpose.msra.mxu0 0.0
    %2155 = vmatprep.subr.mxu0 0.0
    %2156 = vmatpush1.xpose.msra.mxu0 0.0
    %2157 = vmatprep.subr.mxu0 0.0
    %2158 = vmatpush1.xpose.msra.mxu0 0.0
    %2159 = vmatprep.subr.mxu0 0.0
    %2160 = vmatpush1.xpose.msra.mxu0 0.0
    %2161 = vmatprep.subr.mxu0 0.0
    %2162 = vmatpush1.xpose.msra.mxu0 0.0
    %2163 = vmatprep.subr.mxu0 0.0
    %2164 = vmatpush1.xpose.msra.mxu0 0.0
    %2165 = vmatprep.subr.mxu0 0.0
    %2166 = vmatpush1.xpose.msra.mxu0 0.0
    %2167 = vmatprep.subr.mxu0 0.0
    %2168 = vmatpush1.xpose.msra.mxu0 0.0
    %2169 = vmatprep.subr.mxu0 0.0
    %2170 = vmatpush1.xpose.msra.mxu0 0.0
    %2171 = vmatprep.subr.mxu0 0.0
    %2172 = vmatpush1.xpose.msra.mxu0 0.0
    %2173 = vmatprep.subr.mxu0 0.0
    %2174 = vmatpush1.xpose.msra.mxu0 0.0
    %2175 = vmatprep.subr.mxu0 0.0
    %2176 = vmatpush1.xpose.msra.mxu0 0.0
    %2177 = vmatprep.subr.mxu0 0.0
    %2178 = vmatpush1.xpose.msra.mxu0 0.0
    %2179 = vmatprep.subr.mxu0 0.0
    %2180 = vmatpush1.xpose.msra.mxu0 0.0
    %2181 = vmatprep.subr.mxu0 0.0
    %2182 = vmatpush1.xpose.msra.mxu0 0.0
    %2183 = vmatprep.subr.mxu0 0.0
    %2184 = vmatpush1.xpose.msra.mxu0 0.0
    %2185 = vmatprep.subr.mxu0 0.0
    %2186 = vmatpush1.xpose.msra.mxu0 0.0
    %2187 = vmatprep.subr.mxu0 0.0
    %2188 = vmatpush1.xpose.msra.mxu0 0.0
    %2189 = vmatprep.subr.mxu0 0.0
    %2190 = vmatpush1.xpose.msra.mxu0 0.0
    %2191 = vmatprep.subr.mxu0 0.0
    %2192 = vmatpush1.xpose.msra.mxu0 0.0
    %2193 = vmatprep.mubr.f32.mxu0 0.0
    %2194 = vmatmul.mubr.f32.gmra.mrb[0].mxu0 %v2125
    %v2195 = vpop.f32.mrb[0].mxu0
    %v2196 = vadd.f32 0.0, %v2195
    %v2197 = vpop.f32.mrb[0].mxu0
    %2198 = vdwg.mxu0
    %2199 = vrot.lane.b32.xlu0 %v2037, 120
    %v2200 = vpop.permute.xlu0 %2199
    %2201 = vrot.lane.b32.xlu0 %v2037, 88
    %v2202 = vpop.permute.xlu0 %2201
    %v2203 = vsel %vm221, %v2200, 0
    %v2205 = vsel %vm221, %v2202, 0
    %2207 = vmatprep.subr.mxu0 0.0
    %2208 = vmatpush1.xpose.msra.mxu0 %v2205
    %2209 = vmatprep.subr.mxu0 0.0
    %2210 = vmatpush1.xpose.msra.mxu0 0.0
    %2211 = vmatprep.subr.mxu0 0.0
    %2212 = vmatpush1.xpose.msra.mxu0 0.0
    %2213 = vmatprep.subr.mxu0 0.0
    %2214 = vmatpush1.xpose.msra.mxu0 0.0
    %2215 = vmatprep.subr.mxu0 0.0
    %2216 = vmatpush1.xpose.msra.mxu0 0.0
    %2217 = vmatprep.subr.mxu0 0.0
    %2218 = vmatpush1.xpose.msra.mxu0 0.0
    %2219 = vmatprep.subr.mxu0 0.0
    %2220 = vmatpush1.xpose.msra.mxu0 0.0
    %2221 = vmatprep.subr.mxu0 0.0
    %2222 = vmatpush1.xpose.msra.mxu0 0.0
    %2223 = vmatprep.subr.mxu0 0.0
    %2224 = vmatpush1.xpose.msra.mxu0 0.0
    %2225 = vmatprep.subr.mxu0 0.0
    %2226 = vmatpush1.xpose.msra.mxu0 0.0
    %2227 = vmatprep.subr.mxu0 0.0
    %2228 = vmatpush1.xpose.msra.mxu0 0.0
    %2229 = vmatprep.subr.mxu0 0.0
    %2230 = vmatpush1.xpose.msra.mxu0 0.0
    %2231 = vmatprep.subr.mxu0 0.0
    %2232 = vmatpush1.xpose.msra.mxu0 0.0
    %2233 = vmatprep.subr.mxu0 0.0
    %2234 = vmatpush1.xpose.msra.mxu0 0.0
    %2235 = vmatprep.subr.mxu0 0.0
    %2236 = vmatpush1.xpose.msra.mxu0 0.0
    %2237 = vmatprep.subr.mxu0 0.0
    %2238 = vmatpush1.xpose.msra.mxu0 0.0
    %2239 = vmatprep.subr.mxu0 0.0
    %2240 = vmatpush1.xpose.msra.mxu0 0.0
    %2241 = vmatprep.subr.mxu0 0.0
    %2242 = vmatpush1.xpose.msra.mxu0 0.0
    %2243 = vmatprep.subr.mxu0 0.0
    %2244 = vmatpush1.xpose.msra.mxu0 0.0
    %2245 = vmatprep.subr.mxu0 0.0
    %2246 = vmatpush1.xpose.msra.mxu0 0.0
    %2247 = vmatprep.subr.mxu0 0.0
    %2248 = vmatpush1.xpose.msra.mxu0 0.0
    %2249 = vmatprep.subr.mxu0 0.0
    %2250 = vmatpush1.xpose.msra.mxu0 0.0
    %2251 = vmatprep.subr.mxu0 0.0
    %2252 = vmatpush1.xpose.msra.mxu0 0.0
    %2253 = vmatprep.subr.mxu0 0.0
    %2254 = vmatpush1.xpose.msra.mxu0 0.0
    %2255 = vmatprep.subr.mxu0 0.0
    %2256 = vmatpush1.xpose.msra.mxu0 0.0
    %2257 = vmatprep.subr.mxu0 0.0
    %2258 = vmatpush1.xpose.msra.mxu0 0.0
    %2259 = vmatprep.subr.mxu0 0.0
    %2260 = vmatpush1.xpose.msra.mxu0 0.0
    %2261 = vmatprep.subr.mxu0 0.0
    %2262 = vmatpush1.xpose.msra.mxu0 0.0
    %2263 = vmatprep.subr.mxu0 0.0
    %2264 = vmatpush1.xpose.msra.mxu0 0.0
    %2265 = vmatprep.subr.mxu0 0.0
    %2266 = vmatpush1.xpose.msra.mxu0 0.0
    %2267 = vmatprep.subr.mxu0 0.0
    %2268 = vmatpush1.xpose.msra.mxu0 0.0
    %2269 = vmatprep.subr.mxu0 0.0
    %2270 = vmatpush1.xpose.msra.mxu0 0.0
    %2271 = vmatprep.mubr.f32.mxu0 0.0
    %2272 = vmatmul.mubr.f32.gmra.mrb[0].mxu0 %v2203
    %v2273 = vpop.f32.mrb[0].mxu0
    %v2274 = vadd.f32 0.0, %v2273
    %v2275 = vpop.f32.mrb[0].mxu0
    %2276 = vdwg.mxu0
    %2277 = vrot.lane.b32.xlu0 %v2042, 120
    %v2278 = vpop.permute.xlu0 %2277
    %2279 = vrot.lane.b32.xlu0 %v2042, 88
    %v2280 = vpop.permute.xlu0 %2279
    %v2281 = vsel %vm221, %v2278, 0
    %v2283 = vsel %vm221, %v2280, 0
    %2285 = vmatprep.subr.mxu0 0.0
    %2286 = vmatpush1.xpose.msra.mxu0 %v2283
    %2287 = vmatprep.subr.mxu0 0.0
    %2288 = vmatpush1.xpose.msra.mxu0 0.0
    %2289 = vmatprep.subr.mxu0 0.0
    %2290 = vmatpush1.xpose.msra.mxu0 0.0
    %2291 = vmatprep.subr.mxu0 0.0
    %2292 = vmatpush1.xpose.msra.mxu0 0.0
    %2293 = vmatprep.subr.mxu0 0.0
    %2294 = vmatpush1.xpose.msra.mxu0 0.0
    %2295 = vmatprep.subr.mxu0 0.0
    %2296 = vmatpush1.xpose.msra.mxu0 0.0
    %2297 = vmatprep.subr.mxu0 0.0
    %2298 = vmatpush1.xpose.msra.mxu0 0.0
    %2299 = vmatprep.subr.mxu0 0.0
    %2300 = vmatpush1.xpose.msra.mxu0 0.0
    %2301 = vmatprep.subr.mxu0 0.0
    %2302 = vmatpush1.xpose.msra.mxu0 0.0
    %2303 = vmatprep.subr.mxu0 0.0
    %2304 = vmatpush1.xpose.msra.mxu0 0.0
    %2305 = vmatprep.subr.mxu0 0.0
    %2306 = vmatpush1.xpose.msra.mxu0 0.0
    %2307 = vmatprep.subr.mxu0 0.0
    %2308 = vmatpush1.xpose.msra.mxu0 0.0
    %2309 = vmatprep.subr.mxu0 0.0
    %2310 = vmatpush1.xpose.msra.mxu0 0.0
    %2311 = vmatprep.subr.mxu0 0.0
    %2312 = vmatpush1.xpose.msra.mxu0 0.0
    %2313 = vmatprep.subr.mxu0 0.0
    %2314 = vmatpush1.xpose.msra.mxu0 0.0
    %2315 = vmatprep.subr.mxu0 0.0
    %2316 = vmatpush1.xpose.msra.mxu0 0.0
    %2317 = vmatprep.subr.mxu0 0.0
    %2318 = vmatpush1.xpose.msra.mxu0 0.0
    %2319 = vmatprep.subr.mxu0 0.0
    %2320 = vmatpush1.xpose.msra.mxu0 0.0
    %2321 = vmatprep.subr.mxu0 0.0
    %2322 = vmatpush1.xpose.msra.mxu0 0.0
    %2323 = vmatprep.subr.mxu0 0.0
    %2324 = vmatpush1.xpose.msra.mxu0 0.0
    %2325 = vmatprep.subr.mxu0 0.0
    %2326 = vmatpush1.xpose.msra.mxu0 0.0
    %2327 = vmatprep.subr.mxu0 0.0
    %2328 = vmatpush1.xpose.msra.mxu0 0.0
    %2329 = vmatprep.subr.mxu0 0.0
    %2330 = vmatpush1.xpose.msra.mxu0 0.0
    %2331 = vmatprep.subr.mxu0 0.0
    %2332 = vmatpush1.xpose.msra.mxu0 0.0
    %2333 = vmatprep.subr.mxu0 0.0
    %2334 = vmatpush1.xpose.msra.mxu0 0.0
    %2335 = vmatprep.subr.mxu0 0.0
    %2336 = vmatpush1.xpose.msra.mxu0 0.0
    %2337 = vmatprep.subr.mxu0 0.0
    %2338 = vmatpush1.xpose.msra.mxu0 0.0
    %2339 = vmatprep.subr.mxu0 0.0
    %2340 = vmatpush1.xpose.msra.mxu0 0.0
    %2341 = vmatprep.subr.mxu0 0.0
    %2342 = vmatpush1.xpose.msra.mxu0 0.0
    %2343 = vmatprep.subr.mxu0 0.0
    %2344 = vmatpush1.xpose.msra.mxu0 0.0
    %2345 = vmatprep.subr.mxu0 0.0
    %2346 = vmatpush1.xpose.msra.mxu0 0.0
    %2347 = vmatprep.subr.mxu0 0.0
    %2348 = vmatpush1.xpose.msra.mxu0 0.0
    %2349 = vmatprep.mubr.f32.mxu0 0.0
    %2350 = vmatmul.mubr.f32.gmra.mrb[0].mxu0 %v2281
    %v2351 = vpop.f32.mrb[0].mxu0
    %v2352 = vadd.f32 0.0, %v2351
    %v2353 = vpop.f32.mrb[0].mxu0
    %2354 = vdwg.mxu0
    %2355 = vrot.lane.b32.xlu0 %v2037, 112
    %v2356 = vpop.permute.xlu0 %2355
    %2357 = vrot.lane.b32.xlu0 %v2037, 80
    %v2358 = vpop.permute.xlu0 %2357
    %v2359 = vsel %vm221, %v2356, 0
    %v2361 = vsel %vm221, %v2358, 0
    %2363 = vmatprep.subr.mxu0 0.0
    %2364 = vmatpush1.xpose.msra.mxu0 %v2361
    %2365 = vmatprep.subr.mxu0 0.0
    %2366 = vmatpush1.xpose.msra.mxu0 0.0
    %2367 = vmatprep.subr.mxu0 0.0
    %2368 = vmatpush1.xpose.msra.mxu0 0.0
    %2369 = vmatprep.subr.mxu0 0.0
    %2370 = vmatpush1.xpose.msra.mxu0 0.0
    %2371 = vmatprep.subr.mxu0 0.0
    %2372 = vmatpush1.xpose.msra.mxu0 0.0
    %2373 = vmatprep.subr.mxu0 0.0
    %2374 = vmatpush1.xpose.msra.mxu0 0.0
    %2375 = vmatprep.subr.mxu0 0.0
    %2376 = vmatpush1.xpose.msra.mxu0 0.0
    %2377 = vmatprep.subr.mxu0 0.0
    %2378 = vmatpush1.xpose.msra.mxu0 0.0
    %2379 = vmatprep.subr.mxu0 0.0
    %2380 = vmatpush1.xpose.msra.mxu0 0.0
    %2381 = vmatprep.subr.mxu0 0.0
    %2382 = vmatpush1.xpose.msra.mxu0 0.0
    %2383 = vmatprep.subr.mxu0 0.0
    %2384 = vmatpush1.xpose.msra.mxu0 0.0
    %2385 = vmatprep.subr.mxu0 0.0
    %2386 = vmatpush1.xpose.msra.mxu0 0.0
    %2387 = vmatprep.subr.mxu0 0.0
    %2388 = vmatpush1.xpose.msra.mxu0 0.0
    %2389 = vmatprep.subr.mxu0 0.0
    %2390 = vmatpush1.xpose.msra.mxu0 0.0
    %2391 = vmatprep.subr.mxu0 0.0
    %2392 = vmatpush1.xpose.msra.mxu0 0.0
    %2393 = vmatprep.subr.mxu0 0.0
    %2394 = vmatpush1.xpose.msra.mxu0 0.0
    %2395 = vmatprep.subr.mxu0 0.0
    %2396 = vmatpush1.xpose.msra.mxu0 0.0
    %2397 = vmatprep.subr.mxu0 0.0
    %2398 = vmatpush1.xpose.msra.mxu0 0.0
    %2399 = vmatprep.subr.mxu0 0.0
    %2400 = vmatpush1.xpose.msra.mxu0 0.0
    %2401 = vmatprep.subr.mxu0 0.0
    %2402 = vmatpush1.xpose.msra.mxu0 0.0
    %2403 = vmatprep.subr.mxu0 0.0
    %2404 = vmatpush1.xpose.msra.mxu0 0.0
    %2405 = vmatprep.subr.mxu0 0.0
    %2406 = vmatpush1.xpose.msra.mxu0 0.0
    %2407 = vmatprep.subr.mxu0 0.0
    %2408 = vmatpush1.xpose.msra.mxu0 0.0
    %2409 = vmatprep.subr.mxu0 0.0
    %2410 = vmatpush1.xpose.msra.mxu0 0.0
    %2411 = vmatprep.subr.mxu0 0.0
    %2412 = vmatpush1.xpose.msra.mxu0 0.0
    %2413 = vmatprep.subr.mxu0 0.0
    %2414 = vmatpush1.xpose.msra.mxu0 0.0
    %2415 = vmatprep.subr.mxu0 0.0
    %2416 = vmatpush1.xpose.msra.mxu0 0.0
    %2417 = vmatprep.subr.mxu0 0.0
    %2418 = vmatpush1.xpose.msra.mxu0 0.0
    %2419 = vmatprep.subr.mxu0 0.0
    %2420 = vmatpush1.xpose.msra.mxu0 0.0
    %2421 = vmatprep.subr.mxu0 0.0
    %2422 = vmatpush1.xpose.msra.mxu0 0.0
    %2423 = vmatprep.subr.mxu0 0.0
    %2424 = vmatpush1.xpose.msra.mxu0 0.0
    %2425 = vmatprep.subr.mxu0 0.0
    %2426 = vmatpush1.xpose.msra.mxu0 0.0
    %2427 = vmatprep.mubr.f32.mxu0 0.0
    %2428 = vmatmul.mubr.f32.gmra.mrb[0].mxu0 %v2359
    %v2429 = vpop.f32.mrb[0].mxu0
    %v2430 = vadd.f32 0.0, %v2429
    %v2431 = vpop.f32.mrb[0].mxu0
    %2432 = vdwg.mxu0
    %2433 = vrot.lane.b32.xlu0 %v2042, 112
    %v2434 = vpop.permute.xlu0 %2433
    %2435 = vrot.lane.b32.xlu0 %v2042, 80
    %v2436 = vpop.permute.xlu0 %2435
    %v2437 = vsel %vm221, %v2434, 0
    %v2439 = vsel %vm221, %v2436, 0
    %2441 = vmatprep.subr.mxu0 0.0
    %2442 = vmatpush1.xpose.msra.mxu0 %v2439
    %2443 = vmatprep.subr.mxu0 0.0
    %2444 = vmatpush1.xpose.msra.mxu0 0.0
    %2445 = vmatprep.subr.mxu0 0.0
    %2446 = vmatpush1.xpose.msra.mxu0 0.0
    %2447 = vmatprep.subr.mxu0 0.0
    %2448 = vmatpush1.xpose.msra.mxu0 0.0
    %2449 = vmatprep.subr.mxu0 0.0
    %2450 = vmatpush1.xpose.msra.mxu0 0.0
    %2451 = vmatprep.subr.mxu0 0.0
    %2452 = vmatpush1.xpose.msra.mxu0 0.0
    %2453 = vmatprep.subr.mxu0 0.0
    %2454 = vmatpush1.xpose.msra.mxu0 0.0
    %2455 = vmatprep.subr.mxu0 0.0
    %2456 = vmatpush1.xpose.msra.mxu0 0.0
    %2457 = vmatprep.subr.mxu0 0.0
    %2458 = vmatpush1.xpose.msra.mxu0 0.0
    %2459 = vmatprep.subr.mxu0 0.0
    %2460 = vmatpush1.xpose.msra.mxu0 0.0
    %2461 = vmatprep.subr.mxu0 0.0
    %2462 = vmatpush1.xpose.msra.mxu0 0.0
    %2463 = vmatprep.subr.mxu0 0.0
    %2464 = vmatpush1.xpose.msra.mxu0 0.0
    %2465 = vmatprep.subr.mxu0 0.0
    %2466 = vmatpush1.xpose.msra.mxu0 0.0
    %2467 = vmatprep.subr.mxu0 0.0
    %2468 = vmatpush1.xpose.msra.mxu0 0.0
    %2469 = vmatprep.subr.mxu0 0.0
    %2470 = vmatpush1.xpose.msra.mxu0 0.0
    %2471 = vmatprep.subr.mxu0 0.0
    %2472 = vmatpush1.xpose.msra.mxu0 0.0
    %2473 = vmatprep.subr.mxu0 0.0
    %2474 = vmatpush1.xpose.msra.mxu0 0.0
    %2475 = vmatprep.subr.mxu0 0.0
    %2476 = vmatpush1.xpose.msra.mxu0 0.0
    %2477 = vmatprep.subr.mxu0 0.0
    %2478 = vmatpush1.xpose.msra.mxu0 0.0
    %2479 = vmatprep.subr.mxu0 0.0
    %2480 = vmatpush1.xpose.msra.mxu0 0.0
    %2481 = vmatprep.subr.mxu0 0.0
    %2482 = vmatpush1.xpose.msra.mxu0 0.0
    %2483 = vmatprep.subr.mxu0 0.0
    %2484 = vmatpush1.xpose.msra.mxu0 0.0
    %2485 = vmatprep.subr.mxu0 0.0
    %2486 = vmatpush1.xpose.msra.mxu0 0.0
    %2487 = vmatprep.subr.mxu0 0.0
    %2488 = vmatpush1.xpose.msra.mxu0 0.0
    %2489 = vmatprep.subr.mxu0 0.0
    %2490 = vmatpush1.xpose.msra.mxu0 0.0
    %2491 = vmatprep.subr.mxu0 0.0
    %2492 = vmatpush1.xpose.msra.mxu0 0.0
    %2493 = vmatprep.subr.mxu0 0.0
    %2494 = vmatpush1.xpose.msra.mxu0 0.0
    %2495 = vmatprep.subr.mxu0 0.0
    %2496 = vmatpush1.xpose.msra.mxu0 0.0
    %2497 = vmatprep.subr.mxu0 0.0
    %2498 = vmatpush1.xpose.msra.mxu0 0.0
    %2499 = vmatprep.subr.mxu0 0.0
    %2500 = vmatpush1.xpose.msra.mxu0 0.0
    %2501 = vmatprep.subr.mxu0 0.0
    %2502 = vmatpush1.xpose.msra.mxu0 0.0
    %2503 = vmatprep.subr.mxu0 0.0
    %2504 = vmatpush1.xpose.msra.mxu0 0.0
    %2505 = vmatprep.mubr.f32.mxu0 0.0
    %2506 = vmatmul.mubr.f32.gmra.mrb[0].mxu0 %v2437
    %v2507 = vpop.f32.mrb[0].mxu0
    %v2508 = vadd.f32 0.0, %v2507
    %v2509 = vpop.f32.mrb[0].mxu0
    %2510 = vdwg.mxu0
    %2511 = vrot.lane.b32.xlu0 %v2037, 104
    %v2512 = vpop.permute.xlu0 %2511
    %2513 = vrot.lane.b32.xlu0 %v2037, 72
    %v2514 = vpop.permute.xlu0 %2513
    %v2515 = vsel %vm221, %v2512, 0
    %v2517 = vsel %vm221, %v2514, 0
    %2519 = vmatprep.subr.mxu0 0.0
    %2520 = vmatpush1.xpose.msra.mxu0 %v2517
    %2521 = vmatprep.subr.mxu0 0.0
    %2522 = vmatpush1.xpose.msra.mxu0 0.0
    %2523 = vmatprep.subr.mxu0 0.0
    %2524 = vmatpush1.xpose.msra.mxu0 0.0
    %2525 = vmatprep.subr.mxu0 0.0
    %2526 = vmatpush1.xpose.msra.mxu0 0.0
    %2527 = vmatprep.subr.mxu0 0.0
    %2528 = vmatpush1.xpose.msra.mxu0 0.0
    %2529 = vmatprep.subr.mxu0 0.0
    %2530 = vmatpush1.xpose.msra.mxu0 0.0
    %2531 = vmatprep.subr.mxu0 0.0
    %2532 = vmatpush1.xpose.msra.mxu0 0.0
    %2533 = vmatprep.subr.mxu0 0.0
    %2534 = vmatpush1.xpose.msra.mxu0 0.0
    %2535 = vmatprep.subr.mxu0 0.0
    %2536 = vmatpush1.xpose.msra.mxu0 0.0
    %2537 = vmatprep.subr.mxu0 0.0
    %2538 = vmatpush1.xpose.msra.mxu0 0.0
    %2539 = vmatprep.subr.mxu0 0.0
    %2540 = vmatpush1.xpose.msra.mxu0 0.0
    %2541 = vmatprep.subr.mxu0 0.0
    %2542 = vmatpush1.xpose.msra.mxu0 0.0
    %2543 = vmatprep.subr.mxu0 0.0
    %2544 = vmatpush1.xpose.msra.mxu0 0.0
    %2545 = vmatprep.subr.mxu0 0.0
    %2546 = vmatpush1.xpose.msra.mxu0 0.0
    %2547 = vmatprep.subr.mxu0 0.0
    %2548 = vmatpush1.xpose.msra.mxu0 0.0
    %2549 = vmatprep.subr.mxu0 0.0
    %2550 = vmatpush1.xpose.msra.mxu0 0.0
    %2551 = vmatprep.subr.mxu0 0.0
    %2552 = vmatpush1.xpose.msra.mxu0 0.0
    %2553 = vmatprep.subr.mxu0 0.0
    %2554 = vmatpush1.xpose.msra.mxu0 0.0
    %2555 = vmatprep.subr.mxu0 0.0
    %2556 = vmatpush1.xpose.msra.mxu0 0.0
    %2557 = vmatprep.subr.mxu0 0.0
    %2558 = vmatpush1.xpose.msra.mxu0 0.0
    %2559 = vmatprep.subr.mxu0 0.0
    %2560 = vmatpush1.xpose.msra.mxu0 0.0
    %2561 = vmatprep.subr.mxu0 0.0
    %2562 = vmatpush1.xpose.msra.mxu0 0.0
    %2563 = vmatprep.subr.mxu0 0.0
    %2564 = vmatpush1.xpose.msra.mxu0 0.0
    %2565 = vmatprep.subr.mxu0 0.0
    %2566 = vmatpush1.xpose.msra.mxu0 0.0
    %2567 = vmatprep.subr.mxu0 0.0
    %2568 = vmatpush1.xpose.msra.mxu0 0.0
    %2569 = vmatprep.subr.mxu0 0.0
    %2570 = vmatpush1.xpose.msra.mxu0 0.0
    %2571 = vmatprep.subr.mxu0 0.0
    %2572 = vmatpush1.xpose.msra.mxu0 0.0
    %2573 = vmatprep.subr.mxu0 0.0
    %2574 = vmatpush1.xpose.msra.mxu0 0.0
    %2575 = vmatprep.subr.mxu0 0.0
    %2576 = vmatpush1.xpose.msra.mxu0 0.0
    %2577 = vmatprep.subr.mxu0 0.0
    %2578 = vmatpush1.xpose.msra.mxu0 0.0
    %2579 = vmatprep.subr.mxu0 0.0
    %2580 = vmatpush1.xpose.msra.mxu0 0.0
    %2581 = vmatprep.subr.mxu0 0.0
    %2582 = vmatpush1.xpose.msra.mxu0 0.0
    %2583 = vmatprep.mubr.f32.mxu0 0.0
    %2584 = vmatmul.mubr.f32.gmra.mrb[0].mxu0 %v2515
    %v2585 = vpop.f32.mrb[0].mxu0
    %v2586 = vadd.f32 0.0, %v2585
    %v2587 = vpop.f32.mrb[0].mxu0
    %2588 = vdwg.mxu0
    %2589 = vrot.lane.b32.xlu0 %v2042, 104
    %v2590 = vpop.permute.xlu0 %2589
    %2591 = vrot.lane.b32.xlu0 %v2042, 72
    %v2592 = vpop.permute.xlu0 %2591
    %v2593 = vsel %vm221, %v2590, 0
    %v2595 = vsel %vm221, %v2592, 0
    %2597 = vmatprep.subr.mxu0 0.0
    %2598 = vmatpush1.xpose.msra.mxu0 %v2595
    %2599 = vmatprep.subr.mxu0 0.0
    %2600 = vmatpush1.xpose.msra.mxu0 0.0
    %2601 = vmatprep.subr.mxu0 0.0
    %2602 = vmatpush1.xpose.msra.mxu0 0.0
    %2603 = vmatprep.subr.mxu0 0.0
    %2604 = vmatpush1.xpose.msra.mxu0 0.0
    %2605 = vmatprep.subr.mxu0 0.0
    %2606 = vmatpush1.xpose.msra.mxu0 0.0
    %2607 = vmatprep.subr.mxu0 0.0
    %2608 = vmatpush1.xpose.msra.mxu0 0.0
    %2609 = vmatprep.subr.mxu0 0.0
    %2610 = vmatpush1.xpose.msra.mxu0 0.0
    %2611 = vmatprep.subr.mxu0 0.0
    %2612 = vmatpush1.xpose.msra.mxu0 0.0
    %2613 = vmatprep.subr.mxu0 0.0
    %2614 = vmatpush1.xpose.msra.mxu0 0.0
    %2615 = vmatprep.subr.mxu0 0.0
    %2616 = vmatpush1.xpose.msra.mxu0 0.0
    %2617 = vmatprep.subr.mxu0 0.0
    %2618 = vmatpush1.xpose.msra.mxu0 0.0
    %2619 = vmatprep.subr.mxu0 0.0
    %2620 = vmatpush1.xpose.msra.mxu0 0.0
    %2621 = vmatprep.subr.mxu0 0.0
    %2622 = vmatpush1.xpose.msra.mxu0 0.0
    %2623 = vmatprep.subr.mxu0 0.0
    %2624 = vmatpush1.xpose.msra.mxu0 0.0
    %2625 = vmatprep.subr.mxu0 0.0
    %2626 = vmatpush1.xpose.msra.mxu0 0.0
    %2627 = vmatprep.subr.mxu0 0.0
    %2628 = vmatpush1.xpose.msra.mxu0 0.0
    %2629 = vmatprep.subr.mxu0 0.0
    %2630 = vmatpush1.xpose.msra.mxu0 0.0
    %2631 = vmatprep.subr.mxu0 0.0
    %2632 = vmatpush1.xpose.msra.mxu0 0.0
    %2633 = vmatprep.subr.mxu0 0.0
    %2634 = vmatpush1.xpose.msra.mxu0 0.0
    %2635 = vmatprep.subr.mxu0 0.0
    %2636 = vmatpush1.xpose.msra.mxu0 0.0
    %2637 = vmatprep.subr.mxu0 0.0
    %2638 = vmatpush1.xpose.msra.mxu0 0.0
    %2639 = vmatprep.subr.mxu0 0.0
    %2640 = vmatpush1.xpose.msra.mxu0 0.0
    %2641 = vmatprep.subr.mxu0 0.0
    %2642 = vmatpush1.xpose.msra.mxu0 0.0
    %2643 = vmatprep.subr.mxu0 0.0
    %2644 = vmatpush1.xpose.msra.mxu0 0.0
    %2645 = vmatprep.subr.mxu0 0.0
    %2646 = vmatpush1.xpose.msra.mxu0 0.0
    %2647 = vmatprep.subr.mxu0 0.0
    %2648 = vmatpush1.xpose.msra.mxu0 0.0
    %2649 = vmatprep.subr.mxu0 0.0
    %2650 = vmatpush1.xpose.msra.mxu0 0.0
    %2651 = vmatprep.subr.mxu0 0.0
    %2652 = vmatpush1.xpose.msra.mxu0 0.0
    %2653 = vmatprep.subr.mxu0 0.0
    %2654 = vmatpush1.xpose.msra.mxu0 0.0
    %2655 = vmatprep.subr.mxu0 0.0
    %2656 = vmatpush1.xpose.msra.mxu0 0.0
    %2657 = vmatprep.subr.mxu0 0.0
    %2658 = vmatpush1.xpose.msra.mxu0 0.0
    %2659 = vmatprep.subr.mxu0 0.0
    %2660 = vmatpush1.xpose.msra.mxu0 0.0
    %2661 = vmatprep.mubr.f32.mxu0 0.0
    %2662 = vmatmul.mubr.f32.gmra.mrb[0].mxu0 %v2593
    %v2663 = vpop.f32.mrb[0].mxu0
    %v2664 = vadd.f32 0.0, %v2663
    %v2665 = vpop.f32.mrb[0].mxu0
    %2666 = vdwg.mxu0
    %v2667 = vmul.f32 %v2119, 0.17677669
    %v2668 = vmul.f32 %v2196, 0.17677669
    %v2669 = vmul.f32 %v2274, 0.17677669
    %v2670 = vmul.f32 %v2352, 0.17677669
    %v2671 = vmul.f32 %v2430, 0.17677669
    %v2672 = vmul.f32 %v2508, 0.17677669
    %v2673 = vmul.f32 %v2586, 0.17677669
    %v2674 = vmul.f32 %v2664, 0.17677669
    %v2675 = vadd.f32 %v2667, %v40
    %v2676 = vadd.f32 %v2668, %v40
    %v2677 = vadd.f32 %v2669, %v40
    %v2678 = vadd.f32 %v2670, %v40
    %v2679 = vadd.f32 %v2671, %v40
    %v2680 = vadd.f32 %v2672, %v40
    %v2681 = vadd.f32 %v2673, %v40
    %v2682 = vadd.f32 %v2674, %v40
    %v2683 = vsel %vm221, %v2675, -inf
    %v2684 = vrot.slane %v2683, 4
    %v2685 = vmax.f32 %v2683, %v2684
    %v2686 = vrot.slane %v2685, 2
    %v2687 = vmax.f32 %v2685, %v2686
    %v2688 = vrot.slane %v2687, 1
    %v2689 = vmax.f32 %v2687, %v2688
    %v2690 = vsel %vm221, %v2676, -inf
    %v2691 = vrot.slane %v2690, 4
    %v2692 = vmax.f32 %v2690, %v2691
    %v2693 = vrot.slane %v2692, 2
    %v2694 = vmax.f32 %v2692, %v2693
    %v2695 = vrot.slane %v2694, 1
    %v2696 = vmax.f32 %v2694, %v2695
    %v2697 = vsel %vm221, %v2677, -inf
    %v2698 = vrot.slane %v2697, 4
    %v2699 = vmax.f32 %v2697, %v2698
    %v2700 = vrot.slane %v2699, 2
    %v2701 = vmax.f32 %v2699, %v2700
    %v2702 = vrot.slane %v2701, 1
    %v2703 = vmax.f32 %v2701, %v2702
    %v2704 = vsel %vm221, %v2678, -inf
    %v2705 = vrot.slane %v2704, 4
    %v2706 = vmax.f32 %v2704, %v2705
    %v2707 = vrot.slane %v2706, 2
    %v2708 = vmax.f32 %v2706, %v2707
    %v2709 = vrot.slane %v2708, 1
    %v2710 = vmax.f32 %v2708, %v2709
    %v2711 = vsel %vm221, %v2679, -inf
    %v2712 = vrot.slane %v2711, 4
    %v2713 = vmax.f32 %v2711, %v2712
    %v2714 = vrot.slane %v2713, 2
    %v2715 = vmax.f32 %v2713, %v2714
    %v2716 = vrot.slane %v2715, 1
    %v2717 = vmax.f32 %v2715, %v2716
    %v2718 = vsel %vm221, %v2680, -inf
    %v2719 = vrot.slane %v2718, 4
    %v2720 = vmax.f32 %v2718, %v2719
    %v2721 = vrot.slane %v2720, 2
    %v2722 = vmax.f32 %v2720, %v2721
    %v2723 = vrot.slane %v2722, 1
    %v2724 = vmax.f32 %v2722, %v2723
    %v2725 = vsel %vm221, %v2681, -inf
    %v2726 = vrot.slane %v2725, 4
    %v2727 = vmax.f32 %v2725, %v2726
    %v2728 = vrot.slane %v2727, 2
    %v2729 = vmax.f32 %v2727, %v2728
    %v2730 = vrot.slane %v2729, 1
    %v2731 = vmax.f32 %v2729, %v2730
    %v2732 = vsel %vm221, %v2682, -inf
    %v2733 = vrot.slane %v2732, 4
    %v2734 = vmax.f32 %v2732, %v2733
    %v2735 = vrot.slane %v2734, 2
    %v2736 = vmax.f32 %v2734, %v2735
    %v2737 = vrot.slane %v2736, 1
    %v2738 = vmax.f32 %v2736, %v2737
    %v2739 = vsub.f32 %v2675, %v2689
    %v2740 = vsub.f32 %v2676, %v2696
    %v2741 = vsub.f32 %v2677, %v2703
    %v2742 = vsub.f32 %v2678, %v2710
    %v2743 = vsub.f32 %v2679, %v2717
    %v2744 = vsub.f32 %v2680, %v2724
    %v2745 = vsub.f32 %v2681, %v2731
    %v2746 = vsub.f32 %v2682, %v2738
    %v2747 = vmul.f32 %v2739, 1.442695
    %v2748 = vpow.pop %v2747
    %v2749 = vmul.f32 %v2740, 1.442695
    %v2750 = vpow.pop %v2749
    %v2751 = vmul.f32 %v2741, 1.442695
    %v2752 = vpow.pop %v2751
    %v2753 = vmul.f32 %v2742, 1.442695
    %v2754 = vpow.pop %v2753
    %v2755 = vmul.f32 %v2743, 1.442695
    %v2756 = vpow.pop %v2755
    %v2757 = vmul.f32 %v2744, 1.442695
    %v2758 = vpow.pop %v2757
    %v2759 = vmul.f32 %v2745, 1.442695
    %v2760 = vpow.pop %v2759
    %v2761 = vmul.f32 %v2746, 1.442695
    %v2762 = vpow.pop %v2761
    %v2763 = vsel %vm221, %v2748, 0.0
    %v2764 = vrot.slane %v2763, 4
    %v2765 = vadd.f32 %v2763, %v2764
    %v2766 = vrot.slane %v2765, 2
    %v2767 = vadd.f32 %v2765, %v2766
    %v2768 = vrot.slane %v2767, 1
    %v2769 = vadd.f32 %v2767, %v2768
    %v2770 = vsel %vm221, %v2750, 0.0
    %v2771 = vrot.slane %v2770, 4
    %v2772 = vadd.f32 %v2770, %v2771
    %v2773 = vrot.slane %v2772, 2
    %v2774 = vadd.f32 %v2772, %v2773
    %v2775 = vrot.slane %v2774, 1
    %v2776 = vadd.f32 %v2774, %v2775
    %v2777 = vsel %vm221, %v2752, 0.0
    %v2778 = vrot.slane %v2777, 4
    %v2779 = vadd.f32 %v2777, %v2778
    %v2780 = vrot.slane %v2779, 2
    %v2781 = vadd.f32 %v2779, %v2780
    %v2782 = vrot.slane %v2781, 1
    %v2783 = vadd.f32 %v2781, %v2782
    %v2784 = vsel %vm221, %v2754, 0.0
    %v2785 = vrot.slane %v2784, 4
    %v2786 = vadd.f32 %v2784, %v2785
    %v2787 = vrot.slane %v2786, 2
    %v2788 = vadd.f32 %v2786, %v2787
    %v2789 = vrot.slane %v2788, 1
    %v2790 = vadd.f32 %v2788, %v2789
    %v2791 = vsel %vm221, %v2756, 0.0
    %v2792 = vrot.slane %v2791, 4
    %v2793 = vadd.f32 %v2791, %v2792
    %v2794 = vrot.slane %v2793, 2
    %v2795 = vadd.f32 %v2793, %v2794
    %v2796 = vrot.slane %v2795, 1
    %v2797 = vadd.f32 %v2795, %v2796
    %v2798 = vsel %vm221, %v2758, 0.0
    %v2799 = vrot.slane %v2798, 4
    %v2800 = vadd.f32 %v2798, %v2799
    %v2801 = vrot.slane %v2800, 2
    %v2802 = vadd.f32 %v2800, %v2801
    %v2803 = vrot.slane %v2802, 1
    %v2804 = vadd.f32 %v2802, %v2803
    %v2805 = vsel %vm221, %v2760, 0.0
    %v2806 = vrot.slane %v2805, 4
    %v2807 = vadd.f32 %v2805, %v2806
    %v2808 = vrot.slane %v2807, 2
    %v2809 = vadd.f32 %v2807, %v2808
    %v2810 = vrot.slane %v2809, 1
    %v2811 = vadd.f32 %v2809, %v2810
    %v2812 = vsel %vm221, %v2762, 0.0
    %v2813 = vrot.slane %v2812, 4
    %v2814 = vadd.f32 %v2812, %v2813
    %v2815 = vrot.slane %v2814, 2
    %v2816 = vadd.f32 %v2814, %v2815
    %v2817 = vrot.slane %v2816, 1
    %v2818 = vadd.f32 %v2816, %v2817
    %v2819 = vrcp.pop %v2769
    %v2820 = vrcp.pop %v2776
    %v2821 = vrcp.pop %v2783
    %v2822 = vrcp.pop %v2790
    %v2823 = vrcp.pop %v2797
    %v2824 = vrcp.pop %v2804
    %v2825 = vrcp.pop %v2811
    %v2826 = vrcp.pop %v2818
    %v2827 = vmul.f32 %v2748, %v2819
    %v2828 = vmul.f32 %v2750, %v2820
    %v2829 = vmul.f32 %v2752, %v2821
    %v2830 = vmul.f32 %v2754, %v2822
    %v2831 = vmul.f32 %v2756, %v2823
    %v2832 = vmul.f32 %v2758, %v2824
    %v2833 = vmul.f32 %v2760, %v2825
    %v2834 = vmul.f32 %v2762, %v2826
    %v2835 = vmul.f32 %v2827, %v68
    %v2836 = vmul.f32 %v2828, %v72
    %v2837 = vmul.f32 %v2829, %v68
    %v2838 = vmul.f32 %v2830, %v72
    %v2839 = vmul.f32 %v2831, %v68
    %v2840 = vmul.f32 %v2832, %v72
    %v2841 = vmul.f32 %v2833, %v68
    %v2842 = vmul.f32 %v2834, %v72
    %2843 = vrot.lane.b32.xlu0 %v2037, 64
    %v2844 = vpop.permute.xlu0 %2843
    %v2847 = vsel %vm221, %v2835, 0
    %2849 = vmatprep.subr.mxu0 0.0
    %2850 = vmatpush1.msra.mxu0 %v2844
    %2851 = vmatprep.subr.mxu0 0.0
    %2852 = vmatpush1.msra.mxu0 0.0
    %2853 = vmatprep.subr.mxu0 0.0
    %2854 = vmatpush1.msra.mxu0 0.0
    %2855 = vmatprep.subr.mxu0 0.0
    %2856 = vmatpush1.msra.mxu0 0.0
    %2857 = vmatprep.subr.mxu0 0.0
    %2858 = vmatpush1.msra.mxu0 0.0
    %2859 = vmatprep.subr.mxu0 0.0
    %2860 = vmatpush1.msra.mxu0 0.0
    %2861 = vmatprep.subr.mxu0 0.0
    %2862 = vmatpush1.msra.mxu0 0.0
    %2863 = vmatprep.subr.mxu0 0.0
    %2864 = vmatpush1.msra.mxu0 0.0
    %2865 = vmatprep.subr.mxu0 0.0
    %2866 = vmatpush1.msra.mxu0 0.0
    %2867 = vmatprep.subr.mxu0 0.0
    %2868 = vmatpush1.msra.mxu0 0.0
    %2869 = vmatprep.subr.mxu0 0.0
    %2870 = vmatpush1.msra.mxu0 0.0
    %2871 = vmatprep.subr.mxu0 0.0
    %2872 = vmatpush1.msra.mxu0 0.0
    %2873 = vmatprep.subr.mxu0 0.0
    %2874 = vmatpush1.msra.mxu0 0.0
    %2875 = vmatprep.subr.mxu0 0.0
    %2876 = vmatpush1.msra.mxu0 0.0
    %2877 = vmatprep.subr.mxu0 0.0
    %2878 = vmatpush1.msra.mxu0 0.0
    %2879 = vmatprep.subr.mxu0 0.0
    %2880 = vmatpush1.msra.mxu0 0.0
    %2881 = vmatprep.subr.mxu0 0.0
    %2882 = vmatpush1.msra.mxu0 0.0
    %2883 = vmatprep.subr.mxu0 0.0
    %2884 = vmatpush1.msra.mxu0 0.0
    %2885 = vmatprep.subr.mxu0 0.0
    %2886 = vmatpush1.msra.mxu0 0.0
    %2887 = vmatprep.subr.mxu0 0.0
    %2888 = vmatpush1.msra.mxu0 0.0
    %2889 = vmatprep.subr.mxu0 0.0
    %2890 = vmatpush1.msra.mxu0 0.0
    %2891 = vmatprep.subr.mxu0 0.0
    %2892 = vmatpush1.msra.mxu0 0.0
    %2893 = vmatprep.subr.mxu0 0.0
    %2894 = vmatpush1.msra.mxu0 0.0
    %2895 = vmatprep.subr.mxu0 0.0
    %2896 = vmatpush1.msra.mxu0 0.0
    %2897 = vmatprep.subr.mxu0 0.0
    %2898 = vmatpush1.msra.mxu0 0.0
    %2899 = vmatprep.subr.mxu0 0.0
    %2900 = vmatpush1.msra.mxu0 0.0
    %2901 = vmatprep.subr.mxu0 0.0
    %2902 = vmatpush1.msra.mxu0 0.0
    %2903 = vmatprep.subr.mxu0 0.0
    %2904 = vmatpush1.msra.mxu0 0.0
    %2905 = vmatprep.subr.mxu0 0.0
    %2906 = vmatpush1.msra.mxu0 0.0
    %2907 = vmatprep.subr.mxu0 0.0
    %2908 = vmatpush1.msra.mxu0 0.0
    %2909 = vmatprep.subr.mxu0 0.0
    %2910 = vmatpush1.msra.mxu0 0.0
    %2911 = vmatprep.subr.mxu0 0.0
    %2912 = vmatpush1.msra.mxu0 0.0
    %2913 = vmatprep.mubr.f32.mxu0 0.0
    %2914 = vmatmul.mubr.f32.gmra.mrb[0].mxu0 %v2847
    %v2915 = vpop.f32.mrb[0].mxu0
    %v2916 = vadd.f32 0.0, %v2915
    %v2917 = vpop.f32.mrb[0].mxu0
    %2918 = vdwg.mxu0
    %2919 = vrot.lane.b32.xlu0 %v2042, 64
    %v2920 = vpop.permute.xlu0 %2919
    %v2923 = vsel %vm221, %v2836, 0
    %2925 = vmatprep.subr.mxu0 0.0
    %2926 = vmatpush1.msra.mxu0 %v2920
    %2927 = vmatprep.subr.mxu0 0.0
    %2928 = vmatpush1.msra.mxu0 0.0
    %2929 = vmatprep.subr.mxu0 0.0
    %2930 = vmatpush1.msra.mxu0 0.0
    %2931 = vmatprep.subr.mxu0 0.0
    %2932 = vmatpush1.msra.mxu0 0.0
    %2933 = vmatprep.subr.mxu0 0.0
    %2934 = vmatpush1.msra.mxu0 0.0
    %2935 = vmatprep.subr.mxu0 0.0
    %2936 = vmatpush1.msra.mxu0 0.0
    %2937 = vmatprep.subr.mxu0 0.0
    %2938 = vmatpush1.msra.mxu0 0.0
    %2939 = vmatprep.subr.mxu0 0.0
    %2940 = vmatpush1.msra.mxu0 0.0
    %2941 = vmatprep.subr.mxu0 0.0
    %2942 = vmatpush1.msra.mxu0 0.0
    %2943 = vmatprep.subr.mxu0 0.0
    %2944 = vmatpush1.msra.mxu0 0.0
    %2945 = vmatprep.subr.mxu0 0.0
    %2946 = vmatpush1.msra.mxu0 0.0
    %2947 = vmatprep.subr.mxu0 0.0
    %2948 = vmatpush1.msra.mxu0 0.0
    %2949 = vmatprep.subr.mxu0 0.0
    %2950 = vmatpush1.msra.mxu0 0.0
    %2951 = vmatprep.subr.mxu0 0.0
    %2952 = vmatpush1.msra.mxu0 0.0
    %2953 = vmatprep.subr.mxu0 0.0
    %2954 = vmatpush1.msra.mxu0 0.0
    %2955 = vmatprep.subr.mxu0 0.0
    %2956 = vmatpush1.msra.mxu0 0.0
    %2957 = vmatprep.subr.mxu0 0.0
    %2958 = vmatpush1.msra.mxu0 0.0
    %2959 = vmatprep.subr.mxu0 0.0
    %2960 = vmatpush1.msra.mxu0 0.0
    %2961 = vmatprep.subr.mxu0 0.0
    %2962 = vmatpush1.msra.mxu0 0.0
    %2963 = vmatprep.subr.mxu0 0.0
    %2964 = vmatpush1.msra.mxu0 0.0
    %2965 = vmatprep.subr.mxu0 0.0
    %2966 = vmatpush1.msra.mxu0 0.0
    %2967 = vmatprep.subr.mxu0 0.0
    %2968 = vmatpush1.msra.mxu0 0.0
    %2969 = vmatprep.subr.mxu0 0.0
    %2970 = vmatpush1.msra.mxu0 0.0
    %2971 = vmatprep.subr.mxu0 0.0
    %2972 = vmatpush1.msra.mxu0 0.0
    %2973 = vmatprep.subr.mxu0 0.0
    %2974 = vmatpush1.msra.mxu0 0.0
    %2975 = vmatprep.subr.mxu0 0.0
    %2976 = vmatpush1.msra.mxu0 0.0
    %2977 = vmatprep.subr.mxu0 0.0
    %2978 = vmatpush1.msra.mxu0 0.0
    %2979 = vmatprep.subr.mxu0 0.0
    %2980 = vmatpush1.msra.mxu0 0.0
    %2981 = vmatprep.subr.mxu0 0.0
    %2982 = vmatpush1.msra.mxu0 0.0
    %2983 = vmatprep.subr.mxu0 0.0
    %2984 = vmatpush1.msra.mxu0 0.0
    %2985 = vmatprep.subr.mxu0 0.0
    %2986 = vmatpush1.msra.mxu0 0.0
    %2987 = vmatprep.subr.mxu0 0.0
    %2988 = vmatpush1.msra.mxu0 0.0
    %2989 = vmatprep.mubr.f32.mxu0 0.0
    %2990 = vmatmul.mubr.f32.gmra.mrb[0].mxu0 %v2923
    %v2991 = vpop.f32.mrb[0].mxu0
    %v2992 = vadd.f32 0.0, %v2991
    %v2993 = vpop.f32.mrb[0].mxu0
    %2994 = vdwg.mxu0
    %2995 = vrot.lane.b32.xlu0 %v2037, 56
    %v2996 = vpop.permute.xlu0 %2995
    %v2999 = vsel %vm221, %v2837, 0
    %3001 = vmatprep.subr.mxu0 0.0
    %3002 = vmatpush1.msra.mxu0 %v2996
    %3003 = vmatprep.subr.mxu0 0.0
    %3004 = vmatpush1.msra.mxu0 0.0
    %3005 = vmatprep.subr.mxu0 0.0
    %3006 = vmatpush1.msra.mxu0 0.0
    %3007 = vmatprep.subr.mxu0 0.0
    %3008 = vmatpush1.msra.mxu0 0.0
    %3009 = vmatprep.subr.mxu0 0.0
    %3010 = vmatpush1.msra.mxu0 0.0
    %3011 = vmatprep.subr.mxu0 0.0
    %3012 = vmatpush1.msra.mxu0 0.0
    %3013 = vmatprep.subr.mxu0 0.0
    %3014 = vmatpush1.msra.mxu0 0.0
    %3015 = vmatprep.subr.mxu0 0.0
    %3016 = vmatpush1.msra.mxu0 0.0
    %3017 = vmatprep.subr.mxu0 0.0
    %3018 = vmatpush1.msra.mxu0 0.0
    %3019 = vmatprep.subr.mxu0 0.0
    %3020 = vmatpush1.msra.mxu0 0.0
    %3021 = vmatprep.subr.mxu0 0.0
    %3022 = vmatpush1.msra.mxu0 0.0
    %3023 = vmatprep.subr.mxu0 0.0
    %3024 = vmatpush1.msra.mxu0 0.0
    %3025 = vmatprep.subr.mxu0 0.0
    %3026 = vmatpush1.msra.mxu0 0.0
    %3027 = vmatprep.subr.mxu0 0.0
    %3028 = vmatpush1.msra.mxu0 0.0
    %3029 = vmatprep.subr.mxu0 0.0
    %3030 = vmatpush1.msra.mxu0 0.0
    %3031 = vmatprep.subr.mxu0 0.0
    %3032 = vmatpush1.msra.mxu0 0.0
    %3033 = vmatprep.subr.mxu0 0.0
    %3034 = vmatpush1.msra.mxu0 0.0
    %3035 = vmatprep.subr.mxu0 0.0
    %3036 = vmatpush1.msra.mxu0 0.0
    %3037 = vmatprep.subr.mxu0 0.0
    %3038 = vmatpush1.msra.mxu0 0.0
    %3039 = vmatprep.subr.mxu0 0.0
    %3040 = vmatpush1.msra.mxu0 0.0
    %3041 = vmatprep.subr.mxu0 0.0
    %3042 = vmatpush1.msra.mxu0 0.0
    %3043 = vmatprep.subr.mxu0 0.0
    %3044 = vmatpush1.msra.mxu0 0.0
    %3045 = vmatprep.subr.mxu0 0.0
    %3046 = vmatpush1.msra.mxu0 0.0
    %3047 = vmatprep.subr.mxu0 0.0
    %3048 = vmatpush1.msra.mxu0 0.0
    %3049 = vmatprep.subr.mxu0 0.0
    %3050 = vmatpush1.msra.mxu0 0.0
    %3051 = vmatprep.subr.mxu0 0.0
    %3052 = vmatpush1.msra.mxu0 0.0
    %3053 = vmatprep.subr.mxu0 0.0
    %3054 = vmatpush1.msra.mxu0 0.0
    %3055 = vmatprep.subr.mxu0 0.0
    %3056 = vmatpush1.msra.mxu0 0.0
    %3057 = vmatprep.subr.mxu0 0.0
    %3058 = vmatpush1.msra.mxu0 0.0
    %3059 = vmatprep.subr.mxu0 0.0
    %3060 = vmatpush1.msra.mxu0 0.0
    %3061 = vmatprep.subr.mxu0 0.0
    %3062 = vmatpush1.msra.mxu0 0.0
    %3063 = vmatprep.subr.mxu0 0.0
    %3064 = vmatpush1.msra.mxu0 0.0
    %3065 = vmatprep.mubr.f32.mxu0 0.0
    %3066 = vmatmul.mubr.f32.gmra.mrb[0].mxu0 %v2999
    %v3067 = vpop.f32.mrb[0].mxu0
    %v3068 = vadd.f32 0.0, %v3067
    %v3069 = vpop.f32.mrb[0].mxu0
    %3070 = vdwg.mxu0
    %3071 = vrot.lane.b32.xlu0 %v2042, 56
    %v3072 = vpop.permute.xlu0 %3071
    %v3075 = vsel %vm221, %v2838, 0
    %3077 = vmatprep.subr.mxu0 0.0
    %3078 = vmatpush1.msra.mxu0 %v3072
    %3079 = vmatprep.subr.mxu0 0.0
    %3080 = vmatpush1.msra.mxu0 0.0
    %3081 = vmatprep.subr.mxu0 0.0
    %3082 = vmatpush1.msra.mxu0 0.0
    %3083 = vmatprep.subr.mxu0 0.0
    %3084 = vmatpush1.msra.mxu0 0.0
    %3085 = vmatprep.subr.mxu0 0.0
    %3086 = vmatpush1.msra.mxu0 0.0
    %3087 = vmatprep.subr.mxu0 0.0
    %3088 = vmatpush1.msra.mxu0 0.0
    %3089 = vmatprep.subr.mxu0 0.0
    %3090 = vmatpush1.msra.mxu0 0.0
    %3091 = vmatprep.subr.mxu0 0.0
    %3092 = vmatpush1.msra.mxu0 0.0
    %3093 = vmatprep.subr.mxu0 0.0
    %3094 = vmatpush1.msra.mxu0 0.0
    %3095 = vmatprep.subr.mxu0 0.0
    %3096 = vmatpush1.msra.mxu0 0.0
    %3097 = vmatprep.subr.mxu0 0.0
    %3098 = vmatpush1.msra.mxu0 0.0
    %3099 = vmatprep.subr.mxu0 0.0
    %3100 = vmatpush1.msra.mxu0 0.0
    %3101 = vmatprep.subr.mxu0 0.0
    %3102 = vmatpush1.msra.mxu0 0.0
    %3103 = vmatprep.subr.mxu0 0.0
    %3104 = vmatpush1.msra.mxu0 0.0
    %3105 = vmatprep.subr.mxu0 0.0
    %3106 = vmatpush1.msra.mxu0 0.0
    %3107 = vmatprep.subr.mxu0 0.0
    %3108 = vmatpush1.msra.mxu0 0.0
    %3109 = vmatprep.subr.mxu0 0.0
    %3110 = vmatpush1.msra.mxu0 0.0
    %3111 = vmatprep.subr.mxu0 0.0
    %3112 = vmatpush1.msra.mxu0 0.0
    %3113 = vmatprep.subr.mxu0 0.0
    %3114 = vmatpush1.msra.mxu0 0.0
    %3115 = vmatprep.subr.mxu0 0.0
    %3116 = vmatpush1.msra.mxu0 0.0
    %3117 = vmatprep.subr.mxu0 0.0
    %3118 = vmatpush1.msra.mxu0 0.0
    %3119 = vmatprep.subr.mxu0 0.0
    %3120 = vmatpush1.msra.mxu0 0.0
    %3121 = vmatprep.subr.mxu0 0.0
    %3122 = vmatpush1.msra.mxu0 0.0
    %3123 = vmatprep.subr.mxu0 0.0
    %3124 = vmatpush1.msra.mxu0 0.0
    %3125 = vmatprep.subr.mxu0 0.0
    %3126 = vmatpush1.msra.mxu0 0.0
    %3127 = vmatprep.subr.mxu0 0.0
    %3128 = vmatpush1.msra.mxu0 0.0
    %3129 = vmatprep.subr.mxu0 0.0
    %3130 = vmatpush1.msra.mxu0 0.0
    %3131 = vmatprep.subr.mxu0 0.0
    %3132 = vmatpush1.msra.mxu0 0.0
    %3133 = vmatprep.subr.mxu0 0.0
    %3134 = vmatpush1.msra.mxu0 0.0
    %3135 = vmatprep.subr.mxu0 0.0
    %3136 = vmatpush1.msra.mxu0 0.0
    %3137 = vmatprep.subr.mxu0 0.0
    %3138 = vmatpush1.msra.mxu0 0.0
    %3139 = vmatprep.subr.mxu0 0.0
    %3140 = vmatpush1.msra.mxu0 0.0
    %3141 = vmatprep.mubr.f32.mxu0 0.0
    %3142 = vmatmul.mubr.f32.gmra.mrb[0].mxu0 %v3075
    %v3143 = vpop.f32.mrb[0].mxu0
    %v3144 = vadd.f32 0.0, %v3143
    %v3145 = vpop.f32.mrb[0].mxu0
    %3146 = vdwg.mxu0
    %3147 = vrot.lane.b32.xlu0 %v2037, 48
    %v3148 = vpop.permute.xlu0 %3147
    %v3151 = vsel %vm221, %v2839, 0
    %3153 = vmatprep.subr.mxu0 0.0
    %3154 = vmatpush1.msra.mxu0 %v3148
    %3155 = vmatprep.subr.mxu0 0.0
    %3156 = vmatpush1.msra.mxu0 0.0
    %3157 = vmatprep.subr.mxu0 0.0
    %3158 = vmatpush1.msra.mxu0 0.0
    %3159 = vmatprep.subr.mxu0 0.0
    %3160 = vmatpush1.msra.mxu0 0.0
    %3161 = vmatprep.subr.mxu0 0.0
    %3162 = vmatpush1.msra.mxu0 0.0
    %3163 = vmatprep.subr.mxu0 0.0
    %3164 = vmatpush1.msra.mxu0 0.0
    %3165 = vmatprep.subr.mxu0 0.0
    %3166 = vmatpush1.msra.mxu0 0.0
    %3167 = vmatprep.subr.mxu0 0.0
    %3168 = vmatpush1.msra.mxu0 0.0
    %3169 = vmatprep.subr.mxu0 0.0
    %3170 = vmatpush1.msra.mxu0 0.0
    %3171 = vmatprep.subr.mxu0 0.0
    %3172 = vmatpush1.msra.mxu0 0.0
    %3173 = vmatprep.subr.mxu0 0.0
    %3174 = vmatpush1.msra.mxu0 0.0
    %3175 = vmatprep.subr.mxu0 0.0
    %3176 = vmatpush1.msra.mxu0 0.0
    %3177 = vmatprep.subr.mxu0 0.0
    %3178 = vmatpush1.msra.mxu0 0.0
    %3179 = vmatprep.subr.mxu0 0.0
    %3180 = vmatpush1.msra.mxu0 0.0
    %3181 = vmatprep.subr.mxu0 0.0
    %3182 = vmatpush1.msra.mxu0 0.0
    %3183 = vmatprep.subr.mxu0 0.0
    %3184 = vmatpush1.msra.mxu0 0.0
    %3185 = vmatprep.subr.mxu0 0.0
    %3186 = vmatpush1.msra.mxu0 0.0
    %3187 = vmatprep.subr.mxu0 0.0
    %3188 = vmatpush1.msra.mxu0 0.0
    %3189 = vmatprep.subr.mxu0 0.0
    %3190 = vmatpush1.msra.mxu0 0.0
    %3191 = vmatprep.subr.mxu0 0.0
    %3192 = vmatpush1.msra.mxu0 0.0
    %3193 = vmatprep.subr.mxu0 0.0
    %3194 = vmatpush1.msra.mxu0 0.0
    %3195 = vmatprep.subr.mxu0 0.0
    %3196 = vmatpush1.msra.mxu0 0.0
    %3197 = vmatprep.subr.mxu0 0.0
    %3198 = vmatpush1.msra.mxu0 0.0
    %3199 = vmatprep.subr.mxu0 0.0
    %3200 = vmatpush1.msra.mxu0 0.0
    %3201 = vmatprep.subr.mxu0 0.0
    %3202 = vmatpush1.msra.mxu0 0.0
    %3203 = vmatprep.subr.mxu0 0.0
    %3204 = vmatpush1.msra.mxu0 0.0
    %3205 = vmatprep.subr.mxu0 0.0
    %3206 = vmatpush1.msra.mxu0 0.0
    %3207 = vmatprep.subr.mxu0 0.0
    %3208 = vmatpush1.msra.mxu0 0.0
    %3209 = vmatprep.subr.mxu0 0.0
    %3210 = vmatpush1.msra.mxu0 0.0
    %3211 = vmatprep.subr.mxu0 0.0
    %3212 = vmatpush1.msra.mxu0 0.0
    %3213 = vmatprep.subr.mxu0 0.0
    %3214 = vmatpush1.msra.mxu0 0.0
    %3215 = vmatprep.subr.mxu0 0.0
    %3216 = vmatpush1.msra.mxu0 0.0
    %3217 = vmatprep.mubr.f32.mxu0 0.0
    %3218 = vmatmul.mubr.f32.gmra.mrb[0].mxu0 %v3151
    %v3219 = vpop.f32.mrb[0].mxu0
    %v3220 = vadd.f32 0.0, %v3219
    %v3221 = vpop.f32.mrb[0].mxu0
    %3222 = vdwg.mxu0
    %3223 = vrot.lane.b32.xlu0 %v2042, 48
    %v3224 = vpop.permute.xlu0 %3223
    %v3227 = vsel %vm221, %v2840, 0
    %3229 = vmatprep.subr.mxu0 0.0
    %3230 = vmatpush1.msra.mxu0 %v3224
    %3231 = vmatprep.subr.mxu0 0.0
    %3232 = vmatpush1.msra.mxu0 0.0
    %3233 = vmatprep.subr.mxu0 0.0
    %3234 = vmatpush1.msra.mxu0 0.0
    %3235 = vmatprep.subr.mxu0 0.0
    %3236 = vmatpush1.msra.mxu0 0.0
    %3237 = vmatprep.subr.mxu0 0.0
    %3238 = vmatpush1.msra.mxu0 0.0
    %3239 = vmatprep.subr.mxu0 0.0
    %3240 = vmatpush1.msra.mxu0 0.0
    %3241 = vmatprep.subr.mxu0 0.0
    %3242 = vmatpush1.msra.mxu0 0.0
    %3243 = vmatprep.subr.mxu0 0.0
    %3244 = vmatpush1.msra.mxu0 0.0
    %3245 = vmatprep.subr.mxu0 0.0
    %3246 = vmatpush1.msra.mxu0 0.0
    %3247 = vmatprep.subr.mxu0 0.0
    %3248 = vmatpush1.msra.mxu0 0.0
    %3249 = vmatprep.subr.mxu0 0.0
    %3250 = vmatpush1.msra.mxu0 0.0
    %3251 = vmatprep.subr.mxu0 0.0
    %3252 = vmatpush1.msra.mxu0 0.0
    %3253 = vmatprep.subr.mxu0 0.0
    %3254 = vmatpush1.msra.mxu0 0.0
    %3255 = vmatprep.subr.mxu0 0.0
    %3256 = vmatpush1.msra.mxu0 0.0
    %3257 = vmatprep.subr.mxu0 0.0
    %3258 = vmatpush1.msra.mxu0 0.0
    %3259 = vmatprep.subr.mxu0 0.0
    %3260 = vmatpush1.msra.mxu0 0.0
    %3261 = vmatprep.subr.mxu0 0.0
    %3262 = vmatpush1.msra.mxu0 0.0
    %3263 = vmatprep.subr.mxu0 0.0
    %3264 = vmatpush1.msra.mxu0 0.0
    %3265 = vmatprep.subr.mxu0 0.0
    %3266 = vmatpush1.msra.mxu0 0.0
    %3267 = vmatprep.subr.mxu0 0.0
    %3268 = vmatpush1.msra.mxu0 0.0
    %3269 = vmatprep.subr.mxu0 0.0
    %3270 = vmatpush1.msra.mxu0 0.0
    %3271 = vmatprep.subr.mxu0 0.0
    %3272 = vmatpush1.msra.mxu0 0.0
    %3273 = vmatprep.subr.mxu0 0.0
    %3274 = vmatpush1.msra.mxu0 0.0
    %3275 = vmatprep.subr.mxu0 0.0
    %3276 = vmatpush1.msra.mxu0 0.0
    %3277 = vmatprep.subr.mxu0 0.0
    %3278 = vmatpush1.msra.mxu0 0.0
    %3279 = vmatprep.subr.mxu0 0.0
    %3280 = vmatpush1.msra.mxu0 0.0
    %3281 = vmatprep.subr.mxu0 0.0
    %3282 = vmatpush1.msra.mxu0 0.0
    %3283 = vmatprep.subr.mxu0 0.0
    %3284 = vmatpush1.msra.mxu0 0.0
    %3285 = vmatprep.subr.mxu0 0.0
    %3286 = vmatpush1.msra.mxu0 0.0
    %3287 = vmatprep.subr.mxu0 0.0
    %3288 = vmatpush1.msra.mxu0 0.0
    %3289 = vmatprep.subr.mxu0 0.0
    %3290 = vmatpush1.msra.mxu0 0.0
    %3291 = vmatprep.subr.mxu0 0.0
    %3292 = vmatpush1.msra.mxu0 0.0
    %3293 = vmatprep.mubr.f32.mxu0 0.0
    %3294 = vmatmul.mubr.f32.gmra.mrb[0].mxu0 %v3227
    %v3295 = vpop.f32.mrb[0].mxu0
    %v3296 = vadd.f32 0.0, %v3295
    %v3297 = vpop.f32.mrb[0].mxu0
    %3298 = vdwg.mxu0
    %3299 = vrot.lane.b32.xlu0 %v2037, 40
    %v3300 = vpop.permute.xlu0 %3299
    %v3303 = vsel %vm221, %v2841, 0
    %3305 = vmatprep.subr.mxu0 0.0
    %3306 = vmatpush1.msra.mxu0 %v3300
    %3307 = vmatprep.subr.mxu0 0.0
    %3308 = vmatpush1.msra.mxu0 0.0
    %3309 = vmatprep.subr.mxu0 0.0
    %3310 = vmatpush1.msra.mxu0 0.0
    %3311 = vmatprep.subr.mxu0 0.0
    %3312 = vmatpush1.msra.mxu0 0.0
    %3313 = vmatprep.subr.mxu0 0.0
    %3314 = vmatpush1.msra.mxu0 0.0
    %3315 = vmatprep.subr.mxu0 0.0
    %3316 = vmatpush1.msra.mxu0 0.0
    %3317 = vmatprep.subr.mxu0 0.0
    %3318 = vmatpush1.msra.mxu0 0.0
    %3319 = vmatprep.subr.mxu0 0.0
    %3320 = vmatpush1.msra.mxu0 0.0
    %3321 = vmatprep.subr.mxu0 0.0
    %3322 = vmatpush1.msra.mxu0 0.0
    %3323 = vmatprep.subr.mxu0 0.0
    %3324 = vmatpush1.msra.mxu0 0.0
    %3325 = vmatprep.subr.mxu0 0.0
    %3326 = vmatpush1.msra.mxu0 0.0
    %3327 = vmatprep.subr.mxu0 0.0
    %3328 = vmatpush1.msra.mxu0 0.0
    %3329 = vmatprep.subr.mxu0 0.0
    %3330 = vmatpush1.msra.mxu0 0.0
    %3331 = vmatprep.subr.mxu0 0.0
    %3332 = vmatpush1.msra.mxu0 0.0
    %3333 = vmatprep.subr.mxu0 0.0
    %3334 = vmatpush1.msra.mxu0 0.0
    %3335 = vmatprep.subr.mxu0 0.0
    %3336 = vmatpush1.msra.mxu0 0.0
    %3337 = vmatprep.subr.mxu0 0.0
    %3338 = vmatpush1.msra.mxu0 0.0
    %3339 = vmatprep.subr.mxu0 0.0
    %3340 = vmatpush1.msra.mxu0 0.0
    %3341 = vmatprep.subr.mxu0 0.0
    %3342 = vmatpush1.msra.mxu0 0.0
    %3343 = vmatprep.subr.mxu0 0.0
    %3344 = vmatpush1.msra.mxu0 0.0
    %3345 = vmatprep.subr.mxu0 0.0
    %3346 = vmatpush1.msra.mxu0 0.0
    %3347 = vmatprep.subr.mxu0 0.0
    %3348 = vmatpush1.msra.mxu0 0.0
    %3349 = vmatprep.subr.mxu0 0.0
    %3350 = vmatpush1.msra.mxu0 0.0
    %3351 = vmatprep.subr.mxu0 0.0
    %3352 = vmatpush1.msra.mxu0 0.0
    %3353 = vmatprep.subr.mxu0 0.0
    %3354 = vmatpush1.msra.mxu0 0.0
    %3355 = vmatprep.subr.mxu0 0.0
    %3356 = vmatpush1.msra.mxu0 0.0
    %3357 = vmatprep.subr.mxu0 0.0
    %3358 = vmatpush1.msra.mxu0 0.0
    %3359 = vmatprep.subr.mxu0 0.0
    %3360 = vmatpush1.msra.mxu0 0.0
    %3361 = vmatprep.subr.mxu0 0.0
    %3362 = vmatpush1.msra.mxu0 0.0
    %3363 = vmatprep.subr.mxu0 0.0
    %3364 = vmatpush1.msra.mxu0 0.0
    %3365 = vmatprep.subr.mxu0 0.0
    %3366 = vmatpush1.msra.mxu0 0.0
    %3367 = vmatprep.subr.mxu0 0.0
    %3368 = vmatpush1.msra.mxu0 0.0
    %3369 = vmatprep.mubr.f32.mxu0 0.0
    %3370 = vmatmul.mubr.f32.gmra.mrb[0].mxu0 %v3303
    %v3371 = vpop.f32.mrb[0].mxu0
    %v3372 = vadd.f32 0.0, %v3371
    %v3373 = vpop.f32.mrb[0].mxu0
    %3374 = vdwg.mxu0
    %3375 = vrot.lane.b32.xlu0 %v2042, 40
    %v3376 = vpop.permute.xlu0 %3375
    %v3379 = vsel %vm221, %v2842, 0
    %3381 = vmatprep.subr.mxu0 0.0
    %3382 = vmatpush1.msra.mxu0 %v3376
    %3383 = vmatprep.subr.mxu0 0.0
    %3384 = vmatpush1.msra.mxu0 0.0
    %3385 = vmatprep.subr.mxu0 0.0
    %3386 = vmatpush1.msra.mxu0 0.0
    %3387 = vmatprep.subr.mxu0 0.0
    %3388 = vmatpush1.msra.mxu0 0.0
    %3389 = vmatprep.subr.mxu0 0.0
    %3390 = vmatpush1.msra.mxu0 0.0
    %3391 = vmatprep.subr.mxu0 0.0
    %3392 = vmatpush1.msra.mxu0 0.0
    %3393 = vmatprep.subr.mxu0 0.0
    %3394 = vmatpush1.msra.mxu0 0.0
    %3395 = vmatprep.subr.mxu0 0.0
    %3396 = vmatpush1.msra.mxu0 0.0
    %3397 = vmatprep.subr.mxu0 0.0
    %3398 = vmatpush1.msra.mxu0 0.0
    %3399 = vmatprep.subr.mxu0 0.0
    %3400 = vmatpush1.msra.mxu0 0.0
    %3401 = vmatprep.subr.mxu0 0.0
    %3402 = vmatpush1.msra.mxu0 0.0
    %3403 = vmatprep.subr.mxu0 0.0
    %3404 = vmatpush1.msra.mxu0 0.0
    %3405 = vmatprep.subr.mxu0 0.0
    %3406 = vmatpush1.msra.mxu0 0.0
    %3407 = vmatprep.subr.mxu0 0.0
    %3408 = vmatpush1.msra.mxu0 0.0
    %3409 = vmatprep.subr.mxu0 0.0
    %3410 = vmatpush1.msra.mxu0 0.0
    %3411 = vmatprep.subr.mxu0 0.0
    %3412 = vmatpush1.msra.mxu0 0.0
    %3413 = vmatprep.subr.mxu0 0.0
    %3414 = vmatpush1.msra.mxu0 0.0
    %3415 = vmatprep.subr.mxu0 0.0
    %3416 = vmatpush1.msra.mxu0 0.0
    %3417 = vmatprep.subr.mxu0 0.0
    %3418 = vmatpush1.msra.mxu0 0.0
    %3419 = vmatprep.subr.mxu0 0.0
    %3420 = vmatpush1.msra.mxu0 0.0
    %3421 = vmatprep.subr.mxu0 0.0
    %3422 = vmatpush1.msra.mxu0 0.0
    %3423 = vmatprep.subr.mxu0 0.0
    %3424 = vmatpush1.msra.mxu0 0.0
    %3425 = vmatprep.subr.mxu0 0.0
    %3426 = vmatpush1.msra.mxu0 0.0
    %3427 = vmatprep.subr.mxu0 0.0
    %3428 = vmatpush1.msra.mxu0 0.0
    %3429 = vmatprep.subr.mxu0 0.0
    %3430 = vmatpush1.msra.mxu0 0.0
    %3431 = vmatprep.subr.mxu0 0.0
    %3432 = vmatpush1.msra.mxu0 0.0
    %3433 = vmatprep.subr.mxu0 0.0
    %3434 = vmatpush1.msra.mxu0 0.0
    %3435 = vmatprep.subr.mxu0 0.0
    %3436 = vmatpush1.msra.mxu0 0.0
    %3437 = vmatprep.subr.mxu0 0.0
    %3438 = vmatpush1.msra.mxu0 0.0
    %3439 = vmatprep.subr.mxu0 0.0
    %3440 = vmatpush1.msra.mxu0 0.0
    %3441 = vmatprep.subr.mxu0 0.0
    %3442 = vmatpush1.msra.mxu0 0.0
    %3443 = vmatprep.subr.mxu0 0.0
    %3444 = vmatpush1.msra.mxu0 0.0
    %3445 = vmatprep.mubr.f32.mxu0 0.0
    %3446 = vmatmul.mubr.f32.gmra.mrb[0].mxu0 %v3379
    %v3447 = vpop.f32.mrb[0].mxu0
    %v3448 = vadd.f32 0.0, %v3447
    %v3449 = vpop.f32.mrb[0].mxu0
    %3450 = vdwg.mxu0
    %3453 = vrot.lane.b32.xlu0 %v3068, 8
    %v3454 = vpop.permute.xlu0 %3453
    %3455 = vrot.lane.b32.xlu0 %v3144, 8
    %v3456 = vpop.permute.xlu0 %3455
    %3461 = vrot.lane.b32.xlu0 %v3220, 16
    %v3462 = vpop.permute.xlu0 %3461
    %3463 = vrot.lane.b32.xlu0 %v3296, 16
    %v3464 = vpop.permute.xlu0 %3463
    %3469 = vrot.lane.b32.xlu0 %v3372, 24
    %v3470 = vpop.permute.xlu0 %3469
    %3471 = vrot.lane.b32.xlu0 %v3448, 24
    %v3472 = vpop.permute.xlu0 %3471
    %v3475 = vsel %vm221, %v2916, %v3454
    %v3476 = vsel %vm221, %v2992, %v3456
    %v3477 = vsel %vm1651, %v3475, %v3462
    %v3478 = vsel %vm1651, %v3476, %v3464
    %v3479 = vsel %vm1654, %v3477, %v3470
    %v3480 = vsel %vm1654, %v3478, %v3472
    %v3481 = vsel %vm75, %v3479, 0.0
    %3482 = vadd.xlane.f32.xlu0 %v3481
    %v3483 = vpop.xlane.xlu0 %3482
    %v3484 = vsel %vm75, %v3480, 0.0
    %3485 = vadd.xlane.f32.xlu0 %v3484
    %v3486 = vpop.xlane.xlu0 %3485
    %v3487 = vmul.f32 %v3483, %v82
    %v3488 = vmul.f32 %v3486, %v82
    %v3489 = vsub.f32 %v3479, %v3487
    %v3490 = vsub.f32 %v3480, %v3488
    %v3491 = vmul.f32 %v3489, %v3489
    %v3492 = vmul.f32 %v3490, %v3490
    %v3493 = vsel %vm75, %v3491, 0.0
    %3494 = vadd.xlane.f32.xlu0 %v3493
    %v3495 = vpop.xlane.xlu0 %3494
    %v3496 = vsel %vm75, %v3492, 0.0
    %3497 = vadd.xlane.f32.xlu0 %v3496
    %v3498 = vpop.xlane.xlu0 %3497
    %v3499 = vmul.f32 %v3495, %v82
    %v3500 = vmul.f32 %v3498, %v82
    %v3501 = vadd.f32 %v3499, 1e-05
    %v3502 = vadd.f32 %v3500, 1e-05
    %v3503 = vrsqrt.pop %v3501
    %v3504 = vmul.f32 %v3501, %v3503
    %vm3505 = vcmp.eq.f32.partialorder %v3501, inf
    %v3506 = vsel %vm3505, %v3501, %v3504
    %vm3507 = vcmp.eq.f32.partialorder %v3501, 0.0
    %v3508 = vand.u32 %v3501, 2147483648
    %v3509 = vsel %vm3507, %v3508, %v3506
    %v3510 = vrsqrt.pop %v3502
    %v3511 = vmul.f32 %v3502, %v3510
    %vm3512 = vcmp.eq.f32.partialorder %v3502, inf
    %v3513 = vsel %vm3512, %v3502, %v3511
    %vm3514 = vcmp.eq.f32.partialorder %v3502, 0.0
    %v3515 = vand.u32 %v3502, 2147483648
    %v3516 = vsel %vm3514, %v3515, %v3513
    %v3517 = vrcp.pop %v3509
    %v3518 = vmul.f32 %v3489, %v3517
    %v3519 = vrcp.pop %v3516
    %v3520 = vmul.f32 %v3490, %v3519
    %v3521 = vlaneseq
    %v3522 = vshrl.u32 %v3521, 7
    %v3523 = vsub.s32 6, %v3522
    %v3524 = vrot.slane %v32, %v3523
    %v3525 = vmul.f32 %v3518, %v3524
    %v3526 = vmul.f32 %v3520, %v3524
    %v3527 = vlaneseq
    %v3528 = vshrl.u32 %v3527, 7
    %v3529 = vsub.s32 7, %v3528
    %v3530 = vrot.slane %v32, %v3529
    %v3531 = vadd.f32 %v3525, %v3530
    %v3532 = vadd.f32 %v3526, %v3530
    %s3533 = scalar_lea.vmem %s4, 32
    %v3534 = vld [vmem:[%s3533] sm:$0xff]
    %v3535 = vld [vmem:[%s3533 + $0x8] sm:$0xff]
    %v3536 = vld [vmem:[%s3533 + $0x10] sm:$0xff]
    %v3537 = vld [vmem:[%s3533 + $0x18] sm:$0xff]
    %v3538 = vlaneseq
    %v3539 = vshrl.u32 %v3538, 7
    %v3540 = vsub.s32 3, %v3539
    %v3541 = vrot.slane %v34, %v3540
    %v3543 = vsel %vm75, %v3531, 0
    %v3546 = vsel %vm75, %v3532, 0
    %3548 = vmatprep.subr.mxu0 0.0
    %3549 = vmatpush1.msra.mxu0 %v3534
    %3550 = vmatprep.subr.mxu0 0.0
    %3551 = vmatpush1.msra.mxu0 %v3535
    %3552 = vmatprep.subr.mxu0 0.0
    %3553 = vmatpush1.msra.mxu0 %v3536
    %3554 = vmatprep.subr.mxu0 0.0
    %3555 = vmatpush1.msra.mxu0 %v3537
    %3556 = vmatprep.subr.mxu0 0.0
    %3557 = vmatpush1.msra.mxu0 0.0
    %3558 = vmatprep.subr.mxu0 0.0
    %3559 = vmatpush1.msra.mxu0 0.0
    %3560 = vmatprep.subr.mxu0 0.0
    %3561 = vmatpush1.msra.mxu0 0.0
    %3562 = vmatprep.subr.mxu0 0.0
    %3563 = vmatpush1.msra.mxu0 0.0
    %3564 = vmatprep.subr.mxu0 0.0
    %3565 = vmatpush1.msra.mxu0 0.0
    %3566 = vmatprep.subr.mxu0 0.0
    %3567 = vmatpush1.msra.mxu0 0.0
    %3568 = vmatprep.subr.mxu0 0.0
    %3569 = vmatpush1.msra.mxu0 0.0
    %3570 = vmatprep.subr.mxu0 0.0
    %3571 = vmatpush1.msra.mxu0 0.0
    %3572 = vmatprep.subr.mxu0 0.0
    %3573 = vmatpush1.msra.mxu0 0.0
    %3574 = vmatprep.subr.mxu0 0.0
    %3575 = vmatpush1.msra.mxu0 0.0
    %3576 = vmatprep.subr.mxu0 0.0
    %3577 = vmatpush1.msra.mxu0 0.0
    %3578 = vmatprep.subr.mxu0 0.0
    %3579 = vmatpush1.msra.mxu0 0.0
    %3580 = vmatprep.subr.mxu0 0.0
    %3581 = vmatpush1.msra.mxu0 0.0
    %3582 = vmatprep.subr.mxu0 0.0
    %3583 = vmatpush1.msra.mxu0 0.0
    %3584 = vmatprep.subr.mxu0 0.0
    %3585 = vmatpush1.msra.mxu0 0.0
    %3586 = vmatprep.subr.mxu0 0.0
    %3587 = vmatpush1.msra.mxu0 0.0
    %3588 = vmatprep.subr.mxu0 0.0
    %3589 = vmatpush1.msra.mxu0 0.0
    %3590 = vmatprep.subr.mxu0 0.0
    %3591 = vmatpush1.msra.mxu0 0.0
    %3592 = vmatprep.subr.mxu0 0.0
    %3593 = vmatpush1.msra.mxu0 0.0
    %3594 = vmatprep.subr.mxu0 0.0
    %3595 = vmatpush1.msra.mxu0 0.0
    %3596 = vmatprep.subr.mxu0 0.0
    %3597 = vmatpush1.msra.mxu0 0.0
    %3598 = vmatprep.subr.mxu0 0.0
    %3599 = vmatpush1.msra.mxu0 0.0
    %3600 = vmatprep.subr.mxu0 0.0
    %3601 = vmatpush1.msra.mxu0 0.0
    %3602 = vmatprep.subr.mxu0 0.0
    %3603 = vmatpush1.msra.mxu0 0.0
    %3604 = vmatprep.subr.mxu0 0.0
    %3605 = vmatpush1.msra.mxu0 0.0
    %3606 = vmatprep.subr.mxu0 0.0
    %3607 = vmatpush1.msra.mxu0 0.0
    %3608 = vmatprep.subr.mxu0 0.0
    %3609 = vmatpush1.msra.mxu0 0.0
    %3610 = vmatprep.subr.mxu0 0.0
    %3611 = vmatpush1.msra.mxu0 0.0
    %3612 = vmatprep.mubr.f32.mxu0 0.0
    %3613 = vmatmul.mubr.f32.gmra.mrb[0].mxu0 %v3543
    %v3614 = vpop.f32.mrb[0].mxu0
    %v3615 = vadd.f32 %v3541, %v3614
    %v3616 = vpop.f32.mrb[0].mxu0
    %3617 = vmatprep.mubr.f32.mxu0 0.0
    %3618 = vmatmul.mubr.f32.gmra.mrb[0].mxu0 %v3546
    %v3619 = vpop.f32.mrb[0].mxu0
    %v3620 = vadd.f32 %v3541, %v3619
    %v3621 = vpop.f32.mrb[0].mxu0
    %3622 = vdwg.mxu0
    %v3623 = vmul.f32 %v3615, 0.5
    %v3624 = vmul.f32 %v3620, 0.5
    %v3625 = vmul.f32 %v3615, 0.70710677
    %v3626 = vmul.f32 %v3620, 0.70710677
    %v3627 = verf.f32.pop %v3625
    %v3628 = verf.f32.pop %v3626
    %v3629 = vadd.f32 %v3627, 1.0
    %v3630 = vadd.f32 %v3628, 1.0
    %v3631 = vmul.f32 %v3623, %v3629
    %v3632 = vmul.f32 %v3624, %v3630
    %s3633 = scalar_lea.vmem %s5, 128
    %v3634 = vld [vmem:[%s3633] sm:$0xff]
    %v3635 = vld [vmem:[%s3633 + $0x8] sm:$0xff]
    %v3636 = vld [vmem:[%s3633 + $0x10] sm:$0xff]
    %v3637 = vld [vmem:[%s3633 + $0x18] sm:$0xff]
    %v3638 = vld [vmem:[%s3633 + $0x20] sm:$0xff]
    %v3639 = vld [vmem:[%s3633 + $0x28] sm:$0xff]
    %v3640 = vld [vmem:[%s3633 + $0x30] sm:$0xff]
    %v3641 = vld [vmem:[%s3633 + $0x38] sm:$0xff]
    %v3642 = vld [vmem:[%s3633 + $0x40] sm:$0xff]
    %v3643 = vld [vmem:[%s3633 + $0x48] sm:$0xff]
    %v3644 = vld [vmem:[%s3633 + $0x50] sm:$0xff]
    %v3645 = vld [vmem:[%s3633 + $0x58] sm:$0xff]
    %v3646 = vld [vmem:[%s3633 + $0x60] sm:$0xff]
    %v3647 = vld [vmem:[%s3633 + $0x68] sm:$0xff]
    %v3648 = vld [vmem:[%s3633 + $0x70] sm:$0xff]
    %v3649 = vld [vmem:[%s3633 + $0x78] sm:$0xff]
    %v3650 = vlaneseq
    %v3651 = vshrl.u32 %v3650, 7
    %v3652 = vsub.s32 5, %v3651
    %v3653 = vrot.slane %v34, %v3652
    %3654 = vmatprep.subr.mxu0 0.0
    %3655 = vmatpush1.msra.mxu0 %v3634
    %3656 = vmatprep.subr.mxu0 0.0
    %3657 = vmatpush1.msra.mxu0 %v3635
    %3658 = vmatprep.subr.mxu0 0.0
    %3659 = vmatpush1.msra.mxu0 %v3636
    %3660 = vmatprep.subr.mxu0 0.0
    %3661 = vmatpush1.msra.mxu0 %v3637
    %3662 = vmatprep.subr.mxu0 0.0
    %3663 = vmatpush1.msra.mxu0 %v3638
    %3664 = vmatprep.subr.mxu0 0.0
    %3665 = vmatpush1.msra.mxu0 %v3639
    %3666 = vmatprep.subr.mxu0 0.0
    %3667 = vmatpush1.msra.mxu0 %v3640
    %3668 = vmatprep.subr.mxu0 0.0
    %3669 = vmatpush1.msra.mxu0 %v3641
    %3670 = vmatprep.subr.mxu0 0.0
    %3671 = vmatpush1.msra.mxu0 %v3642
    %3672 = vmatprep.subr.mxu0 0.0
    %3673 = vmatpush1.msra.mxu0 %v3643
    %3674 = vmatprep.subr.mxu0 0.0
    %3675 = vmatpush1.msra.mxu0 %v3644
    %3676 = vmatprep.subr.mxu0 0.0
    %3677 = vmatpush1.msra.mxu0 %v3645
    %3678 = vmatprep.subr.mxu0 0.0
    %3679 = vmatpush1.msra.mxu0 %v3646
    %3680 = vmatprep.subr.mxu0 0.0
    %3681 = vmatpush1.msra.mxu0 %v3647
    %3682 = vmatprep.subr.mxu0 0.0
    %3683 = vmatpush1.msra.mxu0 %v3648
    %3684 = vmatprep.subr.mxu0 0.0
    %3685 = vmatpush1.msra.mxu0 %v3649
    %3686 = vmatprep.subr.mxu0 0.0
    %3687 = vmatpush1.msra.mxu0 0.0
    %3688 = vmatprep.subr.mxu0 0.0
    %3689 = vmatpush1.msra.mxu0 0.0
    %3690 = vmatprep.subr.mxu0 0.0
    %3691 = vmatpush1.msra.mxu0 0.0
    %3692 = vmatprep.subr.mxu0 0.0
    %3693 = vmatpush1.msra.mxu0 0.0
    %3694 = vmatprep.subr.mxu0 0.0
    %3695 = vmatpush1.msra.mxu0 0.0
    %3696 = vmatprep.subr.mxu0 0.0
    %3697 = vmatpush1.msra.mxu0 0.0
    %3698 = vmatprep.subr.mxu0 0.0
    %3699 = vmatpush1.msra.mxu0 0.0
    %3700 = vmatprep.subr.mxu0 0.0
    %3701 = vmatpush1.msra.mxu0 0.0
    %3702 = vmatprep.subr.mxu0 0.0
    %3703 = vmatpush1.msra.mxu0 0.0
    %3704 = vmatprep.subr.mxu0 0.0
    %3705 = vmatpush1.msra.mxu0 0.0
    %3706 = vmatprep.subr.mxu0 0.0
    %3707 = vmatpush1.msra.mxu0 0.0
    %3708 = vmatprep.subr.mxu0 0.0
    %3709 = vmatpush1.msra.mxu0 0.0
    %3710 = vmatprep.subr.mxu0 0.0
    %3711 = vmatpush1.msra.mxu0 0.0
    %3712 = vmatprep.subr.mxu0 0.0
    %3713 = vmatpush1.msra.mxu0 0.0
    %3714 = vmatprep.subr.mxu0 0.0
    %3715 = vmatpush1.msra.mxu0 0.0
    %3716 = vmatprep.subr.mxu0 0.0
    %3717 = vmatpush1.msra.mxu0 0.0
    %3718 = vmatprep.mubr.f32.mxu0 0.0
    %3719 = vmatmul.mubr.f32.gmra.mrb[0].mxu0 %v3631
    %v3720 = vpop.f32.mrb[0].mxu0
    %v3721 = vadd.f32 %v3653, %v3720
    %v3722 = vpop.f32.mrb[0].mxu0
    %3723 = vmatprep.mubr.f32.mxu0 0.0
    %3724 = vmatmul.mubr.f32.gmra.mrb[0].mxu0 %v3632
    %v3725 = vpop.f32.mrb[0].mxu0
    %v3726 = vadd.f32 %v3653, %v3725
    %v3727 = vpop.f32.mrb[0].mxu0
    %3728 = vdwg.mxu0
    %v3729 = vsel %vm75, %v3721, 0.0
    %3730 = vadd.xlane.f32.xlu0 %v3729
    %v3731 = vpop.xlane.xlu0 %3730
    %v3732 = vsel %vm75, %v3726, 0.0
    %3733 = vadd.xlane.f32.xlu0 %v3732
    %v3734 = vpop.xlane.xlu0 %3733
    %v3735 = vmul.f32 %v3731, %v82
    %v3736 = vmul.f32 %v3734, %v82
    %v3737 = vsub.f32 %v3721, %v3735
    %v3738 = vsub.f32 %v3726, %v3736
    %v3739 = vmul.f32 %v3737, %v3737
    %v3740 = vmul.f32 %v3738, %v3738
    %v3741 = vsel %vm75, %v3739, 0.0
    %3742 = vadd.xlane.f32.xlu0 %v3741
    %v3743 = vpop.xlane.xlu0 %3742
    %v3744 = vsel %vm75, %v3740, 0.0
    %3745 = vadd.xlane.f32.xlu0 %v3744
    %v3746 = vpop.xlane.xlu0 %3745
    %v3747 = vmul.f32 %v3743, %v82
    %v3748 = vmul.f32 %v3746, %v82
    %v3749 = vadd.f32 %v3747, 1e-05
    %v3750 = vadd.f32 %v3748, 1e-05
    %v3751 = vrsqrt.pop %v3749
    %v3752 = vmul.f32 %v3749, %v3751
    %vm3753 = vcmp.eq.f32.partialorder %v3749, inf
    %v3754 = vsel %vm3753, %v3749, %v3752
    %vm3755 = vcmp.eq.f32.partialorder %v3749, 0.0
    %v3756 = vand.u32 %v3749, 2147483648
    %v3757 = vsel %vm3755, %v3756, %v3754
    %v3758 = vrsqrt.pop %v3750
    %v3759 = vmul.f32 %v3750, %v3758
    %vm3760 = vcmp.eq.f32.partialorder %v3750, inf
    %v3761 = vsel %vm3760, %v3750, %v3759
    %vm3762 = vcmp.eq.f32.partialorder %v3750, 0.0
    %v3763 = vand.u32 %v3750, 2147483648
    %v3764 = vsel %vm3762, %v3763, %v3761
    %v3765 = vrcp.pop %v3757
    %v3766 = vmul.f32 %v3737, %v3765
    %v3767 = vrcp.pop %v3764
    %v3768 = vmul.f32 %v3738, %v3767
    %v3769 = vlaneseq
    %v3770 = vshrl.u32 %v3769, 7
    %v3771 = vsub.s32 0, %v3770
    %v3772 = vrot.slane %v33, %v3771
    %v3773 = vmul.f32 %v3766, %v3772
    %v3774 = vmul.f32 %v3768, %v3772
    %v3775 = vlaneseq
    %v3776 = vshrl.u32 %v3775, 7
    %v3777 = vsub.s32 1, %v3776
    %v3778 = vrot.slane %v33, %v3777
    %v3779 = vadd.f32 %v3773, %v3778
    %v3780 = vadd.f32 %v3774, %v3778
    %v3781 = vld [vmem:[%s6] sm:$0xff]
    %v3782 = vld [vmem:[%s6 + $0x8] sm:$0xff]
    %v3783 = vld [vmem:[%s6 + $0x10] sm:$0xff]
    %v3784 = vld [vmem:[%s6 + $0x18] sm:$0xff]
    %v3785 = vlaneseq
    %v3786 = vshrl.u32 %v3785, 7
    %v3787 = vsub.s32 6, %v3786
    %v3788 = vrot.slane %v34, %v3787
    %v3790 = vsel %vm75, %v3779, 0
    %v3793 = vsel %vm75, %v3780, 0
    %3795 = vmatprep.subr.mxu0 0.0
    %3796 = vmatpush1.msra.mxu0 %v3781
    %3797 = vmatprep.subr.mxu0 0.0
    %3798 = vmatpush1.msra.mxu0 %v3782
    %3799 = vmatprep.subr.mxu0 0.0
    %3800 = vmatpush1.msra.mxu0 %v3783
    %3801 = vmatprep.subr.mxu0 0.0
    %3802 = vmatpush1.msra.mxu0 %v3784
    %3803 = vmatprep.subr.mxu0 0.0
    %3804 = vmatpush1.msra.mxu0 0.0
    %3805 = vmatprep.subr.mxu0 0.0
    %3806 = vmatpush1.msra.mxu0 0.0
    %3807 = vmatprep.subr.mxu0 0.0
    %3808 = vmatpush1.msra.mxu0 0.0
    %3809 = vmatprep.subr.mxu0 0.0
    %3810 = vmatpush1.msra.mxu0 0.0
    %3811 = vmatprep.subr.mxu0 0.0
    %3812 = vmatpush1.msra.mxu0 0.0
    %3813 = vmatprep.subr.mxu0 0.0
    %3814 = vmatpush1.msra.mxu0 0.0
    %3815 = vmatprep.subr.mxu0 0.0
    %3816 = vmatpush1.msra.mxu0 0.0
    %3817 = vmatprep.subr.mxu0 0.0
    %3818 = vmatpush1.msra.mxu0 0.0
    %3819 = vmatprep.subr.mxu0 0.0
    %3820 = vmatpush1.msra.mxu0 0.0
    %3821 = vmatprep.subr.mxu0 0.0
    %3822 = vmatpush1.msra.mxu0 0.0
    %3823 = vmatprep.subr.mxu0 0.0
    %3824 = vmatpush1.msra.mxu0 0.0
    %3825 = vmatprep.subr.mxu0 0.0
    %3826 = vmatpush1.msra.mxu0 0.0
    %3827 = vmatprep.subr.mxu0 0.0
    %3828 = vmatpush1.msra.mxu0 0.0
    %3829 = vmatprep.subr.mxu0 0.0
    %3830 = vmatpush1.msra.mxu0 0.0
    %3831 = vmatprep.subr.mxu0 0.0
    %3832 = vmatpush1.msra.mxu0 0.0
    %3833 = vmatprep.subr.mxu0 0.0
    %3834 = vmatpush1.msra.mxu0 0.0
    %3835 = vmatprep.subr.mxu0 0.0
    %3836 = vmatpush1.msra.mxu0 0.0
    %3837 = vmatprep.subr.mxu0 0.0
    %3838 = vmatpush1.msra.mxu0 0.0
    %3839 = vmatprep.subr.mxu0 0.0
    %3840 = vmatpush1.msra.mxu0 0.0
    %3841 = vmatprep.subr.mxu0 0.0
    %3842 = vmatpush1.msra.mxu0 0.0
    %3843 = vmatprep.subr.mxu0 0.0
    %3844 = vmatpush1.msra.mxu0 0.0
    %3845 = vmatprep.subr.mxu0 0.0
    %3846 = vmatpush1.msra.mxu0 0.0
    %3847 = vmatprep.subr.mxu0 0.0
    %3848 = vmatpush1.msra.mxu0 0.0
    %3849 = vmatprep.subr.mxu0 0.0
    %3850 = vmatpush1.msra.mxu0 0.0
    %3851 = vmatprep.subr.mxu0 0.0
    %3852 = vmatpush1.msra.mxu0 0.0
    %3853 = vmatprep.subr.mxu0 0.0
    %3854 = vmatpush1.msra.mxu0 0.0
    %3855 = vmatprep.subr.mxu0 0.0
    %3856 = vmatpush1.msra.mxu0 0.0
    %3857 = vmatprep.subr.mxu0 0.0
    %3858 = vmatpush1.msra.mxu0 0.0
    %3859 = vmatprep.mubr.f32.mxu0 0.0
    %3860 = vmatmul.mubr.f32.gmra.mrb[0].mxu0 %v3790
    %v3861 = vpop.f32.mrb[0].mxu0
    %v3862 = vadd.f32 %v3788, %v3861
    %v3863 = vpop.f32.mrb[0].mxu0
    %3864 = vmatprep.mubr.f32.mxu0 0.0
    %3865 = vmatmul.mubr.f32.gmra.mrb[0].mxu0 %v3793
    %v3866 = vpop.f32.mrb[0].mxu0
    %v3867 = vadd.f32 %v3788, %v3866
    %v3868 = vpop.f32.mrb[0].mxu0
    %3869 = vdwg.mxu0
    %3870 = vmax.xlane.f32.xlu0 %v3862
    %v3871 = vpop.xlane.xlu0 %3870
    %3872 = vmax.xlane.f32.xlu0 %v3867
    %v3873 = vpop.xlane.xlu0 %3872
    %v3874 = vsub.f32 %v3862, %v3871
    %v3875 = vsub.f32 %v3867, %v3873
    %v3876 = vmul.f32 %v3874, 1.442695
    %v3877 = vpow.pop %v3876
    %v3878 = vmul.f32 %v3875, 1.442695
    %v3879 = vpow.pop %v3878
    %3880 = vadd.xlane.f32.xlu0 %v3877
    %v3881 = vpop.xlane.xlu0 %3880
    %3882 = vadd.xlane.f32.xlu0 %v3879
    %v3883 = vpop.xlane.xlu0 %3882
    %v3884 = vrcp.pop %v3881
    %v3885 = vmul.f32 %v3877, %v3884
    %v3886 = vrcp.pop %v3883
    %v3887 = vmul.f32 %v3879, %v3886
    %3888 = vst [vmem:[#allocation2] sm:$0xff] %v3885
    %3889 = vst [vmem:[#allocation2 + $0x8] sm:$0xff] %v3887
    // Predicated region
    $region34: #{tpu_custom_call.1} parent=1 // pred_check
      _
    $region35: #{tpu_custom_call.1} parent=1 // pred_check_branch
      %3891 = sbr.rel (0) target = $region37
    $region36: #{tpu_custom_call.1} parent=1 // pred_region
      %s3893 = ssub.s32 256, 256
      %3894 = vsyncadd [#allocation3], %s3893
      %s3895 = sshll.u32 [#allocation2], 4
      %s3896 = int_to_ptr.vmem [resolvable:$true] %s3895
      %3901 = dma.vmem_to_hbm [thread:$0]  %s3896, 256, %s8, [#allocation3], 128, 128, 8
    $region37: #{tpu_custom_call.1} parent=1 // pred_fallthru
      _
    // Predicated region
    $region38: #{tpu_custom_call.1} parent=1 // pred_check
      _
    $region39: #{tpu_custom_call.1} parent=1 // pred_check_branch
      %3903 = sbr.rel (0) target = $region41
    $region40: #{tpu_custom_call.1} parent=1 // pred_region
      %3904 = dma.done [#allocation3], 256
    $region41: #{tpu_custom_call.1} parent=1 // pred_fallthru
      _
    %3905 = vsyncpa [#allocation3], 1

</llo_original>
